<compile_context>
chip_gen: v5e
topology: v5e:2x2
jax: 0.10.0
libtpu: 0.0.40
codegen_flags: <defaults>
</compile_context>

<pallas_src>
import jax
import jax.numpy as jnp
from jax import lax
from jax.experimental import pallas as pl
from jax.experimental.pallas import tpu as pltpu


def _resblock_kernel(xpad_ref, w1_ref, w2_ref, b1_ref, b2_ref, out_ref, mid_ref):
    """One batch element per grid step.

    xpad_ref : (1, H+2, W+2, Cp)  bf16  zero-padded input (NHWC, lane-dense Cp)
    w1_ref   : (9*Cp, Cp)         bf16  conv1 weights (BN1 scale folded in)
    w2_ref   : (9*Cp, Cp)         bf16  conv2 weights (BN2 scale folded in)
    b1_ref   : (1, Cp)            f32   folded BN1 bias
    b2_ref   : (1, Cp)            f32   folded BN2 bias
    out_ref  : (1, H, W, Cp)      f32
    mid_ref  : (H+2, W+2, Cp)     bf16  VMEM scratch: padded intermediate act.
    """
    H = out_ref.shape[1]
    W = out_ref.shape[2]
    Cp = out_ref.shape[3]
    HW = H * W

    xpad = xpad_ref[0]                                    # (H+2, W+2, Cp) bf16

    # ---- conv1 (+ folded BN1 scale): single im2col matmul on the MXU --------
    patches1 = jnp.concatenate(
        [xpad[dh:dh + H, dw:dw + W, :] for dh in range(3) for dw in range(3)],
        axis=2).reshape(HW, 9 * Cp)                       # (HW, 9*Cp) bf16
    acc1 = jnp.dot(patches1, w1_ref[...],
                   preferred_element_type=jnp.float32)    # (HW, Cp) f32

    # ---- BN1 bias + ReLU -----------------------------------------------------
    act1 = jnp.maximum(acc1 + b1_ref[...], 0.0).astype(mid_ref.dtype)

    # ---- stash act1 into the padded scratch: zero only the 1-px border ------
    zrow = jnp.zeros((1, W + 2, Cp), mid_ref.dtype)
    zcol = jnp.zeros((H + 2, 1, Cp), mid_ref.dtype)
    mid_ref[0:1, :, :] = zrow
    mid_ref[H + 1:H + 2, :, :] = zrow
    mid_ref[:, 0:1, :] = zcol
    mid_ref[:, W + 1:W + 2, :] = zcol
    mid_ref[1:H + 1, 1:W + 1, :] = act1.reshape(H, W, Cp)

    mid = mid_ref[...]                                    # (H+2, W+2, Cp) bf16

    # ---- conv2 (+ folded BN2 scale): single im2col matmul --------------------
    patches2 = jnp.concatenate(
        [mid[dh:dh + H, dw:dw + W, :] for dh in range(3) for dw in range(3)],
        axis=2).reshape(HW, 9 * Cp)
    acc2 = jnp.dot(patches2, w2_ref[...],
                   preferred_element_type=jnp.float32)    # (HW, Cp) f32

    # ---- BN2 bias + residual + ReLU ------------------------------------------
    residual = xpad[1:H + 1, 1:W + 1, :].reshape(HW, Cp).astype(jnp.float32)
    out = jnp.maximum(acc2 + b2_ref[...] + residual, 0.0)
    out_ref[0] = out.reshape(H, W, Cp).astype(out_ref.dtype)


def residual_block_pallas(x_nchw, params, *, eps=1e-5):
    """Forward pass of ResidualBlock. x_nchw: (N, C, H, W) float32."""
    w1, w2, g1, be1, rm1, rv1, g2, be2, rm2, rv2 = params

    N, C, H, W = x_nchw.shape
    cout = w1.shape[3]
    assert w1.shape[2] == C and cout == C, \
        "downsample=None requires Cin == Cout and stride 1"

    # Fold BN (eval mode) into per-channel scale/bias; fold the scale directly
    # into the conv weights so only the bias add remains in-kernel.
    s1 = g1 / jnp.sqrt(rv1 + eps)
    b1 = be1 - rm1 * s1
    s2 = g2 / jnp.sqrt(rv2 + eps)
    b2 = be2 - rm2 * s2
    w1f = w1.astype(jnp.float32) * s1           # (3,3,C,C), scaled per out-chan
    w2f = w2.astype(jnp.float32) * s2

    # Lane-dense channel layout: pad channels to a multiple of 128.
    Cp = ((C + 127) // 128) * 128

    w1p = jnp.zeros((3, 3, Cp, Cp), jnp.float32).at[:, :, :C, :C].set(w1f)
    w2p = jnp.zeros((3, 3, Cp, Cp), jnp.float32).at[:, :, :C, :C].set(w2f)
    w1k = w1p.reshape(9 * Cp, Cp).astype(jnp.bfloat16)
    w2k = w2p.reshape(9 * Cp, Cp).astype(jnp.bfloat16)
    b1k = jnp.zeros((1, Cp), jnp.float32).at[0, :C].set(b1)
    b2k = jnp.zeros((1, Cp), jnp.float32).at[0, :C].set(b2)

    # NCHW -> NHWC, 1-px spatial halo + channel pad in one pad op, cast the
    # matmul operand to bf16 (accumulation stays f32 inside the kernel).
    x_nhwc = jnp.transpose(x_nchw, (0, 2, 3, 1)).astype(jnp.float32)
    xpad = jnp.pad(
        x_nhwc, ((0, 0), (1, 1), (1, 1), (0, Cp - C))).astype(jnp.bfloat16)

    flops = 2 * 2 * N * H * W * 9 * Cp * Cp                    # two 3x3 convs
    bytes_accessed = (xpad.size * 2 + w1k.size * 2 + w2k.size * 2
                      + b1k.size * 4 + b2k.size * 4 + N * H * W * Cp * 4)

    out_nhwc = pl.pallas_call(
        _resblock_kernel,
        out_shape=jax.ShapeDtypeStruct((N, H, W, Cp), jnp.float32),
        grid_spec=pltpu.PrefetchScalarGridSpec(
            num_scalar_prefetch=0,
            grid=(N,),
            in_specs=[
                pl.BlockSpec((1, H + 2, W + 2, Cp), lambda n: (n, 0, 0, 0)),
                pl.BlockSpec((9 * Cp, Cp), lambda n: (0, 0)),
                pl.BlockSpec((9 * Cp, Cp), lambda n: (0, 0)),
                pl.BlockSpec((1, Cp), lambda n: (0, 0)),
                pl.BlockSpec((1, Cp), lambda n: (0, 0)),
            ],
            out_specs=pl.BlockSpec((1, H, W, Cp), lambda n: (n, 0, 0, 0)),
            scratch_shapes=[pltpu.VMEM((H + 2, W + 2, Cp), jnp.bfloat16)],
        ),
        compiler_params=pltpu.CompilerParams(
            dimension_semantics=("parallel",),
            vmem_limit_bytes=32 * 1024 * 1024),
        cost_estimate=pl.CostEstimate(
            flops=flops, transcendentals=0, bytes_accessed=bytes_accessed),
    )(xpad, w1k, w2k, b1k, b2k)

    # Drop the padded channels and go back to NCHW.
    return jnp.transpose(out_nhwc[..., :C], (0, 3, 1, 2))


# --------------------------- references (pure JAX) ---------------------------

def residual_block_ref_f32(x_nchw, params, eps=1e-5):
    """Exact PyTorch-mirror forward in f32 (HIGHEST precision convs)."""
    w1, w2, g1, be1, rm1, rv1, g2, be2, rm2, rv2 = params

    def conv3x3(x, w_hwio):
        w_oihw = jnp.transpose(w_hwio, (3, 2, 0, 1))
        return lax.conv_general_dilated(
            x, w_oihw, window_strides=(1, 1), padding=((1, 1), (1, 1)),
            dimension_numbers=("NCHW", "OIHW", "NCHW"),
            precision=lax.Precision.HIGHEST)

    def bn(x, g, b, rm, rv):
        inv = g / jnp.sqrt(rv + eps)
        return x * inv.reshape(1, -1, 1, 1) + (b - rm * inv).reshape(1, -1, 1, 1)

    out = jnp.maximum(bn(conv3x3(x_nchw, w1), g1, be1, rm1, rv1), 0.0)
    out = bn(conv3x3(out, w2), g2, be2, rm2, rv2)
    return jnp.maximum(out + x_nchw, 0.0)


def residual_block_ref_bf16(x_nchw, params, eps=1e-5):
    """Same math as the kernel (bf16 operands, f32 accumulation) via lax.conv —
    an independent implementation used for a tight numerical check."""
    w1, w2, g1, be1, rm1, rv1, g2, be2, rm2, rv2 = params
    s1 = g1 / jnp.sqrt(rv1 + eps)
    b1 = be1 - rm1 * s1
    s2 = g2 / jnp.sqrt(rv2 + eps)
    b2 = be2 - rm2 * s2

    def conv(x_bf16, w_bf16):
        return lax.conv_general_dilated(
            x_bf16, w_bf16, window_strides=(1, 1), padding=((1, 1), (1, 1)),
            dimension_numbers=("NHWC", "HWIO", "NHWC"),
            preferred_element_type=jnp.float32)

    x_nhwc = jnp.transpose(x_nchw, (0, 2, 3, 1)).astype(jnp.float32)
    xb = x_nhwc.astype(jnp.bfloat16)
    a1 = jnp.maximum(conv(xb, (w1 * s1).astype(jnp.bfloat16)) + b1, 0.0)
    a1 = a1.astype(jnp.bfloat16)
    a2 = conv(a1, (w2 * s2).astype(jnp.bfloat16)) + b2
    out = jnp.maximum(a2 + xb.astype(jnp.float32), 0.0)
    return jnp.transpose(out, (0, 3, 1, 2))


def make_params(key, cin, cout):
    ks = jax.random.split(key, 8)
    w1 = jax.random.normal(ks[0], (3, 3, cin, cout), jnp.float32) * 0.1
    w2 = jax.random.normal(ks[1], (3, 3, cout, cout), jnp.float32) * 0.1
    g1 = 1.0 + 0.1 * jax.random.normal(ks[2], (cout,), jnp.float32)
    be1 = 0.1 * jax.random.normal(ks[3], (cout,), jnp.float32)
    rm1 = 0.1 * jax.random.normal(ks[4], (cout,), jnp.float32)
    rv1 = 1.0 + 0.1 * jnp.abs(jax.random.normal(ks[5], (cout,), jnp.float32))
    g2 = 1.0 + 0.1 * jax.random.normal(ks[6], (cout,), jnp.float32)
    be2 = 0.1 * jax.random.normal(ks[7], (cout,), jnp.float32)
    rm2 = jnp.zeros((cout,), jnp.float32)
    rv2 = jnp.ones((cout,), jnp.float32)
    return (w1, w2, g1, be1, rm1, rv1, g2, be2, rm2, rv2)


if __name__ == "__main__":
    key = jax.random.PRNGKey(0)
    k_x, k_p = jax.random.split(key)

    N, C, H, W = 2, 4, 16, 16
    x = jax.random.normal(k_x, (N, C, H, W), jnp.float32)
    params = make_params(k_p, C, C)

    out = jax.jit(residual_block_pallas)(x, params)
    out = jax.block_until_ready(out)
    assert out.shape == (N, C, H, W)

    # Tight check vs an independent implementation with matching bf16 casts
    # (slack covers f32 accumulation-order differences + one bf16 ULP of act1).
    ref_b = residual_block_ref_bf16(x, params)
    err_b = float(jnp.max(jnp.abs(out - ref_b)))
    assert jnp.allclose(out, ref_b, atol=5e-3, rtol=5e-3), err_b

    # Looser sanity check vs the pure-f32 PyTorch-mirror forward
    # (slack accounts for bf16 matmul operands / bf16 residual).
    ref_f = residual_block_ref_f32(x, params)
    err_f = float(jnp.max(jnp.abs(out - ref_f)))
    assert jnp.allclose(out, ref_f, atol=1e-1, rtol=1e-1), err_f

    print("KERNEL_OK")
</pallas_src>

<mosaic_0001>
module attributes {stable_mosaic.version = 11 : i64} {
  func.func @_resblock_kernel(%arg0: i32, %arg1: memref<1x18x18x128xbf16, #tpu.memory_space<vmem>>, %arg2: memref<1152x128xbf16, #tpu.memory_space<vmem>>, %arg3: memref<1152x128xbf16, #tpu.memory_space<vmem>>, %arg4: memref<1x128xf32, #tpu.memory_space<vmem>>, %arg5: memref<1x128xf32, #tpu.memory_space<vmem>>, %arg6: memref<1x16x16x128xf32, #tpu.memory_space<vmem>>, %arg7: memref<18x18x128xbf16, #tpu.memory_space<vmem>>) attributes {dimension_semantics = [#tpu.dimension_semantics<parallel>], iteration_bounds = array<i64: 2>, scalar_prefetch = 0 : i64, scratch_operands = 1 : i64, tpu.core_type = #tpu.core_type<tc>, window_params = [{transform_indices = @transform_0, window_bounds = array<i64: 1, 18, 18, 128>}, {pipeline_mode = #tpu.pipeline_mode<synchronous>, transform_indices = @transform_1, window_bounds = array<i64: 1152, 128>}, {pipeline_mode = #tpu.pipeline_mode<synchronous>, transform_indices = @transform_2, window_bounds = array<i64: 1152, 128>}, {pipeline_mode = #tpu.pipeline_mode<synchronous>, transform_indices = @transform_3, window_bounds = array<i64: 1, 128>}, {pipeline_mode = #tpu.pipeline_mode<synchronous>, transform_indices = @transform_4, window_bounds = array<i64: 1, 128>}, {transform_indices = @transform_5, window_bounds = array<i64: 1, 16, 16, 128>}]} {
    %c0 = arith.constant 0 : index
    %c0_0 = arith.constant 0 : index
    %c0_1 = arith.constant 0 : index
    %c0_2 = arith.constant 0 : index
    %0 = vector.load %arg1[%c0, %c0_0, %c0_1, %c0_2] : memref<1x18x18x128xbf16, #tpu.memory_space<vmem>>, vector<1x18x18x128xbf16>
    %1 = vector.shape_cast %0 : vector<1x18x18x128xbf16> to vector<18x18x128xbf16>
    %2 = vector.extract_strided_slice %1 {offsets = [0, 0, 0], sizes = [16, 16, 128], strides = [1, 1, 1]} : vector<18x18x128xbf16> to vector<16x16x128xbf16>
    %3 = vector.extract_strided_slice %1 {offsets = [0, 1, 0], sizes = [16, 16, 128], strides = [1, 1, 1]} : vector<18x18x128xbf16> to vector<16x16x128xbf16>
    %4 = vector.extract_strided_slice %1 {offsets = [0, 2, 0], sizes = [16, 16, 128], strides = [1, 1, 1]} : vector<18x18x128xbf16> to vector<16x16x128xbf16>
    %5 = vector.extract_strided_slice %1 {offsets = [1, 0, 0], sizes = [16, 16, 128], strides = [1, 1, 1]} : vector<18x18x128xbf16> to vector<16x16x128xbf16>
    %6 = vector.extract_strided_slice %1 {offsets = [1, 1, 0], sizes = [16, 16, 128], strides = [1, 1, 1]} : vector<18x18x128xbf16> to vector<16x16x128xbf16>
    %7 = vector.extract_strided_slice %1 {offsets = [1, 2, 0], sizes = [16, 16, 128], strides = [1, 1, 1]} : vector<18x18x128xbf16> to vector<16x16x128xbf16>
    %8 = vector.extract_strided_slice %1 {offsets = [2, 0, 0], sizes = [16, 16, 128], strides = [1, 1, 1]} : vector<18x18x128xbf16> to vector<16x16x128xbf16>
    %9 = vector.extract_strided_slice %1 {offsets = [2, 1, 0], sizes = [16, 16, 128], strides = [1, 1, 1]} : vector<18x18x128xbf16> to vector<16x16x128xbf16>
    %10 = vector.extract_strided_slice %1 {offsets = [2, 2, 0], sizes = [16, 16, 128], strides = [1, 1, 1]} : vector<18x18x128xbf16> to vector<16x16x128xbf16>
    %11 = tpu.concatenate %2, %3, %4, %5, %6, %7, %8, %9, %10 in 2 : vector<16x16x128xbf16>, vector<16x16x128xbf16>, vector<16x16x128xbf16>, vector<16x16x128xbf16>, vector<16x16x128xbf16>, vector<16x16x128xbf16>, vector<16x16x128xbf16>, vector<16x16x128xbf16>, vector<16x16x128xbf16> -> vector<16x16x1152xbf16>
    %12 = vector.shape_cast %11 : vector<16x16x1152xbf16> to vector<256x1152xbf16>
    %c0_3 = arith.constant 0 : index
    %c0_4 = arith.constant 0 : index
    %13 = vector.load %arg2[%c0_3, %c0_4] : memref<1152x128xbf16, #tpu.memory_space<vmem>>, vector<1152x128xbf16>
    %cst = arith.constant dense<0.000000e+00> : vector<256x128xf32>
    %14 = tpu.matmul %12, %13, %cst {dimension_numbers = #tpu.dot_dimension_numbers<[1], [0], [0], [1], [0, 0, 1, 1], [], []>} : vector<256x1152xbf16>, vector<1152x128xbf16>, vector<256x128xf32> -> vector<256x128xf32>
    %c0_5 = arith.constant 0 : index
    %c0_6 = arith.constant 0 : index
    %15 = vector.load %arg4[%c0_5, %c0_6] : memref<1x128xf32, #tpu.memory_space<vmem>>, vector<1x128xf32>
    %16 = vector.broadcast %15 : vector<1x128xf32> to vector<256x128xf32>
    %17 = arith.addf %14, %16 : vector<256x128xf32>
    %cst_7 = arith.constant 0.000000e+00 : f32
    %18 = vector.broadcast %cst_7 : f32 to vector<256x128xf32>
    %19 = arith.maximumf %17, %18 : vector<256x128xf32>
    %20 = arith.truncf %19 : vector<256x128xf32> to vector<256x128xbf16>
    %cst_8 = arith.constant 0.000000e+00 : bf16
    %21 = vector.broadcast %cst_8 : bf16 to vector<1x18x128xbf16>
    %cst_9 = arith.constant 0.000000e+00 : bf16
    %22 = vector.broadcast %cst_9 : bf16 to vector<18x1x128xbf16>
    %c0_10 = arith.constant 0 : index
    %c0_11 = arith.constant 0 : index
    %c0_12 = arith.constant 0 : index
    %23 = vector.load %arg7[%c0_10, %c0_11, %c0_12] : memref<18x18x128xbf16, #tpu.memory_space<vmem>>, vector<1x18x128xbf16>
    tpu.vector_store %arg7[%c0_10, %c0_11, %c0_12], %21 {strides = array<i32>} : memref<18x18x128xbf16, #tpu.memory_space<vmem>>, vector<1x18x128xbf16>,
    %c17 = arith.constant 17 : index
    %c0_13 = arith.constant 0 : index
    %c0_14 = arith.constant 0 : index
    %24 = vector.load %arg7[%c17, %c0_13, %c0_14] : memref<18x18x128xbf16, #tpu.memory_space<vmem>>, vector<1x18x128xbf16>
    tpu.vector_store %arg7[%c17, %c0_13, %c0_14], %21 {strides = array<i32>} : memref<18x18x128xbf16, #tpu.memory_space<vmem>>, vector<1x18x128xbf16>,
    %c0_15 = arith.constant 0 : index
    %c0_16 = arith.constant 0 : index
    %c0_17 = arith.constant 0 : index
    %25 = vector.load %arg7[%c0_15, %c0_16, %c0_17] : memref<18x18x128xbf16, #tpu.memory_space<vmem>>, vector<18x1x128xbf16>
    tpu.vector_store %arg7[%c0_15, %c0_16, %c0_17], %22 {strides = array<i32>} : memref<18x18x128xbf16, #tpu.memory_space<vmem>>, vector<18x1x128xbf16>,
    %c0_18 = arith.constant 0 : index
    %c17_19 = arith.constant 17 : index
    %c0_20 = arith.constant 0 : index
    %26 = vector.load %arg7[%c0_18, %c17_19, %c0_20] : memref<18x18x128xbf16, #tpu.memory_space<vmem>>, vector<18x1x128xbf16>
    tpu.vector_store %arg7[%c0_18, %c17_19, %c0_20], %22 {strides = array<i32>} : memref<18x18x128xbf16, #tpu.memory_space<vmem>>, vector<18x1x128xbf16>,
    %27 = vector.shape_cast %20 : vector<256x128xbf16> to vector<16x16x128xbf16>
    %c1 = arith.constant 1 : index
    %c1_21 = arith.constant 1 : index
    %c0_22 = arith.constant 0 : index
    %28 = vector.load %arg7[%c1, %c1_21, %c0_22] : memref<18x18x128xbf16, #tpu.memory_space<vmem>>, vector<16x16x128xbf16>
    tpu.vector_store %arg7[%c1, %c1_21, %c0_22], %27 {strides = array<i32>} : memref<18x18x128xbf16, #tpu.memory_space<vmem>>, vector<16x16x128xbf16>,
    %c0_23 = arith.constant 0 : index
    %c0_24 = arith.constant 0 : index
    %c0_25 = arith.constant 0 : index
    %29 = vector.load %arg7[%c0_23, %c0_24, %c0_25] : memref<18x18x128xbf16, #tpu.memory_space<vmem>>, vector<18x18x128xbf16>
    %30 = vector.extract_strided_slice %29 {offsets = [0, 0, 0], sizes = [16, 16, 128], strides = [1, 1, 1]} : vector<18x18x128xbf16> to vector<16x16x128xbf16>
    %31 = vector.extract_strided_slice %29 {offsets = [0, 1, 0], sizes = [16, 16, 128], strides = [1, 1, 1]} : vector<18x18x128xbf16> to vector<16x16x128xbf16>
    %32 = vector.extract_strided_slice %29 {offsets = [0, 2, 0], sizes = [16, 16, 128], strides = [1, 1, 1]} : vector<18x18x128xbf16> to vector<16x16x128xbf16>
    %33 = vector.extract_strided_slice %29 {offsets = [1, 0, 0], sizes = [16, 16, 128], strides = [1, 1, 1]} : vector<18x18x128xbf16> to vector<16x16x128xbf16>
    %34 = vector.extract_strided_slice %29 {offsets = [1, 1, 0], sizes = [16, 16, 128], strides = [1, 1, 1]} : vector<18x18x128xbf16> to vector<16x16x128xbf16>
    %35 = vector.extract_strided_slice %29 {offsets = [1, 2, 0], sizes = [16, 16, 128], strides = [1, 1, 1]} : vector<18x18x128xbf16> to vector<16x16x128xbf16>
    %36 = vector.extract_strided_slice %29 {offsets = [2, 0, 0], sizes = [16, 16, 128], strides = [1, 1, 1]} : vector<18x18x128xbf16> to vector<16x16x128xbf16>
    %37 = vector.extract_strided_slice %29 {offsets = [2, 1, 0], sizes = [16, 16, 128], strides = [1, 1, 1]} : vector<18x18x128xbf16> to vector<16x16x128xbf16>
    %38 = vector.extract_strided_slice %29 {offsets = [2, 2, 0], sizes = [16, 16, 128], strides = [1, 1, 1]} : vector<18x18x128xbf16> to vector<16x16x128xbf16>
    %39 = tpu.concatenate %30, %31, %32, %33, %34, %35, %36, %37, %38 in 2 : vector<16x16x128xbf16>, vector<16x16x128xbf16>, vector<16x16x128xbf16>, vector<16x16x128xbf16>, vector<16x16x128xbf16>, vector<16x16x128xbf16>, vector<16x16x128xbf16>, vector<16x16x128xbf16>, vector<16x16x128xbf16> -> vector<16x16x1152xbf16>
    %40 = vector.shape_cast %39 : vector<16x16x1152xbf16> to vector<256x1152xbf16>
    %c0_26 = arith.constant 0 : index
    %c0_27 = arith.constant 0 : index
    %41 = vector.load %arg3[%c0_26, %c0_27] : memref<1152x128xbf16, #tpu.memory_space<vmem>>, vector<1152x128xbf16>
    %cst_28 = arith.constant dense<0.000000e+00> : vector<256x128xf32>
    %42 = tpu.matmul %40, %41, %cst_28 {dimension_numbers = #tpu.dot_dimension_numbers<[1], [0], [0], [1], [0, 0, 1, 1], [], []>} : vector<256x1152xbf16>, vector<1152x128xbf16>, vector<256x128xf32> -> vector<256x128xf32>
    %43 = vector.extract_strided_slice %1 {offsets = [1, 1, 0], sizes = [16, 16, 128], strides = [1, 1, 1]} : vector<18x18x128xbf16> to vector<16x16x128xbf16>
    %44 = vector.shape_cast %43 : vector<16x16x128xbf16> to vector<256x128xbf16>
    %45 = arith.extf %44 : vector<256x128xbf16> to vector<256x128xf32>
    %c0_29 = arith.constant 0 : index
    %c0_30 = arith.constant 0 : index
    %46 = vector.load %arg5[%c0_29, %c0_30] : memref<1x128xf32, #tpu.memory_space<vmem>>, vector<1x128xf32>
    %47 = vector.broadcast %46 : vector<1x128xf32> to vector<256x128xf32>
    %48 = arith.addf %42, %47 : vector<256x128xf32>
    %49 = arith.addf %48, %45 : vector<256x128xf32>
    %cst_31 = arith.constant 0.000000e+00 : f32
    %50 = vector.broadcast %cst_31 : f32 to vector<256x128xf32>
    %51 = arith.maximumf %49, %50 : vector<256x128xf32>
    %52 = vector.shape_cast %51 : vector<256x128xf32> to vector<16x16x128xf32>
    %c0_32 = arith.constant 0 : index
    %c0_33 = arith.constant 0 : index
    %c0_34 = arith.constant 0 : index
    %c0_35 = arith.constant 0 : index
    %53 = vector.load %arg6[%c0_32, %c0_33, %c0_34, %c0_35] : memref<1x16x16x128xf32, #tpu.memory_space<vmem>>, vector<1x16x16x128xf32>
    %54 = vector.shape_cast %53 : vector<1x16x16x128xf32> to vector<16x16x128xf32>
    %55 = vector.shape_cast %52 : vector<16x16x128xf32> to vector<1x16x16x128xf32>
    tpu.vector_store %arg6[%c0_32, %c0_33, %c0_34, %c0_35], %55 {strides = array<i32>} : memref<1x16x16x128xf32, #tpu.memory_space<vmem>>, vector<1x16x16x128xf32>,
    return
  }
  func.func @transform_0(%arg0: i32) -> (i32, i32, i32, i32) {
    %c0_i32 = arith.constant 0 : i32
    %c0_i32_0 = arith.constant 0 : i32
    %c0_i32_1 = arith.constant 0 : i32
    %c0_i32_2 = arith.constant 0 : i32
    return %arg0, %c0_i32, %c0_i32_0, %c0_i32_1 : i32, i32, i32, i32
  }
  func.func @transform_1(%arg0: i32) -> (i32, i32) {
    %c0_i32 = arith.constant 0 : i32
    %c0_i32_0 = arith.constant 0 : i32
    %c0_i32_1 = arith.constant 0 : i32
    return %c0_i32, %c0_i32_0 : i32, i32
  }
  func.func @transform_2(%arg0: i32) -> (i32, i32) {
    %c0_i32 = arith.constant 0 : i32
    %c0_i32_0 = arith.constant 0 : i32
    %c0_i32_1 = arith.constant 0 : i32
    return %c0_i32, %c0_i32_0 : i32, i32
  }
  func.func @transform_3(%arg0: i32) -> (i32, i32) {
    %c0_i32 = arith.constant 0 : i32
    %c0_i32_0 = arith.constant 0 : i32
    %c0_i32_1 = arith.constant 0 : i32
    return %c0_i32, %c0_i32_0 : i32, i32
  }
  func.func @transform_4(%arg0: i32) -> (i32, i32) {
    %c0_i32 = arith.constant 0 : i32
    %c0_i32_0 = arith.constant 0 : i32
    %c0_i32_1 = arith.constant 0 : i32
    return %c0_i32, %c0_i32_0 : i32, i32
  }
  func.func @transform_5(%arg0: i32) -> (i32, i32, i32, i32) {
    %c0_i32 = arith.constant 0 : i32
    %c0_i32_0 = arith.constant 0 : i32
    %c0_i32_1 = arith.constant 0 : i32
    %c0_i32_2 = arith.constant 0 : i32
    return %arg0, %c0_i32, %c0_i32_0, %c0_i32_1 : i32, i32, i32, i32
  }
}

</mosaic_0001>

<llo_original>
// kernel: residual_block_pallas.1
$region0: #{residual_block_pallas.1}
  #allocation0 [shape = 'u32[]', space=smem, size = 0x4, offset = 0x4, fixed_abs, tag = 'smem constant byte address 0x4 - core index']
  #allocation1 [shape = 'u32[72,128]{1,0:T(1,128)}', space=vmem, size = 0x9000, scoped, tag = 'internal scratch']
  #allocation2 [shape = 'bf16[18,18,128]{2,1,0:T(8,128)(2,1)}', space=vmem, size = 0x1b000, scoped, tag = 'scratch operand']
  %s0 = inlined_call_operand.vmem [shape: bf16[2,18,18,128], index: 0, kind: input, shape index: {}]
  %s1 = inlined_call_operand.vmem [shape: bf16[1152,128], index: 1, kind: input, shape index: {}]
  %s2 = inlined_call_operand.vmem [shape: bf16[1152,128], index: 2, kind: input, shape index: {}]
  %s3 = inlined_call_operand.vmem [shape: f32[1,128], index: 3, kind: input, shape index: {}]
  %s4 = inlined_call_operand.vmem [shape: f32[1,128], index: 4, kind: input, shape index: {}]
  %s5 = inlined_call_operand.vmem [shape: f32[2,16,16,128], index: 5, kind: output, shape index: {}]
  %s6 = sld [smem:[#allocation0]]
  $region53: #{residual_block_pallas.1} parent=0
    _
  %s8 = ssub.s32 1, %s6
  %s9 = scalar_select 0, %s8, %s6
  loop: start=0, step=1, limit=4
  $region2: #{residual_block_pallas.1} parent=0 // loop_pre_header
    _
  $region3: #{residual_block_pallas.1} parent=0 // loop_header
    %s11 = sphi 0, %s15
    %p12 = scmp.ge.s32.totalorder %s11, 4
    %s21 = sphi 0, %s23
    %s24 = sphi 0, %s21
    %s25 = sphi 0, %s24
    %s41 = sphi 0, %s25
    %s45 = sphi 0, %s45
    %s47 = sphi 0, %s45
    %s48 = sphi 0, %s47
    %s62 = sphi 0, %s48
    %s66 = sphi 0, %s66
    %s68 = sphi 0, %s66
    %s69 = sphi 0, %s68
    %s83 = sphi 0, %s69
    %s87 = sphi 0, %s87
    %s89 = sphi 0, %s87
    %s90 = sphi 0, %s89
    %s104 = sphi 0, %s90
    %s108 = sphi 0, %s108
    %s110 = sphi 0, %s108
    %s111 = sphi 0, %s110
    %s125 = sphi 0, %s111
    %s131 = sphi 0, %s133
    %s134 = sphi 0, %s131
    %s135 = sphi 0, %s134
    %s151 = sphi 0, %s135
  $region4: #{residual_block_pallas.1} parent=0 // loop_header_branch
    %14 = sbr.rel (%p12) target = $region8
  $region5: #{residual_block_pallas.1} parent=0 // loop_body
    %s16 = ssub.s32 %s11, 1
    %s17 = ssub.s32 %s11, 2
    %s18 = sadd.s32 %s11, 1
    %s19 = ssub.s32 %s11, %s18
    %p20 = scmp.eq.s32.totalorder %s19, 0
    %s22 = sadd.s32 %s21, 1
    %s23 = scalar_select %p20, %s21, %s22
    %p26 = pneg %p20
    %p27 = scmp.eq.s32.totalorder %s11, 1
    %p28 = por %p26, %p27
    %p29 = scmp.ne.s32.totalorder %s21, %s24
    %p30 = scmp.eq.s32.totalorder %s11, 0
    %p31 = por %p29, %p30
    %p32 = scmp.ne.s32.totalorder %s21, %s24
    %p33 = scmp.eq.s32.totalorder %s16, 1
    %p34 = por %p32, %p33
    %p35 = scmp.ne.s32.totalorder %s24, %s25
    %p36 = scmp.eq.s32.totalorder %s16, 0
    %p37 = por %p35, %p36
    %p38 = scmp.ne.s32.totalorder %s24, %s25
    %p39 = scmp.eq.s32.totalorder %s17, 1
    %p40 = por %p38, %p39
    %p42 = scmp.ne.s32.totalorder %s25, %s41
    %p43 = scmp.eq.s32.totalorder %s17, 0
    %p44 = por %p42, %p43
    %s46 = sadd.s32 %s45, 1
    %p49 = scmp.eq.s32.totalorder %s11, 1
    %p50 = scmp.ne.s32.totalorder %s45, %s47
    %p51 = scmp.eq.s32.totalorder %s11, 0
    %p52 = por %p50, %p51
    %p53 = scmp.ne.s32.totalorder %s45, %s47
    %p54 = scmp.eq.s32.totalorder %s16, 1
    %p55 = por %p53, %p54
    %p56 = scmp.ne.s32.totalorder %s47, %s48
    %p57 = scmp.eq.s32.totalorder %s16, 0
    %p58 = por %p56, %p57
    %p59 = scmp.ne.s32.totalorder %s47, %s48
    %p60 = scmp.eq.s32.totalorder %s17, 1
    %p61 = por %p59, %p60
    %p63 = scmp.ne.s32.totalorder %s48, %s62
    %p64 = scmp.eq.s32.totalorder %s17, 0
    %p65 = por %p63, %p64
    %s67 = sadd.s32 %s66, 1
    %p70 = scmp.eq.s32.totalorder %s11, 1
    %p71 = scmp.ne.s32.totalorder %s66, %s68
    %p72 = scmp.eq.s32.totalorder %s11, 0
    %p73 = por %p71, %p72
    %p74 = scmp.ne.s32.totalorder %s66, %s68
    %p75 = scmp.eq.s32.totalorder %s16, 1
    %p76 = por %p74, %p75
    %p77 = scmp.ne.s32.totalorder %s68, %s69
    %p78 = scmp.eq.s32.totalorder %s16, 0
    %p79 = por %p77, %p78
    %p80 = scmp.ne.s32.totalorder %s68, %s69
    %p81 = scmp.eq.s32.totalorder %s17, 1
    %p82 = por %p80, %p81
    %p84 = scmp.ne.s32.totalorder %s69, %s83
    %p85 = scmp.eq.s32.totalorder %s17, 0
    %p86 = por %p84, %p85
    %s88 = sadd.s32 %s87, 1
    %p91 = scmp.eq.s32.totalorder %s11, 1
    %p92 = scmp.ne.s32.totalorder %s87, %s89
    %p93 = scmp.eq.s32.totalorder %s11, 0
    %p94 = por %p92, %p93
    %p95 = scmp.ne.s32.totalorder %s87, %s89
    %p96 = scmp.eq.s32.totalorder %s16, 1
    %p97 = por %p95, %p96
    %p98 = scmp.ne.s32.totalorder %s89, %s90
    %p99 = scmp.eq.s32.totalorder %s16, 0
    %p100 = por %p98, %p99
    %p101 = scmp.ne.s32.totalorder %s89, %s90
    %p102 = scmp.eq.s32.totalorder %s17, 1
    %p103 = por %p101, %p102
    %p105 = scmp.ne.s32.totalorder %s90, %s104
    %p106 = scmp.eq.s32.totalorder %s17, 0
    %p107 = por %p105, %p106
    %s109 = sadd.s32 %s108, 1
    %p112 = scmp.eq.s32.totalorder %s11, 1
    %p113 = scmp.ne.s32.totalorder %s108, %s110
    %p114 = scmp.eq.s32.totalorder %s11, 0
    %p115 = por %p113, %p114
    %p116 = scmp.ne.s32.totalorder %s108, %s110
    %p117 = scmp.eq.s32.totalorder %s16, 1
    %p118 = por %p116, %p117
    %p119 = scmp.ne.s32.totalorder %s110, %s111
    %p120 = scmp.eq.s32.totalorder %s16, 0
    %p121 = por %p119, %p120
    %p122 = scmp.ne.s32.totalorder %s110, %s111
    %p123 = scmp.eq.s32.totalorder %s17, 1
    %p124 = por %p122, %p123
    %p126 = scmp.ne.s32.totalorder %s111, %s125
    %p127 = scmp.eq.s32.totalorder %s17, 0
    %p128 = por %p126, %p127
    %s129 = ssub.s32 %s11, %s18
    %p130 = scmp.eq.s32.totalorder %s129, 0
    %s132 = sadd.s32 %s131, 1
    %s133 = scalar_select %p130, %s131, %s132
    %p136 = pneg %p130
    %p137 = scmp.eq.s32.totalorder %s11, 1
    %p138 = por %p136, %p137
    %p139 = scmp.ne.s32.totalorder %s131, %s134
    %p140 = scmp.eq.s32.totalorder %s11, 0
    %p141 = por %p139, %p140
    %p142 = scmp.ne.s32.totalorder %s131, %s134
    %p143 = scmp.eq.s32.totalorder %s16, 1
    %p144 = por %p142, %p143
    %p145 = scmp.ne.s32.totalorder %s134, %s135
    %p146 = scmp.eq.s32.totalorder %s16, 0
    %p147 = por %p145, %p146
    %p148 = scmp.ne.s32.totalorder %s134, %s135
    %p149 = scmp.eq.s32.totalorder %s17, 1
    %p150 = por %p148, %p149
    %p152 = scmp.ne.s32.totalorder %s135, %s151
    %p153 = scmp.eq.s32.totalorder %s17, 0
    %p154 = por %p152, %p153
    %p155 = scmp.le.s32.totalorder 1, %s11
    %p156 = scmp.lt.s32.totalorder %s11, 3
    %p157 = pnand %p155, %p156
    %p158 = pneg %p157
    // Predicated region
    $region9: #{residual_block_pallas.1} parent=5 // pred_check
      _
    $region10: #{residual_block_pallas.1} parent=5 // pred_check_branch
      %160 = sbr.rel (%p157) target = $region12
    $region11: #{residual_block_pallas.1} parent=5 // pred_region
      %s161 = ssub.s32 %s11, 1
      // Predicated region
      $region13: #{residual_block_pallas.1} parent=11 // pred_check
        %p162 = pneg %p58
      $region14: #{residual_block_pallas.1} parent=11 // pred_check_branch
        %164 = sbr.rel (%p162) target = $region16
      $region15: #{residual_block_pallas.1} parent=11 // pred_region
        _
      $region16: #{residual_block_pallas.1} parent=11 // pred_fallthru
        _
      // Predicated region
      $region17: #{residual_block_pallas.1} parent=11 // pred_check
        %p165 = pneg %p79
      $region18: #{residual_block_pallas.1} parent=11 // pred_check_branch
        %167 = sbr.rel (%p165) target = $region20
      $region19: #{residual_block_pallas.1} parent=11 // pred_region
        _
      $region20: #{residual_block_pallas.1} parent=11 // pred_fallthru
        _
      // Predicated region
      $region21: #{residual_block_pallas.1} parent=11 // pred_check
        %p168 = pneg %p100
      $region22: #{residual_block_pallas.1} parent=11 // pred_check_branch
        %170 = sbr.rel (%p168) target = $region24
      $region23: #{residual_block_pallas.1} parent=11 // pred_region
        _
      $region24: #{residual_block_pallas.1} parent=11 // pred_fallthru
        _
      // Predicated region
      $region25: #{residual_block_pallas.1} parent=11 // pred_check
        %p171 = pneg %p121
      $region26: #{residual_block_pallas.1} parent=11 // pred_check_branch
        %173 = sbr.rel (%p171) target = $region28
      $region27: #{residual_block_pallas.1} parent=11 // pred_region
        _
      $region28: #{residual_block_pallas.1} parent=11 // pred_fallthru
        _
    $region12: #{residual_block_pallas.1} parent=5 // pred_fallthru
      _
    %p174 = scmp.lt.s32.totalorder %s11, 2
    // Predicated region
    $region29: #{residual_block_pallas.1} parent=5 // pred_check
      %p175 = pneg %p174
    $region30: #{residual_block_pallas.1} parent=5 // pred_check_branch
      %177 = sbr.rel (%p175) target = $region32
    $region31: #{residual_block_pallas.1} parent=5 // pred_region
      // Predicated region
      $region33: #{residual_block_pallas.1} parent=31 // pred_check
        %p178 = pneg %p31
      $region34: #{residual_block_pallas.1} parent=31 // pred_check_branch
        %180 = sbr.rel (%p178) target = $region36
      $region35: #{residual_block_pallas.1} parent=31 // pred_region
        %p181 = scmp.lt.s32.totalorder %s11, 1
        %s182 = scalar_select %p181, %s11, 1
        %s183 = smul.addr %s182, 54
        %s184 = smul.addr %s183, 4
        %s185 = scalar_lea.vmem %s0, %s184
      $region36: #{residual_block_pallas.1} parent=31 // pred_fallthru
        _
    $region32: #{residual_block_pallas.1} parent=5 // pred_fallthru
      _
    %p186 = scmp.le.s32.totalorder 1, %s11
    %p187 = scmp.lt.s32.totalorder %s11, 3
    %p188 = pnand %p186, %p187
    %p189 = pneg %p188
    // Predicated region
    $region37: #{residual_block_pallas.1} parent=5 // pred_check
      _
    $region38: #{residual_block_pallas.1} parent=5 // pred_check_branch
      %191 = sbr.rel (%p188) target = $region40
    $region39: #{residual_block_pallas.1} parent=5 // pred_region
      %s192 = ssub.s32 %s11, 1
      %p193 = scmp.lt.s32.totalorder %s16, 1
      %s194 = scalar_select %p193, %s16, 1
      %s195 = smul.addr %s194, 54
      %s196 = smul.addr %s195, 4
      %s197 = scalar_lea.vmem %s0, %s196
      %p198 = pneg %p37
      %p199 = pneg %p34
      %p200 = pneg %p58
      %p201 = pneg %p55
      %p202 = pneg %p79
      %p203 = pneg %p76
      %p204 = pneg %p100
      %p205 = pneg %p97
      %p206 = pneg %p121
      %p207 = pneg %p118
      %p208 = pneg %p147
      %p209 = pneg %p144
      %p210 = scmp.lt.s32.totalorder %s16, 1
      %s211 = scalar_select %p210, %s16, 1
      %s212 = smul.addr %s211, 32
      %s213 = smul.addr %s212, 8
      %s214 = scalar_lea.vmem %s5, %s213
      %p215 = scmp.lt.s32.totalorder %s16, 1
      %s216 = scalar_select %p215, %s16, 1
      %s217 = smul.addr %s216, 54
      %s218 = smul.addr %s217, 4
      %s219 = scalar_lea.vmem %s0, %s218
      %p220 = scmp.lt.s32.totalorder %s16, 1
      %s221 = scalar_select %p220, %s16, 1
      %s222 = smul.addr %s221, 32
      %s223 = smul.addr %s222, 8
      %s224 = scalar_lea.vmem %s5, %s223
      %v226 = vld [vmem:[%s219] sm:$0xf]
      %v227 = vld [vmem:[%s219 + $0x4] sm:$0xf]
      %v228 = vld [vmem:[%s219 + $0x8] sm:$0x1]
      %v229 = vld [vmem:[%s219 + $0xc] sm:$0xf]
      %v230 = vld [vmem:[%s219 + $0x10] sm:$0xf]
      %v231 = vld [vmem:[%s219 + $0x14] sm:$0x1]
      %v232 = vld [vmem:[%s219 + $0x18] sm:$0xf]
      %v233 = vld [vmem:[%s219 + $0x1c] sm:$0xf]
      %v234 = vld [vmem:[%s219 + $0x20] sm:$0x1]
      %v235 = vld [vmem:[%s219 + $0x24] sm:$0xf]
      %v236 = vld [vmem:[%s219 + $0x28] sm:$0xf]
      %v237 = vld [vmem:[%s219 + $0x2c] sm:$0x1]
      %v238 = vld [vmem:[%s219 + $0x30] sm:$0xf]
      %v239 = vld [vmem:[%s219 + $0x34] sm:$0xf]
      %v240 = vld [vmem:[%s219 + $0x38] sm:$0x1]
      %v241 = vld [vmem:[%s219 + $0x3c] sm:$0xf]
      %v242 = vld [vmem:[%s219 + $0x40] sm:$0xf]
      %v243 = vld [vmem:[%s219 + $0x44] sm:$0x1]
      %v244 = vld [vmem:[%s219 + $0x48] sm:$0xf]
      %v245 = vld [vmem:[%s219 + $0x4c] sm:$0xf]
      %v246 = vld [vmem:[%s219 + $0x50] sm:$0x1]
      %v247 = vld [vmem:[%s219 + $0x54] sm:$0xf]
      %v248 = vld [vmem:[%s219 + $0x58] sm:$0xf]
      %v249 = vld [vmem:[%s219 + $0x5c] sm:$0x1]
      %v250 = vld [vmem:[%s219 + $0x60] sm:$0xf]
      %v251 = vld [vmem:[%s219 + $0x64] sm:$0xf]
      %v252 = vld [vmem:[%s219 + $0x68] sm:$0x1]
      %v253 = vld [vmem:[%s219 + $0x6c] sm:$0xf]
      %v254 = vld [vmem:[%s219 + $0x70] sm:$0xf]
      %v255 = vld [vmem:[%s219 + $0x74] sm:$0x1]
      %v256 = vld [vmem:[%s219 + $0x78] sm:$0xf]
      %v257 = vld [vmem:[%s219 + $0x7c] sm:$0xf]
      %v258 = vld [vmem:[%s219 + $0x80] sm:$0x1]
      %v259 = vld [vmem:[%s219 + $0x84] sm:$0xf]
      %v260 = vld [vmem:[%s219 + $0x88] sm:$0xf]
      %v261 = vld [vmem:[%s219 + $0x8c] sm:$0x1]
      %v262 = vld [vmem:[%s219 + $0x90] sm:$0xf]
      %v263 = vld [vmem:[%s219 + $0x94] sm:$0xf]
      %v264 = vld [vmem:[%s219 + $0x98] sm:$0x1]
      %v265 = vld [vmem:[%s219 + $0x9c] sm:$0xf]
      %v266 = vld [vmem:[%s219 + $0xa0] sm:$0xf]
      %v267 = vld [vmem:[%s219 + $0xa4] sm:$0x1]
      %v268 = vld [vmem:[%s219 + $0xa8] sm:$0xf]
      %v269 = vld [vmem:[%s219 + $0xac] sm:$0xf]
      %v270 = vld [vmem:[%s219 + $0xb0] sm:$0x1]
      %v271 = vld [vmem:[%s219 + $0xb4] sm:$0xf]
      %v272 = vld [vmem:[%s219 + $0xb8] sm:$0xf]
      %v273 = vld [vmem:[%s219 + $0xbc] sm:$0x1]
      %v274 = vld [vmem:[%s219 + $0xc0] sm:$0xf]
      %v275 = vld [vmem:[%s219 + $0xc4] sm:$0xf]
      %v276 = vld [vmem:[%s219 + $0xc8] sm:$0x1]
      %v277 = vld [vmem:[%s219 + $0xcc] sm:$0xf]
      %v278 = vld [vmem:[%s219 + $0xd0] sm:$0xf]
      %v279 = vld [vmem:[%s219 + $0xd4] sm:$0x1]
      %v312 = vunpack.c.l.b16 %v226
      %v313 = vunpack.c.l.b16 %v227
      %v314 = vunpack.c.l.b16 %v229
      %v315 = vunpack.c.l.b16 %v230
      %v316 = vunpack.c.l.b16 %v232
      %v317 = vunpack.c.l.b16 %v233
      %v318 = vunpack.c.l.b16 %v235
      %v319 = vunpack.c.l.b16 %v236
      %v320 = vunpack.c.l.b16 %v238
      %v321 = vunpack.c.l.b16 %v239
      %v322 = vunpack.c.l.b16 %v241
      %v323 = vunpack.c.l.b16 %v242
      %v324 = vunpack.c.l.b16 %v244
      %v325 = vunpack.c.l.b16 %v245
      %v326 = vunpack.c.l.b16 %v247
      %v327 = vunpack.c.l.b16 %v248
      %v328 = vunpack.c.l.b16 %v250
      %v329 = vunpack.c.l.b16 %v251
      %v330 = vunpack.c.l.b16 %v253
      %v331 = vunpack.c.l.b16 %v254
      %v332 = vunpack.c.l.b16 %v256
      %v333 = vunpack.c.l.b16 %v257
      %v334 = vunpack.c.l.b16 %v259
      %v335 = vunpack.c.l.b16 %v260
      %v336 = vunpack.c.l.b16 %v262
      %v337 = vunpack.c.l.b16 %v263
      %v338 = vunpack.c.l.b16 %v265
      %v339 = vunpack.c.l.b16 %v266
      %v340 = vunpack.c.l.b16 %v268
      %v341 = vunpack.c.l.b16 %v269
      %v342 = vunpack.c.l.b16 %v271
      %v343 = vunpack.c.l.b16 %v272
      %v344 = vpack.c.b16 %v313, %v312
      %v345 = vpack.c.b16 %v315, %v314
      %v346 = vpack.c.b16 %v317, %v316
      %v347 = vpack.c.b16 %v319, %v318
      %v348 = vpack.c.b16 %v321, %v320
      %v349 = vpack.c.b16 %v323, %v322
      %v350 = vpack.c.b16 %v325, %v324
      %v351 = vpack.c.b16 %v327, %v326
      %v352 = vpack.c.b16 %v329, %v328
      %v353 = vpack.c.b16 %v331, %v330
      %v354 = vpack.c.b16 %v333, %v332
      %v355 = vpack.c.b16 %v335, %v334
      %v356 = vpack.c.b16 %v337, %v336
      %v357 = vpack.c.b16 %v339, %v338
      %v358 = vpack.c.b16 %v341, %v340
      %v359 = vpack.c.b16 %v343, %v342
      %v392 = vunpack.c.l.b16 %v228
      %v393 = vunpack.c.l.b16 %v231
      %v394 = vunpack.c.l.b16 %v234
      %v395 = vunpack.c.l.b16 %v237
      %v396 = vunpack.c.l.b16 %v240
      %v397 = vunpack.c.l.b16 %v243
      %v398 = vunpack.c.l.b16 %v246
      %v399 = vunpack.c.l.b16 %v249
      %v400 = vunpack.c.l.b16 %v252
      %v401 = vunpack.c.l.b16 %v255
      %v402 = vunpack.c.l.b16 %v258
      %v403 = vunpack.c.l.b16 %v261
      %v404 = vunpack.c.l.b16 %v264
      %v405 = vunpack.c.l.b16 %v267
      %v406 = vunpack.c.l.b16 %v270
      %v407 = vunpack.c.l.b16 %v273
      %v408 = vpack.c.b16 %v392, %v392
      %v409 = vpack.c.b16 %v393, %v393
      %v410 = vpack.c.b16 %v394, %v394
      %v411 = vpack.c.b16 %v395, %v395
      %v412 = vpack.c.b16 %v396, %v396
      %v413 = vpack.c.b16 %v397, %v397
      %v414 = vpack.c.b16 %v398, %v398
      %v415 = vpack.c.b16 %v399, %v399
      %v416 = vpack.c.b16 %v400, %v400
      %v417 = vpack.c.b16 %v401, %v401
      %v418 = vpack.c.b16 %v402, %v402
      %v419 = vpack.c.b16 %v403, %v403
      %v420 = vpack.c.b16 %v404, %v404
      %v421 = vpack.c.b16 %v405, %v405
      %v422 = vpack.c.b16 %v406, %v406
      %v423 = vpack.c.b16 %v407, %v407
      %vm424 = vsmask.f32 7424
      %v426 = vshrl.u32 %v344, 16
      %v428 = vshll.u32 %v344, 16
      %v430 = vrot.slane %v428, 1
      %v431 = vor.u32 %v426, %v430
      %v433 = vshll.u32 %v408, 16
      %v435 = vrot.slane %v433, 1
      %v436 = vsel %vm424, %v431, %v435
      %v438 = vshrl.u32 %v345, 16
      %v440 = vshll.u32 %v345, 16
      %v442 = vrot.slane %v440, 1
      %v443 = vor.u32 %v438, %v442
      %v445 = vshll.u32 %v409, 16
      %v447 = vrot.slane %v445, 1
      %v448 = vsel %vm424, %v443, %v447
      %v450 = vshrl.u32 %v346, 16
      %v452 = vshll.u32 %v346, 16
      %v454 = vrot.slane %v452, 1
      %v455 = vor.u32 %v450, %v454
      %v457 = vshll.u32 %v410, 16
      %v459 = vrot.slane %v457, 1
      %v460 = vsel %vm424, %v455, %v459
      %v462 = vshrl.u32 %v347, 16
      %v464 = vshll.u32 %v347, 16
      %v466 = vrot.slane %v464, 1
      %v467 = vor.u32 %v462, %v466
      %v469 = vshll.u32 %v411, 16
      %v471 = vrot.slane %v469, 1
      %v472 = vsel %vm424, %v467, %v471
      %v474 = vshrl.u32 %v348, 16
      %v476 = vshll.u32 %v348, 16
      %v478 = vrot.slane %v476, 1
      %v479 = vor.u32 %v474, %v478
      %v481 = vshll.u32 %v412, 16
      %v483 = vrot.slane %v481, 1
      %v484 = vsel %vm424, %v479, %v483
      %v486 = vshrl.u32 %v349, 16
      %v488 = vshll.u32 %v349, 16
      %v490 = vrot.slane %v488, 1
      %v491 = vor.u32 %v486, %v490
      %v493 = vshll.u32 %v413, 16
      %v495 = vrot.slane %v493, 1
      %v496 = vsel %vm424, %v491, %v495
      %v498 = vshrl.u32 %v350, 16
      %v500 = vshll.u32 %v350, 16
      %v502 = vrot.slane %v500, 1
      %v503 = vor.u32 %v498, %v502
      %v505 = vshll.u32 %v414, 16
      %v507 = vrot.slane %v505, 1
      %v508 = vsel %vm424, %v503, %v507
      %v510 = vshrl.u32 %v351, 16
      %v512 = vshll.u32 %v351, 16
      %v514 = vrot.slane %v512, 1
      %v515 = vor.u32 %v510, %v514
      %v517 = vshll.u32 %v415, 16
      %v519 = vrot.slane %v517, 1
      %v520 = vsel %vm424, %v515, %v519
      %v522 = vshrl.u32 %v352, 16
      %v524 = vshll.u32 %v352, 16
      %v526 = vrot.slane %v524, 1
      %v527 = vor.u32 %v522, %v526
      %v529 = vshll.u32 %v416, 16
      %v531 = vrot.slane %v529, 1
      %v532 = vsel %vm424, %v527, %v531
      %v534 = vshrl.u32 %v353, 16
      %v536 = vshll.u32 %v353, 16
      %v538 = vrot.slane %v536, 1
      %v539 = vor.u32 %v534, %v538
      %v541 = vshll.u32 %v417, 16
      %v543 = vrot.slane %v541, 1
      %v544 = vsel %vm424, %v539, %v543
      %v546 = vshrl.u32 %v354, 16
      %v548 = vshll.u32 %v354, 16
      %v550 = vrot.slane %v548, 1
      %v551 = vor.u32 %v546, %v550
      %v553 = vshll.u32 %v418, 16
      %v555 = vrot.slane %v553, 1
      %v556 = vsel %vm424, %v551, %v555
      %v558 = vshrl.u32 %v355, 16
      %v560 = vshll.u32 %v355, 16
      %v562 = vrot.slane %v560, 1
      %v563 = vor.u32 %v558, %v562
      %v565 = vshll.u32 %v419, 16
      %v567 = vrot.slane %v565, 1
      %v568 = vsel %vm424, %v563, %v567
      %v570 = vshrl.u32 %v356, 16
      %v572 = vshll.u32 %v356, 16
      %v574 = vrot.slane %v572, 1
      %v575 = vor.u32 %v570, %v574
      %v577 = vshll.u32 %v420, 16
      %v579 = vrot.slane %v577, 1
      %v580 = vsel %vm424, %v575, %v579
      %v582 = vshrl.u32 %v357, 16
      %v584 = vshll.u32 %v357, 16
      %v586 = vrot.slane %v584, 1
      %v587 = vor.u32 %v582, %v586
      %v589 = vshll.u32 %v421, 16
      %v591 = vrot.slane %v589, 1
      %v592 = vsel %vm424, %v587, %v591
      %v594 = vshrl.u32 %v358, 16
      %v596 = vshll.u32 %v358, 16
      %v598 = vrot.slane %v596, 1
      %v599 = vor.u32 %v594, %v598
      %v601 = vshll.u32 %v422, 16
      %v603 = vrot.slane %v601, 1
      %v604 = vsel %vm424, %v599, %v603
      %v606 = vshrl.u32 %v359, 16
      %v608 = vshll.u32 %v359, 16
      %v610 = vrot.slane %v608, 1
      %v611 = vor.u32 %v606, %v610
      %v613 = vshll.u32 %v423, 16
      %v615 = vrot.slane %v613, 1
      %v616 = vsel %vm424, %v611, %v615
      %vm633 = vcmask 1046528
      %v634 = vrot.slane %v344, 1
      %v635 = vrot.slane %v408, 1
      %v636 = vsel %vm633, %v634, %v635
      %v637 = vrot.slane %v345, 1
      %v638 = vrot.slane %v409, 1
      %v639 = vsel %vm633, %v637, %v638
      %v640 = vrot.slane %v346, 1
      %v641 = vrot.slane %v410, 1
      %v642 = vsel %vm633, %v640, %v641
      %v643 = vrot.slane %v347, 1
      %v644 = vrot.slane %v411, 1
      %v645 = vsel %vm633, %v643, %v644
      %v646 = vrot.slane %v348, 1
      %v647 = vrot.slane %v412, 1
      %v648 = vsel %vm633, %v646, %v647
      %v649 = vrot.slane %v349, 1
      %v650 = vrot.slane %v413, 1
      %v651 = vsel %vm633, %v649, %v650
      %v652 = vrot.slane %v350, 1
      %v653 = vrot.slane %v414, 1
      %v654 = vsel %vm633, %v652, %v653
      %v655 = vrot.slane %v351, 1
      %v656 = vrot.slane %v415, 1
      %v657 = vsel %vm633, %v655, %v656
      %v658 = vrot.slane %v352, 1
      %v659 = vrot.slane %v416, 1
      %v660 = vsel %vm633, %v658, %v659
      %v661 = vrot.slane %v353, 1
      %v662 = vrot.slane %v417, 1
      %v663 = vsel %vm633, %v661, %v662
      %v664 = vrot.slane %v354, 1
      %v665 = vrot.slane %v418, 1
      %v666 = vsel %vm633, %v664, %v665
      %v667 = vrot.slane %v355, 1
      %v668 = vrot.slane %v419, 1
      %v669 = vsel %vm633, %v667, %v668
      %v670 = vrot.slane %v356, 1
      %v671 = vrot.slane %v420, 1
      %v672 = vsel %vm633, %v670, %v671
      %v673 = vrot.slane %v357, 1
      %v674 = vrot.slane %v421, 1
      %v675 = vsel %vm633, %v673, %v674
      %v676 = vrot.slane %v358, 1
      %v677 = vrot.slane %v422, 1
      %v678 = vsel %vm633, %v676, %v677
      %v679 = vrot.slane %v359, 1
      %v680 = vrot.slane %v423, 1
      %v681 = vsel %vm633, %v679, %v680
      %v700 = vunpack.c.l.b16 %v274
      %v701 = vunpack.c.l.b16 %v275
      %v702 = vpack.c.b16 %v701, %v700
      %v705 = vunpack.c.l.b16 %v276
      %v706 = vpack.c.b16 %v705, %v705
      %v708 = vshrl.u32 %v702, 16
      %v710 = vshll.u32 %v702, 16
      %v712 = vrot.slane %v710, 1
      %v713 = vor.u32 %v708, %v712
      %v715 = vshll.u32 %v706, 16
      %v717 = vrot.slane %v715, 1
      %v718 = vsel %vm424, %v713, %v717
      %v720 = vrot.slane %v702, 1
      %v721 = vrot.slane %v706, 1
      %v722 = vsel %vm633, %v720, %v721
      %v726 = vunpack.c.l.b16 %v277
      %v727 = vunpack.c.l.b16 %v278
      %v728 = vpack.c.b16 %v727, %v726
      %v731 = vunpack.c.l.b16 %v279
      %v732 = vpack.c.b16 %v731, %v731
      %v734 = vshrl.u32 %v728, 16
      %v736 = vshll.u32 %v728, 16
      %v738 = vrot.slane %v736, 1
      %v739 = vor.u32 %v734, %v738
      %v741 = vshll.u32 %v732, 16
      %v743 = vrot.slane %v741, 1
      %v744 = vsel %vm424, %v739, %v743
      %v746 = vrot.slane %v728, 1
      %v747 = vrot.slane %v732, 1
      %v748 = vsel %vm633, %v746, %v747
      %v750 = vld [vmem:[%s1] sm:$0xf]
      %v751 = vld [vmem:[%s1 + $0x4] sm:$0xf]
      %v752 = vld [vmem:[%s1 + $0x8] sm:$0xf]
      %v753 = vld [vmem:[%s1 + $0xc] sm:$0xf]
      %v754 = vld [vmem:[%s1 + $0x10] sm:$0xf]
      %v755 = vld [vmem:[%s1 + $0x14] sm:$0xf]
      %v756 = vld [vmem:[%s1 + $0x18] sm:$0xf]
      %v757 = vld [vmem:[%s1 + $0x1c] sm:$0xf]
      %v758 = vld [vmem:[%s1 + $0x20] sm:$0xf]
      %v759 = vld [vmem:[%s1 + $0x24] sm:$0xf]
      %v760 = vld [vmem:[%s1 + $0x28] sm:$0xf]
      %v761 = vld [vmem:[%s1 + $0x2c] sm:$0xf]
      %v762 = vld [vmem:[%s1 + $0x30] sm:$0xf]
      %v763 = vld [vmem:[%s1 + $0x34] sm:$0xf]
      %v764 = vld [vmem:[%s1 + $0x38] sm:$0xf]
      %v765 = vld [vmem:[%s1 + $0x3c] sm:$0xf]
      %v766 = vld [vmem:[%s1 + $0x40] sm:$0xf]
      %v767 = vld [vmem:[%s1 + $0x44] sm:$0xf]
      %v768 = vld [vmem:[%s1 + $0x48] sm:$0xf]
      %v769 = vld [vmem:[%s1 + $0x4c] sm:$0xf]
      %v770 = vld [vmem:[%s1 + $0x50] sm:$0xf]
      %v771 = vld [vmem:[%s1 + $0x54] sm:$0xf]
      %v772 = vld [vmem:[%s1 + $0x58] sm:$0xf]
      %v773 = vld [vmem:[%s1 + $0x5c] sm:$0xf]
      %v774 = vld [vmem:[%s1 + $0x60] sm:$0xf]
      %v775 = vld [vmem:[%s1 + $0x64] sm:$0xf]
      %v776 = vld [vmem:[%s1 + $0x68] sm:$0xf]
      %v777 = vld [vmem:[%s1 + $0x6c] sm:$0xf]
      %v778 = vld [vmem:[%s1 + $0x70] sm:$0xf]
      %v779 = vld [vmem:[%s1 + $0x74] sm:$0xf]
      %v780 = vld [vmem:[%s1 + $0x78] sm:$0xf]
      %v781 = vld [vmem:[%s1 + $0x7c] sm:$0xf]
      %v782 = vld [vmem:[%s1 + $0x80] sm:$0xf]
      %v783 = vld [vmem:[%s1 + $0x84] sm:$0xf]
      %v784 = vld [vmem:[%s1 + $0x88] sm:$0xf]
      %v785 = vld [vmem:[%s1 + $0x8c] sm:$0xf]
      %v786 = vld [vmem:[%s1 + $0x90] sm:$0xf]
      %v787 = vld [vmem:[%s1 + $0x94] sm:$0xf]
      %v788 = vld [vmem:[%s1 + $0x98] sm:$0xf]
      %v789 = vld [vmem:[%s1 + $0x9c] sm:$0xf]
      %v790 = vld [vmem:[%s1 + $0xa0] sm:$0xf]
      %v791 = vld [vmem:[%s1 + $0xa4] sm:$0xf]
      %v792 = vld [vmem:[%s1 + $0xa8] sm:$0xf]
      %v793 = vld [vmem:[%s1 + $0xac] sm:$0xf]
      %v794 = vld [vmem:[%s1 + $0xb0] sm:$0xf]
      %v795 = vld [vmem:[%s1 + $0xb4] sm:$0xf]
      %v796 = vld [vmem:[%s1 + $0xb8] sm:$0xf]
      %v797 = vld [vmem:[%s1 + $0xbc] sm:$0xf]
      %v798 = vld [vmem:[%s1 + $0xc0] sm:$0xf]
      %v799 = vld [vmem:[%s1 + $0xc4] sm:$0xf]
      %v800 = vld [vmem:[%s1 + $0xc8] sm:$0xf]
      %v801 = vld [vmem:[%s1 + $0xcc] sm:$0xf]
      %v802 = vld [vmem:[%s1 + $0xd0] sm:$0xf]
      %v803 = vld [vmem:[%s1 + $0xd4] sm:$0xf]
      %v804 = vld [vmem:[%s1 + $0xd8] sm:$0xf]
      %v805 = vld [vmem:[%s1 + $0xdc] sm:$0xf]
      %v806 = vld [vmem:[%s1 + $0xe0] sm:$0xf]
      %v807 = vld [vmem:[%s1 + $0xe4] sm:$0xf]
      %v808 = vld [vmem:[%s1 + $0xe8] sm:$0xf]
      %v809 = vld [vmem:[%s1 + $0xec] sm:$0xf]
      %v810 = vld [vmem:[%s1 + $0xf0] sm:$0xf]
      %v811 = vld [vmem:[%s1 + $0xf4] sm:$0xf]
      %v812 = vld [vmem:[%s1 + $0xf8] sm:$0xf]
      %v813 = vld [vmem:[%s1 + $0xfc] sm:$0xf]
      %v814 = vld [vmem:[%s1 + $0x100] sm:$0xf]
      %v815 = vld [vmem:[%s1 + $0x104] sm:$0xf]
      %v816 = vld [vmem:[%s1 + $0x108] sm:$0xf]
      %v817 = vld [vmem:[%s1 + $0x10c] sm:$0xf]
      %v818 = vld [vmem:[%s1 + $0x110] sm:$0xf]
      %v819 = vld [vmem:[%s1 + $0x114] sm:$0xf]
      %v820 = vld [vmem:[%s1 + $0x118] sm:$0xf]
      %v821 = vld [vmem:[%s1 + $0x11c] sm:$0xf]
      %v822 = vld [vmem:[%s1 + $0x120] sm:$0xf]
      %v823 = vld [vmem:[%s1 + $0x124] sm:$0xf]
      %v824 = vld [vmem:[%s1 + $0x128] sm:$0xf]
      %v825 = vld [vmem:[%s1 + $0x12c] sm:$0xf]
      %v826 = vld [vmem:[%s1 + $0x130] sm:$0xf]
      %v827 = vld [vmem:[%s1 + $0x134] sm:$0xf]
      %v828 = vld [vmem:[%s1 + $0x138] sm:$0xf]
      %v829 = vld [vmem:[%s1 + $0x13c] sm:$0xf]
      %v830 = vld [vmem:[%s1 + $0x140] sm:$0xf]
      %v831 = vld [vmem:[%s1 + $0x144] sm:$0xf]
      %v832 = vld [vmem:[%s1 + $0x148] sm:$0xf]
      %v833 = vld [vmem:[%s1 + $0x14c] sm:$0xf]
      %v834 = vld [vmem:[%s1 + $0x150] sm:$0xf]
      %v835 = vld [vmem:[%s1 + $0x154] sm:$0xf]
      %v836 = vld [vmem:[%s1 + $0x158] sm:$0xf]
      %v837 = vld [vmem:[%s1 + $0x15c] sm:$0xf]
      %v838 = vld [vmem:[%s1 + $0x160] sm:$0xf]
      %v839 = vld [vmem:[%s1 + $0x164] sm:$0xf]
      %v840 = vld [vmem:[%s1 + $0x168] sm:$0xf]
      %v841 = vld [vmem:[%s1 + $0x16c] sm:$0xf]
      %v842 = vld [vmem:[%s1 + $0x170] sm:$0xf]
      %v843 = vld [vmem:[%s1 + $0x174] sm:$0xf]
      %v844 = vld [vmem:[%s1 + $0x178] sm:$0xf]
      %v845 = vld [vmem:[%s1 + $0x17c] sm:$0xf]
      %v846 = vld [vmem:[%s1 + $0x180] sm:$0xf]
      %v847 = vld [vmem:[%s1 + $0x184] sm:$0xf]
      %v848 = vld [vmem:[%s1 + $0x188] sm:$0xf]
      %v849 = vld [vmem:[%s1 + $0x18c] sm:$0xf]
      %v850 = vld [vmem:[%s1 + $0x190] sm:$0xf]
      %v851 = vld [vmem:[%s1 + $0x194] sm:$0xf]
      %v852 = vld [vmem:[%s1 + $0x198] sm:$0xf]
      %v853 = vld [vmem:[%s1 + $0x19c] sm:$0xf]
      %v854 = vld [vmem:[%s1 + $0x1a0] sm:$0xf]
      %v855 = vld [vmem:[%s1 + $0x1a4] sm:$0xf]
      %v856 = vld [vmem:[%s1 + $0x1a8] sm:$0xf]
      %v857 = vld [vmem:[%s1 + $0x1ac] sm:$0xf]
      %v858 = vld [vmem:[%s1 + $0x1b0] sm:$0xf]
      %v859 = vld [vmem:[%s1 + $0x1b4] sm:$0xf]
      %v860 = vld [vmem:[%s1 + $0x1b8] sm:$0xf]
      %v861 = vld [vmem:[%s1 + $0x1bc] sm:$0xf]
      %v862 = vld [vmem:[%s1 + $0x1c0] sm:$0xf]
      %v863 = vld [vmem:[%s1 + $0x1c4] sm:$0xf]
      %v864 = vld [vmem:[%s1 + $0x1c8] sm:$0xf]
      %v865 = vld [vmem:[%s1 + $0x1cc] sm:$0xf]
      %v866 = vld [vmem:[%s1 + $0x1d0] sm:$0xf]
      %v867 = vld [vmem:[%s1 + $0x1d4] sm:$0xf]
      %v868 = vld [vmem:[%s1 + $0x1d8] sm:$0xf]
      %v869 = vld [vmem:[%s1 + $0x1dc] sm:$0xf]
      %v870 = vld [vmem:[%s1 + $0x1e0] sm:$0xf]
      %v871 = vld [vmem:[%s1 + $0x1e4] sm:$0xf]
      %v872 = vld [vmem:[%s1 + $0x1e8] sm:$0xf]
      %v873 = vld [vmem:[%s1 + $0x1ec] sm:$0xf]
      %v874 = vld [vmem:[%s1 + $0x1f0] sm:$0xf]
      %v875 = vld [vmem:[%s1 + $0x1f4] sm:$0xf]
      %v876 = vld [vmem:[%s1 + $0x1f8] sm:$0xf]
      %v877 = vld [vmem:[%s1 + $0x1fc] sm:$0xf]
      %v878 = vld [vmem:[%s1 + $0x200] sm:$0xf]
      %v879 = vld [vmem:[%s1 + $0x204] sm:$0xf]
      %v880 = vld [vmem:[%s1 + $0x208] sm:$0xf]
      %v881 = vld [vmem:[%s1 + $0x20c] sm:$0xf]
      %v882 = vld [vmem:[%s1 + $0x210] sm:$0xf]
      %v883 = vld [vmem:[%s1 + $0x214] sm:$0xf]
      %v884 = vld [vmem:[%s1 + $0x218] sm:$0xf]
      %v885 = vld [vmem:[%s1 + $0x21c] sm:$0xf]
      %v886 = vld [vmem:[%s1 + $0x220] sm:$0xf]
      %v887 = vld [vmem:[%s1 + $0x224] sm:$0xf]
      %v888 = vld [vmem:[%s1 + $0x228] sm:$0xf]
      %v889 = vld [vmem:[%s1 + $0x22c] sm:$0xf]
      %v890 = vld [vmem:[%s1 + $0x230] sm:$0xf]
      %v891 = vld [vmem:[%s1 + $0x234] sm:$0xf]
      %v892 = vld [vmem:[%s1 + $0x238] sm:$0xf]
      %v893 = vld [vmem:[%s1 + $0x23c] sm:$0xf]
      %v894 = vld [vmem:[%s3] sm:$0x1]
      %v896 = vperm.slane %v894, 0
      %v1042 = vunpack.c.l.b16 %v750
      %v1043 = vunpack.c.l.b16 %v751
      %v1044 = vunpack.c.l.b16 %v752
      %v1045 = vunpack.c.l.b16 %v753
      %v1046 = vunpack.c.l.b16 %v754
      %v1047 = vunpack.c.l.b16 %v755
      %v1048 = vunpack.c.l.b16 %v756
      %v1049 = vunpack.c.l.b16 %v757
      %v1050 = vunpack.c.l.b16 %v758
      %v1051 = vunpack.c.l.b16 %v759
      %v1052 = vunpack.c.l.b16 %v760
      %v1053 = vunpack.c.l.b16 %v761
      %v1054 = vunpack.c.l.b16 %v762
      %v1055 = vunpack.c.l.b16 %v763
      %v1056 = vunpack.c.l.b16 %v764
      %v1057 = vunpack.c.l.b16 %v765
      %v1058 = vunpack.c.l.b16 %v766
      %v1059 = vunpack.c.l.b16 %v767
      %v1060 = vunpack.c.l.b16 %v768
      %v1061 = vunpack.c.l.b16 %v769
      %v1062 = vunpack.c.l.b16 %v770
      %v1063 = vunpack.c.l.b16 %v771
      %v1064 = vunpack.c.l.b16 %v772
      %v1065 = vunpack.c.l.b16 %v773
      %v1066 = vunpack.c.l.b16 %v774
      %v1067 = vunpack.c.l.b16 %v775
      %v1068 = vunpack.c.l.b16 %v776
      %v1069 = vunpack.c.l.b16 %v777
      %v1070 = vunpack.c.l.b16 %v778
      %v1071 = vunpack.c.l.b16 %v779
      %v1072 = vunpack.c.l.b16 %v780
      %v1073 = vunpack.c.l.b16 %v781
      %v1074 = vunpack.c.l.b16 %v782
      %v1075 = vunpack.c.l.b16 %v783
      %v1076 = vunpack.c.l.b16 %v784
      %v1077 = vunpack.c.l.b16 %v785
      %v1078 = vunpack.c.l.b16 %v786
      %v1079 = vunpack.c.l.b16 %v787
      %v1080 = vunpack.c.l.b16 %v788
      %v1081 = vunpack.c.l.b16 %v789
      %v1082 = vunpack.c.l.b16 %v790
      %v1083 = vunpack.c.l.b16 %v791
      %v1084 = vunpack.c.l.b16 %v792
      %v1085 = vunpack.c.l.b16 %v793
      %v1086 = vunpack.c.l.b16 %v794
      %v1087 = vunpack.c.l.b16 %v795
      %v1088 = vunpack.c.l.b16 %v796
      %v1089 = vunpack.c.l.b16 %v797
      %v1090 = vunpack.c.l.b16 %v798
      %v1091 = vunpack.c.l.b16 %v799
      %v1092 = vunpack.c.l.b16 %v800
      %v1093 = vunpack.c.l.b16 %v801
      %v1094 = vunpack.c.l.b16 %v802
      %v1095 = vunpack.c.l.b16 %v803
      %v1096 = vunpack.c.l.b16 %v804
      %v1097 = vunpack.c.l.b16 %v805
      %v1098 = vunpack.c.l.b16 %v806
      %v1099 = vunpack.c.l.b16 %v807
      %v1100 = vunpack.c.l.b16 %v808
      %v1101 = vunpack.c.l.b16 %v809
      %v1102 = vunpack.c.l.b16 %v810
      %v1103 = vunpack.c.l.b16 %v811
      %v1104 = vunpack.c.l.b16 %v812
      %v1105 = vunpack.c.l.b16 %v813
      %v1106 = vunpack.c.l.b16 %v814
      %v1107 = vunpack.c.l.b16 %v815
      %v1108 = vunpack.c.l.b16 %v816
      %v1109 = vunpack.c.l.b16 %v817
      %v1110 = vunpack.c.l.b16 %v818
      %v1111 = vunpack.c.l.b16 %v819
      %v1112 = vunpack.c.l.b16 %v820
      %v1113 = vunpack.c.l.b16 %v821
      %v1114 = vunpack.c.l.b16 %v822
      %v1115 = vunpack.c.l.b16 %v823
      %v1116 = vunpack.c.l.b16 %v824
      %v1117 = vunpack.c.l.b16 %v825
      %v1118 = vunpack.c.l.b16 %v826
      %v1119 = vunpack.c.l.b16 %v827
      %v1120 = vunpack.c.l.b16 %v828
      %v1121 = vunpack.c.l.b16 %v829
      %v1122 = vunpack.c.l.b16 %v830
      %v1123 = vunpack.c.l.b16 %v831
      %v1124 = vunpack.c.l.b16 %v832
      %v1125 = vunpack.c.l.b16 %v833
      %v1126 = vunpack.c.l.b16 %v834
      %v1127 = vunpack.c.l.b16 %v835
      %v1128 = vunpack.c.l.b16 %v836
      %v1129 = vunpack.c.l.b16 %v837
      %v1130 = vunpack.c.l.b16 %v838
      %v1131 = vunpack.c.l.b16 %v839
      %v1132 = vunpack.c.l.b16 %v840
      %v1133 = vunpack.c.l.b16 %v841
      %v1134 = vunpack.c.l.b16 %v842
      %v1135 = vunpack.c.l.b16 %v843
      %v1136 = vunpack.c.l.b16 %v844
      %v1137 = vunpack.c.l.b16 %v845
      %v1138 = vunpack.c.l.b16 %v846
      %v1139 = vunpack.c.l.b16 %v847
      %v1140 = vunpack.c.l.b16 %v848
      %v1141 = vunpack.c.l.b16 %v849
      %v1142 = vunpack.c.l.b16 %v850
      %v1143 = vunpack.c.l.b16 %v851
      %v1144 = vunpack.c.l.b16 %v852
      %v1145 = vunpack.c.l.b16 %v853
      %v1146 = vunpack.c.l.b16 %v854
      %v1147 = vunpack.c.l.b16 %v855
      %v1148 = vunpack.c.l.b16 %v856
      %v1149 = vunpack.c.l.b16 %v857
      %v1150 = vunpack.c.l.b16 %v858
      %v1151 = vunpack.c.l.b16 %v859
      %v1152 = vunpack.c.l.b16 %v860
      %v1153 = vunpack.c.l.b16 %v861
      %v1154 = vunpack.c.l.b16 %v862
      %v1155 = vunpack.c.l.b16 %v863
      %v1156 = vunpack.c.l.b16 %v864
      %v1157 = vunpack.c.l.b16 %v865
      %v1158 = vunpack.c.l.b16 %v866
      %v1159 = vunpack.c.l.b16 %v867
      %v1160 = vunpack.c.l.b16 %v868
      %v1161 = vunpack.c.l.b16 %v869
      %v1162 = vunpack.c.l.b16 %v870
      %v1163 = vunpack.c.l.b16 %v871
      %v1164 = vunpack.c.l.b16 %v872
      %v1165 = vunpack.c.l.b16 %v873
      %v1166 = vunpack.c.l.b16 %v874
      %v1167 = vunpack.c.l.b16 %v875
      %v1168 = vunpack.c.l.b16 %v876
      %v1169 = vunpack.c.l.b16 %v877
      %v1170 = vunpack.c.l.b16 %v878
      %v1171 = vunpack.c.l.b16 %v879
      %v1172 = vunpack.c.l.b16 %v880
      %v1173 = vunpack.c.l.b16 %v881
      %v1174 = vunpack.c.l.b16 %v882
      %v1175 = vunpack.c.l.b16 %v883
      %v1176 = vunpack.c.l.b16 %v884
      %v1177 = vunpack.c.l.b16 %v885
      %v1178 = vunpack.c.l.b16 %v886
      %v1179 = vunpack.c.l.b16 %v887
      %v1180 = vunpack.c.l.b16 %v888
      %v1181 = vunpack.c.l.b16 %v889
      %v1182 = vunpack.c.l.b16 %v890
      %v1183 = vunpack.c.l.b16 %v891
      %v1184 = vunpack.c.l.b16 %v892
      %v1185 = vunpack.c.l.b16 %v893
      %v1186 = vpack.c.b16 %v1043, %v1042
      %v1187 = vpack.c.b16 %v1045, %v1044
      %v1188 = vpack.c.b16 %v1047, %v1046
      %v1189 = vpack.c.b16 %v1049, %v1048
      %v1190 = vpack.c.b16 %v1051, %v1050
      %v1191 = vpack.c.b16 %v1053, %v1052
      %v1192 = vpack.c.b16 %v1055, %v1054
      %v1193 = vpack.c.b16 %v1057, %v1056
      %v1194 = vpack.c.b16 %v1059, %v1058
      %v1195 = vpack.c.b16 %v1061, %v1060
      %v1196 = vpack.c.b16 %v1063, %v1062
      %v1197 = vpack.c.b16 %v1065, %v1064
      %v1198 = vpack.c.b16 %v1067, %v1066
      %v1199 = vpack.c.b16 %v1069, %v1068
      %v1200 = vpack.c.b16 %v1071, %v1070
      %v1201 = vpack.c.b16 %v1073, %v1072
      %v1202 = vpack.c.b16 %v1075, %v1074
      %v1203 = vpack.c.b16 %v1077, %v1076
      %v1204 = vpack.c.b16 %v1079, %v1078
      %v1205 = vpack.c.b16 %v1081, %v1080
      %v1206 = vpack.c.b16 %v1083, %v1082
      %v1207 = vpack.c.b16 %v1085, %v1084
      %v1208 = vpack.c.b16 %v1087, %v1086
      %v1209 = vpack.c.b16 %v1089, %v1088
      %v1210 = vpack.c.b16 %v1091, %v1090
      %v1211 = vpack.c.b16 %v1093, %v1092
      %v1212 = vpack.c.b16 %v1095, %v1094
      %v1213 = vpack.c.b16 %v1097, %v1096
      %v1214 = vpack.c.b16 %v1099, %v1098
      %v1215 = vpack.c.b16 %v1101, %v1100
      %v1216 = vpack.c.b16 %v1103, %v1102
      %v1217 = vpack.c.b16 %v1105, %v1104
      %v1218 = vpack.c.b16 %v1107, %v1106
      %v1219 = vpack.c.b16 %v1109, %v1108
      %v1220 = vpack.c.b16 %v1111, %v1110
      %v1221 = vpack.c.b16 %v1113, %v1112
      %v1222 = vpack.c.b16 %v1115, %v1114
      %v1223 = vpack.c.b16 %v1117, %v1116
      %v1224 = vpack.c.b16 %v1119, %v1118
      %v1225 = vpack.c.b16 %v1121, %v1120
      %v1226 = vpack.c.b16 %v1123, %v1122
      %v1227 = vpack.c.b16 %v1125, %v1124
      %v1228 = vpack.c.b16 %v1127, %v1126
      %v1229 = vpack.c.b16 %v1129, %v1128
      %v1230 = vpack.c.b16 %v1131, %v1130
      %v1231 = vpack.c.b16 %v1133, %v1132
      %v1232 = vpack.c.b16 %v1135, %v1134
      %v1233 = vpack.c.b16 %v1137, %v1136
      %v1234 = vpack.c.b16 %v1139, %v1138
      %v1235 = vpack.c.b16 %v1141, %v1140
      %v1236 = vpack.c.b16 %v1143, %v1142
      %v1237 = vpack.c.b16 %v1145, %v1144
      %v1238 = vpack.c.b16 %v1147, %v1146
      %v1239 = vpack.c.b16 %v1149, %v1148
      %v1240 = vpack.c.b16 %v1151, %v1150
      %v1241 = vpack.c.b16 %v1153, %v1152
      %v1242 = vpack.c.b16 %v1155, %v1154
      %v1243 = vpack.c.b16 %v1157, %v1156
      %v1244 = vpack.c.b16 %v1159, %v1158
      %v1245 = vpack.c.b16 %v1161, %v1160
      %v1246 = vpack.c.b16 %v1163, %v1162
      %v1247 = vpack.c.b16 %v1165, %v1164
      %v1248 = vpack.c.b16 %v1167, %v1166
      %v1249 = vpack.c.b16 %v1169, %v1168
      %v1250 = vpack.c.b16 %v1171, %v1170
      %v1251 = vpack.c.b16 %v1173, %v1172
      %v1252 = vpack.c.b16 %v1175, %v1174
      %v1253 = vpack.c.b16 %v1177, %v1176
      %v1254 = vpack.c.b16 %v1179, %v1178
      %v1255 = vpack.c.b16 %v1181, %v1180
      %v1256 = vpack.c.b16 %v1183, %v1182
      %v1257 = vpack.c.b16 %v1185, %v1184
      %1330 = vmatpush.bf16.msra.mxu0 %v1193
      %1331 = vmatpush.bf16.msra.mxu0 %v1192
      %1332 = vmatpush.bf16.msra.mxu0 %v1191
      %1333 = vmatpush.bf16.msra.mxu0 %v1190
      %1334 = vmatpush.bf16.msra.mxu0 %v1189
      %1335 = vmatpush.bf16.msra.mxu0 %v1188
      %1336 = vmatpush.bf16.msra.mxu0 %v1187
      %1337 = vmatpush.bf16.msra.mxu0 %v1186
      %1338 = vmatmul.bf16.gmra.mxu0 %v344
      %v1339 = vpop.f32.mrf.mxu0
      %v1340 = vadd.f32 %v896, %v1339
      %v1341 = vpop.f32.mrf.mxu0
      %v1342 = vadd.f32 %v896, %v1341
      %1343 = vmatmul.bf16.gmra.mxu0 %v345
      %v1344 = vpop.f32.mrf.mxu0
      %v1345 = vadd.f32 %v896, %v1344
      %v1346 = vpop.f32.mrf.mxu0
      %v1347 = vadd.f32 %v896, %v1346
      %1348 = vmatmul.bf16.gmra.mxu0 %v346
      %v1349 = vpop.f32.mrf.mxu0
      %v1350 = vadd.f32 %v896, %v1349
      %v1351 = vpop.f32.mrf.mxu0
      %v1352 = vadd.f32 %v896, %v1351
      %1353 = vmatmul.bf16.gmra.mxu0 %v347
      %v1354 = vpop.f32.mrf.mxu0
      %v1355 = vadd.f32 %v896, %v1354
      %v1356 = vpop.f32.mrf.mxu0
      %v1357 = vadd.f32 %v896, %v1356
      %1358 = vmatmul.bf16.gmra.mxu0 %v348
      %v1359 = vpop.f32.mrf.mxu0
      %v1360 = vadd.f32 %v896, %v1359
      %v1361 = vpop.f32.mrf.mxu0
      %v1362 = vadd.f32 %v896, %v1361
      %1363 = vmatmul.bf16.gmra.mxu0 %v349
      %v1364 = vpop.f32.mrf.mxu0
      %v1365 = vadd.f32 %v896, %v1364
      %v1366 = vpop.f32.mrf.mxu0
      %v1367 = vadd.f32 %v896, %v1366
      %1368 = vmatmul.bf16.gmra.mxu0 %v350
      %v1369 = vpop.f32.mrf.mxu0
      %v1370 = vadd.f32 %v896, %v1369
      %v1371 = vpop.f32.mrf.mxu0
      %v1372 = vadd.f32 %v896, %v1371
      %1373 = vmatmul.bf16.gmra.mxu0 %v351
      %v1374 = vpop.f32.mrf.mxu0
      %v1375 = vadd.f32 %v896, %v1374
      %v1376 = vpop.f32.mrf.mxu0
      %v1377 = vadd.f32 %v896, %v1376
      %1378 = vmatmul.bf16.gmra.mxu0 %v352
      %v1379 = vpop.f32.mrf.mxu0
      %v1380 = vadd.f32 %v896, %v1379
      %v1381 = vpop.f32.mrf.mxu0
      %v1382 = vadd.f32 %v896, %v1381
      %1383 = vmatmul.bf16.gmra.mxu0 %v353
      %v1384 = vpop.f32.mrf.mxu0
      %v1385 = vadd.f32 %v896, %v1384
      %v1386 = vpop.f32.mrf.mxu0
      %v1387 = vadd.f32 %v896, %v1386
      %1388 = vmatmul.bf16.gmra.mxu0 %v354
      %v1389 = vpop.f32.mrf.mxu0
      %v1390 = vadd.f32 %v896, %v1389
      %v1391 = vpop.f32.mrf.mxu0
      %v1392 = vadd.f32 %v896, %v1391
      %1393 = vmatmul.bf16.gmra.mxu0 %v355
      %v1394 = vpop.f32.mrf.mxu0
      %v1395 = vadd.f32 %v896, %v1394
      %v1396 = vpop.f32.mrf.mxu0
      %v1397 = vadd.f32 %v896, %v1396
      %1398 = vmatmul.bf16.gmra.mxu0 %v356
      %v1399 = vpop.f32.mrf.mxu0
      %v1400 = vadd.f32 %v896, %v1399
      %v1401 = vpop.f32.mrf.mxu0
      %v1402 = vadd.f32 %v896, %v1401
      %1403 = vmatmul.bf16.gmra.mxu0 %v357
      %v1404 = vpop.f32.mrf.mxu0
      %v1405 = vadd.f32 %v896, %v1404
      %v1406 = vpop.f32.mrf.mxu0
      %v1407 = vadd.f32 %v896, %v1406
      %1408 = vmatmul.bf16.gmra.mxu0 %v358
      %v1409 = vpop.f32.mrf.mxu0
      %v1410 = vadd.f32 %v896, %v1409
      %v1411 = vpop.f32.mrf.mxu0
      %v1412 = vadd.f32 %v896, %v1411
      %1413 = vmatmul.bf16.gmra.mxu0 %v359
      %v1414 = vpop.f32.mrf.mxu0
      %v1415 = vadd.f32 %v896, %v1414
      %v1416 = vpop.f32.mrf.mxu0
      %v1417 = vadd.f32 %v896, %v1416
      %1418 = vdwg.mxu0
      %1419 = vmatpush.bf16.msra.mxu0 %v1201
      %1420 = vmatpush.bf16.msra.mxu0 %v1200
      %1421 = vmatpush.bf16.msra.mxu0 %v1199
      %1422 = vmatpush.bf16.msra.mxu0 %v1198
      %1423 = vmatpush.bf16.msra.mxu0 %v1197
      %1424 = vmatpush.bf16.msra.mxu0 %v1196
      %1425 = vmatpush.bf16.msra.mxu0 %v1195
      %1426 = vmatpush.bf16.msra.mxu0 %v1194
      %1427 = vmatmul.bf16.gmra.mxu0 %v436
      %v1428 = vpop.f32.mrf.mxu0
      %v1429 = vadd.f32 %v1340, %v1428
      %v1430 = vpop.f32.mrf.mxu0
      %v1431 = vadd.f32 %v1342, %v1430
      %1432 = vmatmul.bf16.gmra.mxu0 %v448
      %v1433 = vpop.f32.mrf.mxu0
      %v1434 = vadd.f32 %v1345, %v1433
      %v1435 = vpop.f32.mrf.mxu0
      %v1436 = vadd.f32 %v1347, %v1435
      %1437 = vmatmul.bf16.gmra.mxu0 %v460
      %v1438 = vpop.f32.mrf.mxu0
      %v1439 = vadd.f32 %v1350, %v1438
      %v1440 = vpop.f32.mrf.mxu0
      %v1441 = vadd.f32 %v1352, %v1440
      %1442 = vmatmul.bf16.gmra.mxu0 %v472
      %v1443 = vpop.f32.mrf.mxu0
      %v1444 = vadd.f32 %v1355, %v1443
      %v1445 = vpop.f32.mrf.mxu0
      %v1446 = vadd.f32 %v1357, %v1445
      %1447 = vmatmul.bf16.gmra.mxu0 %v484
      %v1448 = vpop.f32.mrf.mxu0
      %v1449 = vadd.f32 %v1360, %v1448
      %v1450 = vpop.f32.mrf.mxu0
      %v1451 = vadd.f32 %v1362, %v1450
      %1452 = vmatmul.bf16.gmra.mxu0 %v496
      %v1453 = vpop.f32.mrf.mxu0
      %v1454 = vadd.f32 %v1365, %v1453
      %v1455 = vpop.f32.mrf.mxu0
      %v1456 = vadd.f32 %v1367, %v1455
      %1457 = vmatmul.bf16.gmra.mxu0 %v508
      %v1458 = vpop.f32.mrf.mxu0
      %v1459 = vadd.f32 %v1370, %v1458
      %v1460 = vpop.f32.mrf.mxu0
      %v1461 = vadd.f32 %v1372, %v1460
      %1462 = vmatmul.bf16.gmra.mxu0 %v520
      %v1463 = vpop.f32.mrf.mxu0
      %v1464 = vadd.f32 %v1375, %v1463
      %v1465 = vpop.f32.mrf.mxu0
      %v1466 = vadd.f32 %v1377, %v1465
      %1467 = vmatmul.bf16.gmra.mxu0 %v532
      %v1468 = vpop.f32.mrf.mxu0
      %v1469 = vadd.f32 %v1380, %v1468
      %v1470 = vpop.f32.mrf.mxu0
      %v1471 = vadd.f32 %v1382, %v1470
      %1472 = vmatmul.bf16.gmra.mxu0 %v544
      %v1473 = vpop.f32.mrf.mxu0
      %v1474 = vadd.f32 %v1385, %v1473
      %v1475 = vpop.f32.mrf.mxu0
      %v1476 = vadd.f32 %v1387, %v1475
      %1477 = vmatmul.bf16.gmra.mxu0 %v556
      %v1478 = vpop.f32.mrf.mxu0
      %v1479 = vadd.f32 %v1390, %v1478
      %v1480 = vpop.f32.mrf.mxu0
      %v1481 = vadd.f32 %v1392, %v1480
      %1482 = vmatmul.bf16.gmra.mxu0 %v568
      %v1483 = vpop.f32.mrf.mxu0
      %v1484 = vadd.f32 %v1395, %v1483
      %v1485 = vpop.f32.mrf.mxu0
      %v1486 = vadd.f32 %v1397, %v1485
      %1487 = vmatmul.bf16.gmra.mxu0 %v580
      %v1488 = vpop.f32.mrf.mxu0
      %v1489 = vadd.f32 %v1400, %v1488
      %v1490 = vpop.f32.mrf.mxu0
      %v1491 = vadd.f32 %v1402, %v1490
      %1492 = vmatmul.bf16.gmra.mxu0 %v592
      %v1493 = vpop.f32.mrf.mxu0
      %v1494 = vadd.f32 %v1405, %v1493
      %v1495 = vpop.f32.mrf.mxu0
      %v1496 = vadd.f32 %v1407, %v1495
      %1497 = vmatmul.bf16.gmra.mxu0 %v604
      %v1498 = vpop.f32.mrf.mxu0
      %v1499 = vadd.f32 %v1410, %v1498
      %v1500 = vpop.f32.mrf.mxu0
      %v1501 = vadd.f32 %v1412, %v1500
      %1502 = vmatmul.bf16.gmra.mxu0 %v616
      %v1503 = vpop.f32.mrf.mxu0
      %v1504 = vadd.f32 %v1415, %v1503
      %v1505 = vpop.f32.mrf.mxu0
      %v1506 = vadd.f32 %v1417, %v1505
      %1507 = vdwg.mxu0
      %1508 = vmatpush.bf16.msra.mxu0 %v1209
      %1509 = vmatpush.bf16.msra.mxu0 %v1208
      %1510 = vmatpush.bf16.msra.mxu0 %v1207
      %1511 = vmatpush.bf16.msra.mxu0 %v1206
      %1512 = vmatpush.bf16.msra.mxu0 %v1205
      %1513 = vmatpush.bf16.msra.mxu0 %v1204
      %1514 = vmatpush.bf16.msra.mxu0 %v1203
      %1515 = vmatpush.bf16.msra.mxu0 %v1202
      %1516 = vmatmul.bf16.gmra.mxu0 %v636
      %v1517 = vpop.f32.mrf.mxu0
      %v1518 = vadd.f32 %v1429, %v1517
      %v1519 = vpop.f32.mrf.mxu0
      %v1520 = vadd.f32 %v1431, %v1519
      %1521 = vmatmul.bf16.gmra.mxu0 %v639
      %v1522 = vpop.f32.mrf.mxu0
      %v1523 = vadd.f32 %v1434, %v1522
      %v1524 = vpop.f32.mrf.mxu0
      %v1525 = vadd.f32 %v1436, %v1524
      %1526 = vmatmul.bf16.gmra.mxu0 %v642
      %v1527 = vpop.f32.mrf.mxu0
      %v1528 = vadd.f32 %v1439, %v1527
      %v1529 = vpop.f32.mrf.mxu0
      %v1530 = vadd.f32 %v1441, %v1529
      %1531 = vmatmul.bf16.gmra.mxu0 %v645
      %v1532 = vpop.f32.mrf.mxu0
      %v1533 = vadd.f32 %v1444, %v1532
      %v1534 = vpop.f32.mrf.mxu0
      %v1535 = vadd.f32 %v1446, %v1534
      %1536 = vmatmul.bf16.gmra.mxu0 %v648
      %v1537 = vpop.f32.mrf.mxu0
      %v1538 = vadd.f32 %v1449, %v1537
      %v1539 = vpop.f32.mrf.mxu0
      %v1540 = vadd.f32 %v1451, %v1539
      %1541 = vmatmul.bf16.gmra.mxu0 %v651
      %v1542 = vpop.f32.mrf.mxu0
      %v1543 = vadd.f32 %v1454, %v1542
      %v1544 = vpop.f32.mrf.mxu0
      %v1545 = vadd.f32 %v1456, %v1544
      %1546 = vmatmul.bf16.gmra.mxu0 %v654
      %v1547 = vpop.f32.mrf.mxu0
      %v1548 = vadd.f32 %v1459, %v1547
      %v1549 = vpop.f32.mrf.mxu0
      %v1550 = vadd.f32 %v1461, %v1549
      %1551 = vmatmul.bf16.gmra.mxu0 %v657
      %v1552 = vpop.f32.mrf.mxu0
      %v1553 = vadd.f32 %v1464, %v1552
      %v1554 = vpop.f32.mrf.mxu0
      %v1555 = vadd.f32 %v1466, %v1554
      %1556 = vmatmul.bf16.gmra.mxu0 %v660
      %v1557 = vpop.f32.mrf.mxu0
      %v1558 = vadd.f32 %v1469, %v1557
      %v1559 = vpop.f32.mrf.mxu0
      %v1560 = vadd.f32 %v1471, %v1559
      %1561 = vmatmul.bf16.gmra.mxu0 %v663
      %v1562 = vpop.f32.mrf.mxu0
      %v1563 = vadd.f32 %v1474, %v1562
      %v1564 = vpop.f32.mrf.mxu0
      %v1565 = vadd.f32 %v1476, %v1564
      %1566 = vmatmul.bf16.gmra.mxu0 %v666
      %v1567 = vpop.f32.mrf.mxu0
      %v1568 = vadd.f32 %v1479, %v1567
      %v1569 = vpop.f32.mrf.mxu0
      %v1570 = vadd.f32 %v1481, %v1569
      %1571 = vmatmul.bf16.gmra.mxu0 %v669
      %v1572 = vpop.f32.mrf.mxu0
      %v1573 = vadd.f32 %v1484, %v1572
      %v1574 = vpop.f32.mrf.mxu0
      %v1575 = vadd.f32 %v1486, %v1574
      %1576 = vmatmul.bf16.gmra.mxu0 %v672
      %v1577 = vpop.f32.mrf.mxu0
      %v1578 = vadd.f32 %v1489, %v1577
      %v1579 = vpop.f32.mrf.mxu0
      %v1580 = vadd.f32 %v1491, %v1579
      %1581 = vmatmul.bf16.gmra.mxu0 %v675
      %v1582 = vpop.f32.mrf.mxu0
      %v1583 = vadd.f32 %v1494, %v1582
      %v1584 = vpop.f32.mrf.mxu0
      %v1585 = vadd.f32 %v1496, %v1584
      %1586 = vmatmul.bf16.gmra.mxu0 %v678
      %v1587 = vpop.f32.mrf.mxu0
      %v1588 = vadd.f32 %v1499, %v1587
      %v1589 = vpop.f32.mrf.mxu0
      %v1590 = vadd.f32 %v1501, %v1589
      %1591 = vmatmul.bf16.gmra.mxu0 %v681
      %v1592 = vpop.f32.mrf.mxu0
      %v1593 = vadd.f32 %v1504, %v1592
      %v1594 = vpop.f32.mrf.mxu0
      %v1595 = vadd.f32 %v1506, %v1594
      %1596 = vdwg.mxu0
      %1597 = vmatpush.bf16.msra.mxu0 %v1217
      %1598 = vmatpush.bf16.msra.mxu0 %v1216
      %1599 = vmatpush.bf16.msra.mxu0 %v1215
      %1600 = vmatpush.bf16.msra.mxu0 %v1214
      %1601 = vmatpush.bf16.msra.mxu0 %v1213
      %1602 = vmatpush.bf16.msra.mxu0 %v1212
      %1603 = vmatpush.bf16.msra.mxu0 %v1211
      %1604 = vmatpush.bf16.msra.mxu0 %v1210
      %1605 = vmatmul.bf16.gmra.mxu0 %v345
      %v1606 = vpop.f32.mrf.mxu0
      %v1607 = vadd.f32 %v1518, %v1606
      %v1608 = vpop.f32.mrf.mxu0
      %v1609 = vadd.f32 %v1520, %v1608
      %1610 = vmatmul.bf16.gmra.mxu0 %v346
      %v1611 = vpop.f32.mrf.mxu0
      %v1612 = vadd.f32 %v1523, %v1611
      %v1613 = vpop.f32.mrf.mxu0
      %v1614 = vadd.f32 %v1525, %v1613
      %1615 = vmatmul.bf16.gmra.mxu0 %v347
      %v1616 = vpop.f32.mrf.mxu0
      %v1617 = vadd.f32 %v1528, %v1616
      %v1618 = vpop.f32.mrf.mxu0
      %v1619 = vadd.f32 %v1530, %v1618
      %1620 = vmatmul.bf16.gmra.mxu0 %v348
      %v1621 = vpop.f32.mrf.mxu0
      %v1622 = vadd.f32 %v1533, %v1621
      %v1623 = vpop.f32.mrf.mxu0
      %v1624 = vadd.f32 %v1535, %v1623
      %1625 = vmatmul.bf16.gmra.mxu0 %v349
      %v1626 = vpop.f32.mrf.mxu0
      %v1627 = vadd.f32 %v1538, %v1626
      %v1628 = vpop.f32.mrf.mxu0
      %v1629 = vadd.f32 %v1540, %v1628
      %1630 = vmatmul.bf16.gmra.mxu0 %v350
      %v1631 = vpop.f32.mrf.mxu0
      %v1632 = vadd.f32 %v1543, %v1631
      %v1633 = vpop.f32.mrf.mxu0
      %v1634 = vadd.f32 %v1545, %v1633
      %1635 = vmatmul.bf16.gmra.mxu0 %v351
      %v1636 = vpop.f32.mrf.mxu0
      %v1637 = vadd.f32 %v1548, %v1636
      %v1638 = vpop.f32.mrf.mxu0
      %v1639 = vadd.f32 %v1550, %v1638
      %1640 = vmatmul.bf16.gmra.mxu0 %v352
      %v1641 = vpop.f32.mrf.mxu0
      %v1642 = vadd.f32 %v1553, %v1641
      %v1643 = vpop.f32.mrf.mxu0
      %v1644 = vadd.f32 %v1555, %v1643
      %1645 = vmatmul.bf16.gmra.mxu0 %v353
      %v1646 = vpop.f32.mrf.mxu0
      %v1647 = vadd.f32 %v1558, %v1646
      %v1648 = vpop.f32.mrf.mxu0
      %v1649 = vadd.f32 %v1560, %v1648
      %1650 = vmatmul.bf16.gmra.mxu0 %v354
      %v1651 = vpop.f32.mrf.mxu0
      %v1652 = vadd.f32 %v1563, %v1651
      %v1653 = vpop.f32.mrf.mxu0
      %v1654 = vadd.f32 %v1565, %v1653
      %1655 = vmatmul.bf16.gmra.mxu0 %v355
      %v1656 = vpop.f32.mrf.mxu0
      %v1657 = vadd.f32 %v1568, %v1656
      %v1658 = vpop.f32.mrf.mxu0
      %v1659 = vadd.f32 %v1570, %v1658
      %1660 = vmatmul.bf16.gmra.mxu0 %v356
      %v1661 = vpop.f32.mrf.mxu0
      %v1662 = vadd.f32 %v1573, %v1661
      %v1663 = vpop.f32.mrf.mxu0
      %v1664 = vadd.f32 %v1575, %v1663
      %1665 = vmatmul.bf16.gmra.mxu0 %v357
      %v1666 = vpop.f32.mrf.mxu0
      %v1667 = vadd.f32 %v1578, %v1666
      %v1668 = vpop.f32.mrf.mxu0
      %v1669 = vadd.f32 %v1580, %v1668
      %1670 = vmatmul.bf16.gmra.mxu0 %v358
      %v1671 = vpop.f32.mrf.mxu0
      %v1672 = vadd.f32 %v1583, %v1671
      %v1673 = vpop.f32.mrf.mxu0
      %v1674 = vadd.f32 %v1585, %v1673
      %1675 = vmatmul.bf16.gmra.mxu0 %v359
      %v1676 = vpop.f32.mrf.mxu0
      %v1677 = vadd.f32 %v1588, %v1676
      %v1678 = vpop.f32.mrf.mxu0
      %v1679 = vadd.f32 %v1590, %v1678
      %1680 = vmatmul.bf16.gmra.mxu0 %v702
      %v1681 = vpop.f32.mrf.mxu0
      %v1682 = vadd.f32 %v1593, %v1681
      %v1683 = vpop.f32.mrf.mxu0
      %v1684 = vadd.f32 %v1595, %v1683
      %1685 = vdwg.mxu0
      %1686 = vmatpush.bf16.msra.mxu0 %v1225
      %1687 = vmatpush.bf16.msra.mxu0 %v1224
      %1688 = vmatpush.bf16.msra.mxu0 %v1223
      %1689 = vmatpush.bf16.msra.mxu0 %v1222
      %1690 = vmatpush.bf16.msra.mxu0 %v1221
      %1691 = vmatpush.bf16.msra.mxu0 %v1220
      %1692 = vmatpush.bf16.msra.mxu0 %v1219
      %1693 = vmatpush.bf16.msra.mxu0 %v1218
      %1694 = vmatmul.bf16.gmra.mxu0 %v448
      %v1695 = vpop.f32.mrf.mxu0
      %v1696 = vadd.f32 %v1607, %v1695
      %v1697 = vpop.f32.mrf.mxu0
      %v1698 = vadd.f32 %v1609, %v1697
      %1699 = vmatmul.bf16.gmra.mxu0 %v460
      %v1700 = vpop.f32.mrf.mxu0
      %v1701 = vadd.f32 %v1612, %v1700
      %v1702 = vpop.f32.mrf.mxu0
      %v1703 = vadd.f32 %v1614, %v1702
      %1704 = vmatmul.bf16.gmra.mxu0 %v472
      %v1705 = vpop.f32.mrf.mxu0
      %v1706 = vadd.f32 %v1617, %v1705
      %v1707 = vpop.f32.mrf.mxu0
      %v1708 = vadd.f32 %v1619, %v1707
      %1709 = vmatmul.bf16.gmra.mxu0 %v484
      %v1710 = vpop.f32.mrf.mxu0
      %v1711 = vadd.f32 %v1622, %v1710
      %v1712 = vpop.f32.mrf.mxu0
      %v1713 = vadd.f32 %v1624, %v1712
      %1714 = vmatmul.bf16.gmra.mxu0 %v496
      %v1715 = vpop.f32.mrf.mxu0
      %v1716 = vadd.f32 %v1627, %v1715
      %v1717 = vpop.f32.mrf.mxu0
      %v1718 = vadd.f32 %v1629, %v1717
      %1719 = vmatmul.bf16.gmra.mxu0 %v508
      %v1720 = vpop.f32.mrf.mxu0
      %v1721 = vadd.f32 %v1632, %v1720
      %v1722 = vpop.f32.mrf.mxu0
      %v1723 = vadd.f32 %v1634, %v1722
      %1724 = vmatmul.bf16.gmra.mxu0 %v520
      %v1725 = vpop.f32.mrf.mxu0
      %v1726 = vadd.f32 %v1637, %v1725
      %v1727 = vpop.f32.mrf.mxu0
      %v1728 = vadd.f32 %v1639, %v1727
      %1729 = vmatmul.bf16.gmra.mxu0 %v532
      %v1730 = vpop.f32.mrf.mxu0
      %v1731 = vadd.f32 %v1642, %v1730
      %v1732 = vpop.f32.mrf.mxu0
      %v1733 = vadd.f32 %v1644, %v1732
      %1734 = vmatmul.bf16.gmra.mxu0 %v544
      %v1735 = vpop.f32.mrf.mxu0
      %v1736 = vadd.f32 %v1647, %v1735
      %v1737 = vpop.f32.mrf.mxu0
      %v1738 = vadd.f32 %v1649, %v1737
      %1739 = vmatmul.bf16.gmra.mxu0 %v556
      %v1740 = vpop.f32.mrf.mxu0
      %v1741 = vadd.f32 %v1652, %v1740
      %v1742 = vpop.f32.mrf.mxu0
      %v1743 = vadd.f32 %v1654, %v1742
      %1744 = vmatmul.bf16.gmra.mxu0 %v568
      %v1745 = vpop.f32.mrf.mxu0
      %v1746 = vadd.f32 %v1657, %v1745
      %v1747 = vpop.f32.mrf.mxu0
      %v1748 = vadd.f32 %v1659, %v1747
      %1749 = vmatmul.bf16.gmra.mxu0 %v580
      %v1750 = vpop.f32.mrf.mxu0
      %v1751 = vadd.f32 %v1662, %v1750
      %v1752 = vpop.f32.mrf.mxu0
      %v1753 = vadd.f32 %v1664, %v1752
      %1754 = vmatmul.bf16.gmra.mxu0 %v592
      %v1755 = vpop.f32.mrf.mxu0
      %v1756 = vadd.f32 %v1667, %v1755
      %v1757 = vpop.f32.mrf.mxu0
      %v1758 = vadd.f32 %v1669, %v1757
      %1759 = vmatmul.bf16.gmra.mxu0 %v604
      %v1760 = vpop.f32.mrf.mxu0
      %v1761 = vadd.f32 %v1672, %v1760
      %v1762 = vpop.f32.mrf.mxu0
      %v1763 = vadd.f32 %v1674, %v1762
      %1764 = vmatmul.bf16.gmra.mxu0 %v616
      %v1765 = vpop.f32.mrf.mxu0
      %v1766 = vadd.f32 %v1677, %v1765
      %v1767 = vpop.f32.mrf.mxu0
      %v1768 = vadd.f32 %v1679, %v1767
      %1769 = vmatmul.bf16.gmra.mxu0 %v718
      %v1770 = vpop.f32.mrf.mxu0
      %v1771 = vadd.f32 %v1682, %v1770
      %v1772 = vpop.f32.mrf.mxu0
      %v1773 = vadd.f32 %v1684, %v1772
      %1774 = vdwg.mxu0
      %1775 = vmatpush.bf16.msra.mxu0 %v1233
      %1776 = vmatpush.bf16.msra.mxu0 %v1232
      %1777 = vmatpush.bf16.msra.mxu0 %v1231
      %1778 = vmatpush.bf16.msra.mxu0 %v1230
      %1779 = vmatpush.bf16.msra.mxu0 %v1229
      %1780 = vmatpush.bf16.msra.mxu0 %v1228
      %1781 = vmatpush.bf16.msra.mxu0 %v1227
      %1782 = vmatpush.bf16.msra.mxu0 %v1226
      %1783 = vmatmul.bf16.gmra.mxu0 %v639
      %v1784 = vpop.f32.mrf.mxu0
      %v1785 = vadd.f32 %v1696, %v1784
      %v1786 = vpop.f32.mrf.mxu0
      %v1787 = vadd.f32 %v1698, %v1786
      %1788 = vmatmul.bf16.gmra.mxu0 %v642
      %v1789 = vpop.f32.mrf.mxu0
      %v1790 = vadd.f32 %v1701, %v1789
      %v1791 = vpop.f32.mrf.mxu0
      %v1792 = vadd.f32 %v1703, %v1791
      %1793 = vmatmul.bf16.gmra.mxu0 %v645
      %v1794 = vpop.f32.mrf.mxu0
      %v1795 = vadd.f32 %v1706, %v1794
      %v1796 = vpop.f32.mrf.mxu0
      %v1797 = vadd.f32 %v1708, %v1796
      %1798 = vmatmul.bf16.gmra.mxu0 %v648
      %v1799 = vpop.f32.mrf.mxu0
      %v1800 = vadd.f32 %v1711, %v1799
      %v1801 = vpop.f32.mrf.mxu0
      %v1802 = vadd.f32 %v1713, %v1801
      %1803 = vmatmul.bf16.gmra.mxu0 %v651
      %v1804 = vpop.f32.mrf.mxu0
      %v1805 = vadd.f32 %v1716, %v1804
      %v1806 = vpop.f32.mrf.mxu0
      %v1807 = vadd.f32 %v1718, %v1806
      %1808 = vmatmul.bf16.gmra.mxu0 %v654
      %v1809 = vpop.f32.mrf.mxu0
      %v1810 = vadd.f32 %v1721, %v1809
      %v1811 = vpop.f32.mrf.mxu0
      %v1812 = vadd.f32 %v1723, %v1811
      %1813 = vmatmul.bf16.gmra.mxu0 %v657
      %v1814 = vpop.f32.mrf.mxu0
      %v1815 = vadd.f32 %v1726, %v1814
      %v1816 = vpop.f32.mrf.mxu0
      %v1817 = vadd.f32 %v1728, %v1816
      %1818 = vmatmul.bf16.gmra.mxu0 %v660
      %v1819 = vpop.f32.mrf.mxu0
      %v1820 = vadd.f32 %v1731, %v1819
      %v1821 = vpop.f32.mrf.mxu0
      %v1822 = vadd.f32 %v1733, %v1821
      %1823 = vmatmul.bf16.gmra.mxu0 %v663
      %v1824 = vpop.f32.mrf.mxu0
      %v1825 = vadd.f32 %v1736, %v1824
      %v1826 = vpop.f32.mrf.mxu0
      %v1827 = vadd.f32 %v1738, %v1826
      %1828 = vmatmul.bf16.gmra.mxu0 %v666
      %v1829 = vpop.f32.mrf.mxu0
      %v1830 = vadd.f32 %v1741, %v1829
      %v1831 = vpop.f32.mrf.mxu0
      %v1832 = vadd.f32 %v1743, %v1831
      %1833 = vmatmul.bf16.gmra.mxu0 %v669
      %v1834 = vpop.f32.mrf.mxu0
      %v1835 = vadd.f32 %v1746, %v1834
      %v1836 = vpop.f32.mrf.mxu0
      %v1837 = vadd.f32 %v1748, %v1836
      %1838 = vmatmul.bf16.gmra.mxu0 %v672
      %v1839 = vpop.f32.mrf.mxu0
      %v1840 = vadd.f32 %v1751, %v1839
      %v1841 = vpop.f32.mrf.mxu0
      %v1842 = vadd.f32 %v1753, %v1841
      %1843 = vmatmul.bf16.gmra.mxu0 %v675
      %v1844 = vpop.f32.mrf.mxu0
      %v1845 = vadd.f32 %v1756, %v1844
      %v1846 = vpop.f32.mrf.mxu0
      %v1847 = vadd.f32 %v1758, %v1846
      %1848 = vmatmul.bf16.gmra.mxu0 %v678
      %v1849 = vpop.f32.mrf.mxu0
      %v1850 = vadd.f32 %v1761, %v1849
      %v1851 = vpop.f32.mrf.mxu0
      %v1852 = vadd.f32 %v1763, %v1851
      %1853 = vmatmul.bf16.gmra.mxu0 %v681
      %v1854 = vpop.f32.mrf.mxu0
      %v1855 = vadd.f32 %v1766, %v1854
      %v1856 = vpop.f32.mrf.mxu0
      %v1857 = vadd.f32 %v1768, %v1856
      %1858 = vmatmul.bf16.gmra.mxu0 %v722
      %v1859 = vpop.f32.mrf.mxu0
      %v1860 = vadd.f32 %v1771, %v1859
      %v1861 = vpop.f32.mrf.mxu0
      %v1862 = vadd.f32 %v1773, %v1861
      %1863 = vdwg.mxu0
      %1864 = vmatpush.bf16.msra.mxu0 %v1241
      %1865 = vmatpush.bf16.msra.mxu0 %v1240
      %1866 = vmatpush.bf16.msra.mxu0 %v1239
      %1867 = vmatpush.bf16.msra.mxu0 %v1238
      %1868 = vmatpush.bf16.msra.mxu0 %v1237
      %1869 = vmatpush.bf16.msra.mxu0 %v1236
      %1870 = vmatpush.bf16.msra.mxu0 %v1235
      %1871 = vmatpush.bf16.msra.mxu0 %v1234
      %1872 = vmatmul.bf16.gmra.mxu0 %v346
      %v1873 = vpop.f32.mrf.mxu0
      %v1874 = vadd.f32 %v1785, %v1873
      %v1875 = vpop.f32.mrf.mxu0
      %v1876 = vadd.f32 %v1787, %v1875
      %1877 = vmatmul.bf16.gmra.mxu0 %v347
      %v1878 = vpop.f32.mrf.mxu0
      %v1879 = vadd.f32 %v1790, %v1878
      %v1880 = vpop.f32.mrf.mxu0
      %v1881 = vadd.f32 %v1792, %v1880
      %1882 = vmatmul.bf16.gmra.mxu0 %v348
      %v1883 = vpop.f32.mrf.mxu0
      %v1884 = vadd.f32 %v1795, %v1883
      %v1885 = vpop.f32.mrf.mxu0
      %v1886 = vadd.f32 %v1797, %v1885
      %1887 = vmatmul.bf16.gmra.mxu0 %v349
      %v1888 = vpop.f32.mrf.mxu0
      %v1889 = vadd.f32 %v1800, %v1888
      %v1890 = vpop.f32.mrf.mxu0
      %v1891 = vadd.f32 %v1802, %v1890
      %1892 = vmatmul.bf16.gmra.mxu0 %v350
      %v1893 = vpop.f32.mrf.mxu0
      %v1894 = vadd.f32 %v1805, %v1893
      %v1895 = vpop.f32.mrf.mxu0
      %v1896 = vadd.f32 %v1807, %v1895
      %1897 = vmatmul.bf16.gmra.mxu0 %v351
      %v1898 = vpop.f32.mrf.mxu0
      %v1899 = vadd.f32 %v1810, %v1898
      %v1900 = vpop.f32.mrf.mxu0
      %v1901 = vadd.f32 %v1812, %v1900
      %1902 = vmatmul.bf16.gmra.mxu0 %v352
      %v1903 = vpop.f32.mrf.mxu0
      %v1904 = vadd.f32 %v1815, %v1903
      %v1905 = vpop.f32.mrf.mxu0
      %v1906 = vadd.f32 %v1817, %v1905
      %1907 = vmatmul.bf16.gmra.mxu0 %v353
      %v1908 = vpop.f32.mrf.mxu0
      %v1909 = vadd.f32 %v1820, %v1908
      %v1910 = vpop.f32.mrf.mxu0
      %v1911 = vadd.f32 %v1822, %v1910
      %1912 = vmatmul.bf16.gmra.mxu0 %v354
      %v1913 = vpop.f32.mrf.mxu0
      %v1914 = vadd.f32 %v1825, %v1913
      %v1915 = vpop.f32.mrf.mxu0
      %v1916 = vadd.f32 %v1827, %v1915
      %1917 = vmatmul.bf16.gmra.mxu0 %v355
      %v1918 = vpop.f32.mrf.mxu0
      %v1919 = vadd.f32 %v1830, %v1918
      %v1920 = vpop.f32.mrf.mxu0
      %v1921 = vadd.f32 %v1832, %v1920
      %1922 = vmatmul.bf16.gmra.mxu0 %v356
      %v1923 = vpop.f32.mrf.mxu0
      %v1924 = vadd.f32 %v1835, %v1923
      %v1925 = vpop.f32.mrf.mxu0
      %v1926 = vadd.f32 %v1837, %v1925
      %1927 = vmatmul.bf16.gmra.mxu0 %v357
      %v1928 = vpop.f32.mrf.mxu0
      %v1929 = vadd.f32 %v1840, %v1928
      %v1930 = vpop.f32.mrf.mxu0
      %v1931 = vadd.f32 %v1842, %v1930
      %1932 = vmatmul.bf16.gmra.mxu0 %v358
      %v1933 = vpop.f32.mrf.mxu0
      %v1934 = vadd.f32 %v1845, %v1933
      %v1935 = vpop.f32.mrf.mxu0
      %v1936 = vadd.f32 %v1847, %v1935
      %1937 = vmatmul.bf16.gmra.mxu0 %v359
      %v1938 = vpop.f32.mrf.mxu0
      %v1939 = vadd.f32 %v1850, %v1938
      %v1940 = vpop.f32.mrf.mxu0
      %v1941 = vadd.f32 %v1852, %v1940
      %1942 = vmatmul.bf16.gmra.mxu0 %v702
      %v1943 = vpop.f32.mrf.mxu0
      %v1944 = vadd.f32 %v1855, %v1943
      %v1945 = vpop.f32.mrf.mxu0
      %v1946 = vadd.f32 %v1857, %v1945
      %1947 = vmatmul.bf16.gmra.mxu0 %v728
      %v1948 = vpop.f32.mrf.mxu0
      %v1949 = vadd.f32 %v1860, %v1948
      %v1950 = vpop.f32.mrf.mxu0
      %v1951 = vadd.f32 %v1862, %v1950
      %1952 = vdwg.mxu0
      %1953 = vmatpush.bf16.msra.mxu0 %v1249
      %1954 = vmatpush.bf16.msra.mxu0 %v1248
      %1955 = vmatpush.bf16.msra.mxu0 %v1247
      %1956 = vmatpush.bf16.msra.mxu0 %v1246
      %1957 = vmatpush.bf16.msra.mxu0 %v1245
      %1958 = vmatpush.bf16.msra.mxu0 %v1244
      %1959 = vmatpush.bf16.msra.mxu0 %v1243
      %1960 = vmatpush.bf16.msra.mxu0 %v1242
      %1961 = vmatmul.bf16.gmra.mxu0 %v460
      %v1962 = vpop.f32.mrf.mxu0
      %v1963 = vadd.f32 %v1874, %v1962
      %v1964 = vpop.f32.mrf.mxu0
      %v1965 = vadd.f32 %v1876, %v1964
      %1966 = vmatmul.bf16.gmra.mxu0 %v472
      %v1967 = vpop.f32.mrf.mxu0
      %v1968 = vadd.f32 %v1879, %v1967
      %v1969 = vpop.f32.mrf.mxu0
      %v1970 = vadd.f32 %v1881, %v1969
      %1971 = vmatmul.bf16.gmra.mxu0 %v484
      %v1972 = vpop.f32.mrf.mxu0
      %v1973 = vadd.f32 %v1884, %v1972
      %v1974 = vpop.f32.mrf.mxu0
      %v1975 = vadd.f32 %v1886, %v1974
      %1976 = vmatmul.bf16.gmra.mxu0 %v496
      %v1977 = vpop.f32.mrf.mxu0
      %v1978 = vadd.f32 %v1889, %v1977
      %v1979 = vpop.f32.mrf.mxu0
      %v1980 = vadd.f32 %v1891, %v1979
      %1981 = vmatmul.bf16.gmra.mxu0 %v508
      %v1982 = vpop.f32.mrf.mxu0
      %v1983 = vadd.f32 %v1894, %v1982
      %v1984 = vpop.f32.mrf.mxu0
      %v1985 = vadd.f32 %v1896, %v1984
      %1986 = vmatmul.bf16.gmra.mxu0 %v520
      %v1987 = vpop.f32.mrf.mxu0
      %v1988 = vadd.f32 %v1899, %v1987
      %v1989 = vpop.f32.mrf.mxu0
      %v1990 = vadd.f32 %v1901, %v1989
      %1991 = vmatmul.bf16.gmra.mxu0 %v532
      %v1992 = vpop.f32.mrf.mxu0
      %v1993 = vadd.f32 %v1904, %v1992
      %v1994 = vpop.f32.mrf.mxu0
      %v1995 = vadd.f32 %v1906, %v1994
      %1996 = vmatmul.bf16.gmra.mxu0 %v544
      %v1997 = vpop.f32.mrf.mxu0
      %v1998 = vadd.f32 %v1909, %v1997
      %v1999 = vpop.f32.mrf.mxu0
      %v2000 = vadd.f32 %v1911, %v1999
      %2001 = vmatmul.bf16.gmra.mxu0 %v556
      %v2002 = vpop.f32.mrf.mxu0
      %v2003 = vadd.f32 %v1914, %v2002
      %v2004 = vpop.f32.mrf.mxu0
      %v2005 = vadd.f32 %v1916, %v2004
      %2006 = vmatmul.bf16.gmra.mxu0 %v568
      %v2007 = vpop.f32.mrf.mxu0
      %v2008 = vadd.f32 %v1919, %v2007
      %v2009 = vpop.f32.mrf.mxu0
      %v2010 = vadd.f32 %v1921, %v2009
      %2011 = vmatmul.bf16.gmra.mxu0 %v580
      %v2012 = vpop.f32.mrf.mxu0
      %v2013 = vadd.f32 %v1924, %v2012
      %v2014 = vpop.f32.mrf.mxu0
      %v2015 = vadd.f32 %v1926, %v2014
      %2016 = vmatmul.bf16.gmra.mxu0 %v592
      %v2017 = vpop.f32.mrf.mxu0
      %v2018 = vadd.f32 %v1929, %v2017
      %v2019 = vpop.f32.mrf.mxu0
      %v2020 = vadd.f32 %v1931, %v2019
      %2021 = vmatmul.bf16.gmra.mxu0 %v604
      %v2022 = vpop.f32.mrf.mxu0
      %v2023 = vadd.f32 %v1934, %v2022
      %v2024 = vpop.f32.mrf.mxu0
      %v2025 = vadd.f32 %v1936, %v2024
      %2026 = vmatmul.bf16.gmra.mxu0 %v616
      %v2027 = vpop.f32.mrf.mxu0
      %v2028 = vadd.f32 %v1939, %v2027
      %v2029 = vpop.f32.mrf.mxu0
      %v2030 = vadd.f32 %v1941, %v2029
      %2031 = vmatmul.bf16.gmra.mxu0 %v718
      %v2032 = vpop.f32.mrf.mxu0
      %v2033 = vadd.f32 %v1944, %v2032
      %v2034 = vpop.f32.mrf.mxu0
      %v2035 = vadd.f32 %v1946, %v2034
      %2036 = vmatmul.bf16.gmra.mxu0 %v744
      %v2037 = vpop.f32.mrf.mxu0
      %v2038 = vadd.f32 %v1949, %v2037
      %v2039 = vpop.f32.mrf.mxu0
      %v2040 = vadd.f32 %v1951, %v2039
      %2041 = vdwg.mxu0
      %2042 = vmatpush.bf16.msra.mxu0 %v1257
      %2043 = vmatpush.bf16.msra.mxu0 %v1256
      %2044 = vmatpush.bf16.msra.mxu0 %v1255
      %2045 = vmatpush.bf16.msra.mxu0 %v1254
      %2046 = vmatpush.bf16.msra.mxu0 %v1253
      %2047 = vmatpush.bf16.msra.mxu0 %v1252
      %2048 = vmatpush.bf16.msra.mxu0 %v1251
      %2049 = vmatpush.bf16.msra.mxu0 %v1250
      %2050 = vmatmul.bf16.gmra.mxu0 %v642
      %v2051 = vpop.f32.mrf.mxu0
      %v2052 = vadd.f32 %v1963, %v2051
      %v2053 = vpop.f32.mrf.mxu0
      %v2054 = vadd.f32 %v1965, %v2053
      %2055 = vmatmul.bf16.gmra.mxu0 %v645
      %v2056 = vpop.f32.mrf.mxu0
      %v2057 = vadd.f32 %v1968, %v2056
      %v2058 = vpop.f32.mrf.mxu0
      %v2059 = vadd.f32 %v1970, %v2058
      %2060 = vmatmul.bf16.gmra.mxu0 %v648
      %v2061 = vpop.f32.mrf.mxu0
      %v2062 = vadd.f32 %v1973, %v2061
      %v2063 = vpop.f32.mrf.mxu0
      %v2064 = vadd.f32 %v1975, %v2063
      %2065 = vmatmul.bf16.gmra.mxu0 %v651
      %v2066 = vpop.f32.mrf.mxu0
      %v2067 = vadd.f32 %v1978, %v2066
      %v2068 = vpop.f32.mrf.mxu0
      %v2069 = vadd.f32 %v1980, %v2068
      %2070 = vmatmul.bf16.gmra.mxu0 %v654
      %v2071 = vpop.f32.mrf.mxu0
      %v2072 = vadd.f32 %v1983, %v2071
      %v2073 = vpop.f32.mrf.mxu0
      %v2074 = vadd.f32 %v1985, %v2073
      %2075 = vmatmul.bf16.gmra.mxu0 %v657
      %v2076 = vpop.f32.mrf.mxu0
      %v2077 = vadd.f32 %v1988, %v2076
      %v2078 = vpop.f32.mrf.mxu0
      %v2079 = vadd.f32 %v1990, %v2078
      %2080 = vmatmul.bf16.gmra.mxu0 %v660
      %v2081 = vpop.f32.mrf.mxu0
      %v2082 = vadd.f32 %v1993, %v2081
      %v2083 = vpop.f32.mrf.mxu0
      %v2084 = vadd.f32 %v1995, %v2083
      %2085 = vmatmul.bf16.gmra.mxu0 %v663
      %v2086 = vpop.f32.mrf.mxu0
      %v2087 = vadd.f32 %v1998, %v2086
      %v2088 = vpop.f32.mrf.mxu0
      %v2089 = vadd.f32 %v2000, %v2088
      %2090 = vmatmul.bf16.gmra.mxu0 %v666
      %v2091 = vpop.f32.mrf.mxu0
      %v2092 = vadd.f32 %v2003, %v2091
      %v2093 = vpop.f32.mrf.mxu0
      %v2094 = vadd.f32 %v2005, %v2093
      %2095 = vmatmul.bf16.gmra.mxu0 %v669
      %v2096 = vpop.f32.mrf.mxu0
      %v2097 = vadd.f32 %v2008, %v2096
      %v2098 = vpop.f32.mrf.mxu0
      %v2099 = vadd.f32 %v2010, %v2098
      %2100 = vmatmul.bf16.gmra.mxu0 %v672
      %v2101 = vpop.f32.mrf.mxu0
      %v2102 = vadd.f32 %v2013, %v2101
      %v2103 = vpop.f32.mrf.mxu0
      %v2104 = vadd.f32 %v2015, %v2103
      %2105 = vmatmul.bf16.gmra.mxu0 %v675
      %v2106 = vpop.f32.mrf.mxu0
      %v2107 = vadd.f32 %v2018, %v2106
      %v2108 = vpop.f32.mrf.mxu0
      %v2109 = vadd.f32 %v2020, %v2108
      %2110 = vmatmul.bf16.gmra.mxu0 %v678
      %v2111 = vpop.f32.mrf.mxu0
      %v2112 = vadd.f32 %v2023, %v2111
      %v2113 = vpop.f32.mrf.mxu0
      %v2114 = vadd.f32 %v2025, %v2113
      %2115 = vmatmul.bf16.gmra.mxu0 %v681
      %v2116 = vpop.f32.mrf.mxu0
      %v2117 = vadd.f32 %v2028, %v2116
      %v2118 = vpop.f32.mrf.mxu0
      %v2119 = vadd.f32 %v2030, %v2118
      %2120 = vmatmul.bf16.gmra.mxu0 %v722
      %v2121 = vpop.f32.mrf.mxu0
      %v2122 = vadd.f32 %v2033, %v2121
      %v2123 = vpop.f32.mrf.mxu0
      %v2124 = vadd.f32 %v2035, %v2123
      %2125 = vmatmul.bf16.gmra.mxu0 %v748
      %v2126 = vpop.f32.mrf.mxu0
      %v2127 = vadd.f32 %v2038, %v2126
      %v2128 = vpop.f32.mrf.mxu0
      %v2129 = vadd.f32 %v2040, %v2128
      %2130 = vdwg.mxu0
      %v2131 = vmax.f32 %v2052, 0.0
      %v2132 = vmax.f32 %v2054, 0.0
      %v2133 = vmax.f32 %v2057, 0.0
      %v2134 = vmax.f32 %v2059, 0.0
      %v2135 = vmax.f32 %v2062, 0.0
      %v2136 = vmax.f32 %v2064, 0.0
      %v2137 = vmax.f32 %v2067, 0.0
      %v2138 = vmax.f32 %v2069, 0.0
      %v2139 = vmax.f32 %v2072, 0.0
      %v2140 = vmax.f32 %v2074, 0.0
      %v2141 = vmax.f32 %v2077, 0.0
      %v2142 = vmax.f32 %v2079, 0.0
      %v2143 = vmax.f32 %v2082, 0.0
      %v2144 = vmax.f32 %v2084, 0.0
      %v2145 = vmax.f32 %v2087, 0.0
      %v2146 = vmax.f32 %v2089, 0.0
      %v2147 = vmax.f32 %v2092, 0.0
      %v2148 = vmax.f32 %v2094, 0.0
      %v2149 = vmax.f32 %v2097, 0.0
      %v2150 = vmax.f32 %v2099, 0.0
      %v2151 = vmax.f32 %v2102, 0.0
      %v2152 = vmax.f32 %v2104, 0.0
      %v2153 = vmax.f32 %v2107, 0.0
      %v2154 = vmax.f32 %v2109, 0.0
      %v2155 = vmax.f32 %v2112, 0.0
      %v2156 = vmax.f32 %v2114, 0.0
      %v2157 = vmax.f32 %v2117, 0.0
      %v2158 = vmax.f32 %v2119, 0.0
      %v2159 = vmax.f32 %v2122, 0.0
      %v2160 = vmax.f32 %v2124, 0.0
      %v2161 = vmax.f32 %v2127, 0.0
      %v2162 = vmax.f32 %v2129, 0.0
      %v2163 = vpack.c.bf16 %v2131, %v2131
      %v2164 = vpack.c.bf16 %v2132, %v2132
      %v2165 = vpack.c.bf16 %v2133, %v2133
      %v2166 = vpack.c.bf16 %v2134, %v2134
      %v2167 = vpack.c.bf16 %v2135, %v2135
      %v2168 = vpack.c.bf16 %v2136, %v2136
      %v2169 = vpack.c.bf16 %v2137, %v2137
      %v2170 = vpack.c.bf16 %v2138, %v2138
      %v2171 = vpack.c.bf16 %v2139, %v2139
      %v2172 = vpack.c.bf16 %v2140, %v2140
      %v2173 = vpack.c.bf16 %v2141, %v2141
      %v2174 = vpack.c.bf16 %v2142, %v2142
      %v2175 = vpack.c.bf16 %v2143, %v2143
      %v2176 = vpack.c.bf16 %v2144, %v2144
      %v2177 = vpack.c.bf16 %v2145, %v2145
      %v2178 = vpack.c.bf16 %v2146, %v2146
      %v2179 = vpack.c.bf16 %v2147, %v2147
      %v2180 = vpack.c.bf16 %v2148, %v2148
      %v2181 = vpack.c.bf16 %v2149, %v2149
      %v2182 = vpack.c.bf16 %v2150, %v2150
      %v2183 = vpack.c.bf16 %v2151, %v2151
      %v2184 = vpack.c.bf16 %v2152, %v2152
      %v2185 = vpack.c.bf16 %v2153, %v2153
      %v2186 = vpack.c.bf16 %v2154, %v2154
      %v2187 = vpack.c.bf16 %v2155, %v2155
      %v2188 = vpack.c.bf16 %v2156, %v2156
      %v2189 = vpack.c.bf16 %v2157, %v2157
      %v2190 = vpack.c.bf16 %v2158, %v2158
      %v2191 = vpack.c.bf16 %v2159, %v2159
      %v2192 = vpack.c.bf16 %v2160, %v2160
      %v2193 = vpack.c.bf16 %v2161, %v2161
      %v2194 = vpack.c.bf16 %v2162, %v2162
      %2195 = vst [vmem:[#allocation2] sm:$0xf] 0
      %2196 = vst [vmem:[#allocation2 + $0x4] sm:$0xf] 0
      %2197 = vst [vmem:[#allocation2 + $0x8] sm:$0x1] 0
      %s2198 = scalar_lea.vmem [#allocation2], 204
      %2199 = vst [vmem:[%s2198] sm:$0xf] 0
      %2200 = vst [vmem:[%s2198 + $0x4] sm:$0xf] 0
      %2201 = vst [vmem:[%s2198 + $0x8] sm:$0x1] 0
      %vm2202 = vcmask 1040384
      %vm2203 = vsmask.f32 256
      %vm2204 = vmand %vm2202, %vm2203
      %v2205 = vld [vmem:[#allocation2] sm:$0x1]
      %v2206 = vsel %vm2204, 0, %v2205
      %2207 = vst [vmem:[#allocation2] sm:$0x1] %v2206
      %v2208 = vld [vmem:[#allocation2 + $0xc] sm:$0x1]
      %v2209 = vsel %vm2204, 0, %v2208
      %2210 = vst [vmem:[#allocation2 + $0xc] sm:$0x1] %v2209
      %v2211 = vld [vmem:[#allocation2 + $0x18] sm:$0x1]
      %v2212 = vsel %vm2204, 0, %v2211
      %2213 = vst [vmem:[#allocation2 + $0x18] sm:$0x1] %v2212
      %v2214 = vld [vmem:[#allocation2 + $0x24] sm:$0x1]
      %v2215 = vsel %vm2204, 0, %v2214
      %2216 = vst [vmem:[#allocation2 + $0x24] sm:$0x1] %v2215
      %v2217 = vld [vmem:[#allocation2 + $0x30] sm:$0x1]
      %v2218 = vsel %vm2204, 0, %v2217
      %2219 = vst [vmem:[#allocation2 + $0x30] sm:$0x1] %v2218
      %v2220 = vld [vmem:[#allocation2 + $0x3c] sm:$0x1]
      %v2221 = vsel %vm2204, 0, %v2220
      %2222 = vst [vmem:[#allocation2 + $0x3c] sm:$0x1] %v2221
      %v2223 = vld [vmem:[#allocation2 + $0x48] sm:$0x1]
      %v2224 = vsel %vm2204, 0, %v2223
      %2225 = vst [vmem:[#allocation2 + $0x48] sm:$0x1] %v2224
      %v2226 = vld [vmem:[#allocation2 + $0x54] sm:$0x1]
      %v2227 = vsel %vm2204, 0, %v2226
      %2228 = vst [vmem:[#allocation2 + $0x54] sm:$0x1] %v2227
      %v2229 = vld [vmem:[#allocation2 + $0x60] sm:$0x1]
      %v2230 = vsel %vm2204, 0, %v2229
      %2231 = vst [vmem:[#allocation2 + $0x60] sm:$0x1] %v2230
      %v2232 = vld [vmem:[#allocation2 + $0x6c] sm:$0x1]
      %v2233 = vsel %vm2204, 0, %v2232
      %2234 = vst [vmem:[#allocation2 + $0x6c] sm:$0x1] %v2233
      %v2235 = vld [vmem:[#allocation2 + $0x78] sm:$0x1]
      %v2236 = vsel %vm2204, 0, %v2235
      %2237 = vst [vmem:[#allocation2 + $0x78] sm:$0x1] %v2236
      %v2238 = vld [vmem:[#allocation2 + $0x84] sm:$0x1]
      %v2239 = vsel %vm2204, 0, %v2238
      %2240 = vst [vmem:[#allocation2 + $0x84] sm:$0x1] %v2239
      %v2241 = vld [vmem:[#allocation2 + $0x90] sm:$0x1]
      %v2242 = vsel %vm2204, 0, %v2241
      %2243 = vst [vmem:[#allocation2 + $0x90] sm:$0x1] %v2242
      %v2244 = vld [vmem:[#allocation2 + $0x9c] sm:$0x1]
      %v2245 = vsel %vm2204, 0, %v2244
      %2246 = vst [vmem:[#allocation2 + $0x9c] sm:$0x1] %v2245
      %v2247 = vld [vmem:[#allocation2 + $0xa8] sm:$0x1]
      %v2248 = vsel %vm2204, 0, %v2247
      %2249 = vst [vmem:[#allocation2 + $0xa8] sm:$0x1] %v2248
      %v2250 = vld [vmem:[#allocation2 + $0xb4] sm:$0x1]
      %v2251 = vsel %vm2204, 0, %v2250
      %2252 = vst [vmem:[#allocation2 + $0xb4] sm:$0x1] %v2251
      %v2253 = vld [vmem:[#allocation2 + $0xc0] sm:$0x1]
      %v2254 = vsel %vm2204, 0, %v2253
      %2255 = vst [vmem:[#allocation2 + $0xc0] sm:$0x1] %v2254
      %v2256 = vld [vmem:[#allocation2 + $0xcc] sm:$0x1]
      %v2257 = vsel %vm2204, 0, %v2256
      %2258 = vst [vmem:[#allocation2 + $0xcc] sm:$0x1] %v2257
      %vm2259 = vsmask.f32 7938
      %vm2260 = vmand %vm2202, %vm2259
      %v2261 = vld [vmem:[#allocation2 + $0x8] sm:$0x1]
      %v2262 = vsel %vm2260, 0, %v2261
      %2263 = vst [vmem:[#allocation2 + $0x8] sm:$0x1] %v2262
      %v2264 = vld [vmem:[#allocation2 + $0x14] sm:$0x1]
      %v2265 = vsel %vm2260, 0, %v2264
      %2266 = vst [vmem:[#allocation2 + $0x14] sm:$0x1] %v2265
      %v2267 = vld [vmem:[#allocation2 + $0x20] sm:$0x1]
      %v2268 = vsel %vm2260, 0, %v2267
      %2269 = vst [vmem:[#allocation2 + $0x20] sm:$0x1] %v2268
      %v2270 = vld [vmem:[#allocation2 + $0x2c] sm:$0x1]
      %v2271 = vsel %vm2260, 0, %v2270
      %2272 = vst [vmem:[#allocation2 + $0x2c] sm:$0x1] %v2271
      %v2273 = vld [vmem:[#allocation2 + $0x38] sm:$0x1]
      %v2274 = vsel %vm2260, 0, %v2273
      %2275 = vst [vmem:[#allocation2 + $0x38] sm:$0x1] %v2274
      %v2276 = vld [vmem:[#allocation2 + $0x44] sm:$0x1]
      %v2277 = vsel %vm2260, 0, %v2276
      %2278 = vst [vmem:[#allocation2 + $0x44] sm:$0x1] %v2277
      %v2279 = vld [vmem:[#allocation2 + $0x50] sm:$0x1]
      %v2280 = vsel %vm2260, 0, %v2279
      %2281 = vst [vmem:[#allocation2 + $0x50] sm:$0x1] %v2280
      %v2282 = vld [vmem:[#allocation2 + $0x5c] sm:$0x1]
      %v2283 = vsel %vm2260, 0, %v2282
      %2284 = vst [vmem:[#allocation2 + $0x5c] sm:$0x1] %v2283
      %v2285 = vld [vmem:[#allocation2 + $0x68] sm:$0x1]
      %v2286 = vsel %vm2260, 0, %v2285
      %2287 = vst [vmem:[#allocation2 + $0x68] sm:$0x1] %v2286
      %v2288 = vld [vmem:[#allocation2 + $0x74] sm:$0x1]
      %v2289 = vsel %vm2260, 0, %v2288
      %2290 = vst [vmem:[#allocation2 + $0x74] sm:$0x1] %v2289
      %v2291 = vld [vmem:[#allocation2 + $0x80] sm:$0x1]
      %v2292 = vsel %vm2260, 0, %v2291
      %2293 = vst [vmem:[#allocation2 + $0x80] sm:$0x1] %v2292
      %v2294 = vld [vmem:[#allocation2 + $0x8c] sm:$0x1]
      %v2295 = vsel %vm2260, 0, %v2294
      %2296 = vst [vmem:[#allocation2 + $0x8c] sm:$0x1] %v2295
      %v2297 = vld [vmem:[#allocation2 + $0x98] sm:$0x1]
      %v2298 = vsel %vm2260, 0, %v2297
      %2299 = vst [vmem:[#allocation2 + $0x98] sm:$0x1] %v2298
      %v2300 = vld [vmem:[#allocation2 + $0xa4] sm:$0x1]
      %v2301 = vsel %vm2260, 0, %v2300
      %2302 = vst [vmem:[#allocation2 + $0xa4] sm:$0x1] %v2301
      %v2303 = vld [vmem:[#allocation2 + $0xb0] sm:$0x1]
      %v2304 = vsel %vm2260, 0, %v2303
      %2305 = vst [vmem:[#allocation2 + $0xb0] sm:$0x1] %v2304
      %v2306 = vld [vmem:[#allocation2 + $0xbc] sm:$0x1]
      %v2307 = vsel %vm2260, 0, %v2306
      %2308 = vst [vmem:[#allocation2 + $0xbc] sm:$0x1] %v2307
      %v2309 = vld [vmem:[#allocation2 + $0xc8] sm:$0x1]
      %v2310 = vsel %vm2260, 0, %v2309
      %2311 = vst [vmem:[#allocation2 + $0xc8] sm:$0x1] %v2310
      %v2312 = vld [vmem:[#allocation2 + $0xd4] sm:$0x1]
      %v2313 = vsel %vm2260, 0, %v2312
      %2314 = vst [vmem:[#allocation2 + $0xd4] sm:$0x1] %v2313
      %vm2315 = vsmask.f32 4368
      %vm2316 = vmor %vm2203, %vm2315
      %v2318 = vshrl.u32 %v2163, 16
      %v2320 = vrot.slane %v2318, 7
      %v2321 = vshll.u32 %v2163, 16
      %v2323 = vor.u32 %v2320, %v2321
      %v2324 = vrot.slane %v2320, 4
      %v2326 = vshrl.u32 %v2164, 16
      %v2328 = vrot.slane %v2326, 7
      %v2329 = vshll.u32 %v2164, 16
      %v2331 = vor.u32 %v2328, %v2329
      %v2332 = vsel %vm2316, %v2324, %v2331
      %v2333 = vrot.slane %v2328, 4
      %v2335 = vshrl.u32 %v2165, 16
      %v2337 = vrot.slane %v2335, 7
      %v2338 = vshll.u32 %v2165, 16
      %v2340 = vor.u32 %v2337, %v2338
      %v2341 = vrot.slane %v2337, 4
      %v2343 = vshrl.u32 %v2166, 16
      %v2345 = vrot.slane %v2343, 7
      %v2346 = vshll.u32 %v2166, 16
      %v2348 = vor.u32 %v2345, %v2346
      %v2349 = vsel %vm2316, %v2341, %v2348
      %v2350 = vrot.slane %v2345, 4
      %v2352 = vshrl.u32 %v2167, 16
      %v2354 = vrot.slane %v2352, 7
      %v2355 = vshll.u32 %v2167, 16
      %v2357 = vor.u32 %v2354, %v2355
      %v2358 = vrot.slane %v2354, 4
      %v2360 = vshrl.u32 %v2168, 16
      %v2362 = vrot.slane %v2360, 7
      %v2363 = vshll.u32 %v2168, 16
      %v2365 = vor.u32 %v2362, %v2363
      %v2366 = vsel %vm2316, %v2358, %v2365
      %v2367 = vrot.slane %v2362, 4
      %v2369 = vshrl.u32 %v2169, 16
      %v2371 = vrot.slane %v2369, 7
      %v2372 = vshll.u32 %v2169, 16
      %v2374 = vor.u32 %v2371, %v2372
      %v2375 = vrot.slane %v2371, 4
      %v2377 = vshrl.u32 %v2170, 16
      %v2379 = vrot.slane %v2377, 7
      %v2380 = vshll.u32 %v2170, 16
      %v2382 = vor.u32 %v2379, %v2380
      %v2383 = vsel %vm2316, %v2375, %v2382
      %v2384 = vrot.slane %v2379, 4
      %v2386 = vshrl.u32 %v2171, 16
      %v2388 = vrot.slane %v2386, 7
      %v2389 = vshll.u32 %v2171, 16
      %v2391 = vor.u32 %v2388, %v2389
      %v2392 = vrot.slane %v2388, 4
      %v2394 = vshrl.u32 %v2172, 16
      %v2396 = vrot.slane %v2394, 7
      %v2397 = vshll.u32 %v2172, 16
      %v2399 = vor.u32 %v2396, %v2397
      %v2400 = vsel %vm2316, %v2392, %v2399
      %v2401 = vrot.slane %v2396, 4
      %v2403 = vshrl.u32 %v2173, 16
      %v2405 = vrot.slane %v2403, 7
      %v2406 = vshll.u32 %v2173, 16
      %v2408 = vor.u32 %v2405, %v2406
      %v2409 = vrot.slane %v2405, 4
      %v2411 = vshrl.u32 %v2174, 16
      %v2413 = vrot.slane %v2411, 7
      %v2414 = vshll.u32 %v2174, 16
      %v2416 = vor.u32 %v2413, %v2414
      %v2417 = vsel %vm2316, %v2409, %v2416
      %v2418 = vrot.slane %v2413, 4
      %v2420 = vshrl.u32 %v2175, 16
      %v2422 = vrot.slane %v2420, 7
      %v2423 = vshll.u32 %v2175, 16
      %v2425 = vor.u32 %v2422, %v2423
      %v2426 = vrot.slane %v2422, 4
      %v2428 = vshrl.u32 %v2176, 16
      %v2430 = vrot.slane %v2428, 7
      %v2431 = vshll.u32 %v2176, 16
      %v2433 = vor.u32 %v2430, %v2431
      %v2434 = vsel %vm2316, %v2426, %v2433
      %v2435 = vrot.slane %v2430, 4
      %v2437 = vshrl.u32 %v2177, 16
      %v2439 = vrot.slane %v2437, 7
      %v2440 = vshll.u32 %v2177, 16
      %v2442 = vor.u32 %v2439, %v2440
      %v2443 = vrot.slane %v2439, 4
      %v2445 = vshrl.u32 %v2178, 16
      %v2447 = vrot.slane %v2445, 7
      %v2448 = vshll.u32 %v2178, 16
      %v2450 = vor.u32 %v2447, %v2448
      %v2451 = vsel %vm2316, %v2443, %v2450
      %v2452 = vrot.slane %v2447, 4
      %v2454 = vshrl.u32 %v2179, 16
      %v2456 = vrot.slane %v2454, 7
      %v2457 = vshll.u32 %v2179, 16
      %v2459 = vor.u32 %v2456, %v2457
      %v2460 = vrot.slane %v2456, 4
      %v2462 = vshrl.u32 %v2180, 16
      %v2464 = vrot.slane %v2462, 7
      %v2465 = vshll.u32 %v2180, 16
      %v2467 = vor.u32 %v2464, %v2465
      %v2468 = vsel %vm2316, %v2460, %v2467
      %v2469 = vrot.slane %v2464, 4
      %v2471 = vshrl.u32 %v2181, 16
      %v2473 = vrot.slane %v2471, 7
      %v2474 = vshll.u32 %v2181, 16
      %v2476 = vor.u32 %v2473, %v2474
      %v2477 = vrot.slane %v2473, 4
      %v2479 = vshrl.u32 %v2182, 16
      %v2481 = vrot.slane %v2479, 7
      %v2482 = vshll.u32 %v2182, 16
      %v2484 = vor.u32 %v2481, %v2482
      %v2485 = vsel %vm2316, %v2477, %v2484
      %v2486 = vrot.slane %v2481, 4
      %v2488 = vshrl.u32 %v2183, 16
      %v2490 = vrot.slane %v2488, 7
      %v2491 = vshll.u32 %v2183, 16
      %v2493 = vor.u32 %v2490, %v2491
      %v2494 = vrot.slane %v2490, 4
      %v2496 = vshrl.u32 %v2184, 16
      %v2498 = vrot.slane %v2496, 7
      %v2499 = vshll.u32 %v2184, 16
      %v2501 = vor.u32 %v2498, %v2499
      %v2502 = vsel %vm2316, %v2494, %v2501
      %v2503 = vrot.slane %v2498, 4
      %v2505 = vshrl.u32 %v2185, 16
      %v2507 = vrot.slane %v2505, 7
      %v2508 = vshll.u32 %v2185, 16
      %v2510 = vor.u32 %v2507, %v2508
      %v2511 = vrot.slane %v2507, 4
      %v2513 = vshrl.u32 %v2186, 16
      %v2515 = vrot.slane %v2513, 7
      %v2516 = vshll.u32 %v2186, 16
      %v2518 = vor.u32 %v2515, %v2516
      %v2519 = vsel %vm2316, %v2511, %v2518
      %v2520 = vrot.slane %v2515, 4
      %v2522 = vshrl.u32 %v2187, 16
      %v2524 = vrot.slane %v2522, 7
      %v2525 = vshll.u32 %v2187, 16
      %v2527 = vor.u32 %v2524, %v2525
      %v2528 = vrot.slane %v2524, 4
      %v2530 = vshrl.u32 %v2188, 16
      %v2532 = vrot.slane %v2530, 7
      %v2533 = vshll.u32 %v2188, 16
      %v2535 = vor.u32 %v2532, %v2533
      %v2536 = vsel %vm2316, %v2528, %v2535
      %v2537 = vrot.slane %v2532, 4
      %v2539 = vshrl.u32 %v2189, 16
      %v2541 = vrot.slane %v2539, 7
      %v2542 = vshll.u32 %v2189, 16
      %v2544 = vor.u32 %v2541, %v2542
      %v2545 = vrot.slane %v2541, 4
      %v2547 = vshrl.u32 %v2190, 16
      %v2549 = vrot.slane %v2547, 7
      %v2550 = vshll.u32 %v2190, 16
      %v2552 = vor.u32 %v2549, %v2550
      %v2553 = vsel %vm2316, %v2545, %v2552
      %v2554 = vrot.slane %v2549, 4
      %v2556 = vshrl.u32 %v2191, 16
      %v2558 = vrot.slane %v2556, 7
      %v2559 = vshll.u32 %v2191, 16
      %v2561 = vor.u32 %v2558, %v2559
      %v2562 = vrot.slane %v2558, 4
      %v2564 = vshrl.u32 %v2192, 16
      %v2566 = vrot.slane %v2564, 7
      %v2567 = vshll.u32 %v2192, 16
      %v2569 = vor.u32 %v2566, %v2567
      %v2570 = vsel %vm2316, %v2562, %v2569
      %v2571 = vrot.slane %v2566, 4
      %v2573 = vshrl.u32 %v2193, 16
      %v2575 = vrot.slane %v2573, 7
      %v2576 = vshll.u32 %v2193, 16
      %v2578 = vor.u32 %v2575, %v2576
      %v2579 = vrot.slane %v2575, 4
      %v2581 = vshrl.u32 %v2194, 16
      %v2583 = vrot.slane %v2581, 7
      %v2584 = vshll.u32 %v2194, 16
      %v2586 = vor.u32 %v2583, %v2584
      %v2587 = vsel %vm2316, %v2579, %v2586
      %v2588 = vrot.slane %v2583, 4
      %s2637 = scalar_lea.vmem [#allocation2], 12
      %vm2638 = vcmask 1043456
      %vm2639 = vmand %vm2638, %vm2259
      %v2640 = vld [vmem:[%s2637] sm:$0xf]
      %v2641 = vsel %vm2639, %v2323, %v2640
      %2642 = vst [vmem:[%s2637] sm:$0xf] %v2641
      %2643 = vst [vmem:[%s2637 + $0x4] sm:$0xf] %v2332
      %v2644 = vld [vmem:[%s2637 + $0x8] sm:$0x1]
      %v2645 = vsel %vm2204, %v2333, %v2644
      %2646 = vst [vmem:[%s2637 + $0x8] sm:$0x1] %v2645
      %v2647 = vld [vmem:[%s2637 + $0xc] sm:$0xf]
      %v2648 = vsel %vm2639, %v2340, %v2647
      %2649 = vst [vmem:[%s2637 + $0xc] sm:$0xf] %v2648
      %2650 = vst [vmem:[%s2637 + $0x10] sm:$0xf] %v2349
      %v2651 = vld [vmem:[%s2637 + $0x14] sm:$0x1]
      %v2652 = vsel %vm2204, %v2350, %v2651
      %2653 = vst [vmem:[%s2637 + $0x14] sm:$0x1] %v2652
      %v2654 = vld [vmem:[%s2637 + $0x18] sm:$0xf]
      %v2655 = vsel %vm2639, %v2357, %v2654
      %2656 = vst [vmem:[%s2637 + $0x18] sm:$0xf] %v2655
      %2657 = vst [vmem:[%s2637 + $0x1c] sm:$0xf] %v2366
      %v2658 = vld [vmem:[%s2637 + $0x20] sm:$0x1]
      %v2659 = vsel %vm2204, %v2367, %v2658
      %2660 = vst [vmem:[%s2637 + $0x20] sm:$0x1] %v2659
      %v2661 = vld [vmem:[%s2637 + $0x24] sm:$0xf]
      %v2662 = vsel %vm2639, %v2374, %v2661
      %2663 = vst [vmem:[%s2637 + $0x24] sm:$0xf] %v2662
      %2664 = vst [vmem:[%s2637 + $0x28] sm:$0xf] %v2383
      %v2665 = vld [vmem:[%s2637 + $0x2c] sm:$0x1]
      %v2666 = vsel %vm2204, %v2384, %v2665
      %2667 = vst [vmem:[%s2637 + $0x2c] sm:$0x1] %v2666
      %v2668 = vld [vmem:[%s2637 + $0x30] sm:$0xf]
      %v2669 = vsel %vm2639, %v2391, %v2668
      %2670 = vst [vmem:[%s2637 + $0x30] sm:$0xf] %v2669
      %2671 = vst [vmem:[%s2637 + $0x34] sm:$0xf] %v2400
      %v2672 = vld [vmem:[%s2637 + $0x38] sm:$0x1]
      %v2673 = vsel %vm2204, %v2401, %v2672
      %2674 = vst [vmem:[%s2637 + $0x38] sm:$0x1] %v2673
      %v2675 = vld [vmem:[%s2637 + $0x3c] sm:$0xf]
      %v2676 = vsel %vm2639, %v2408, %v2675
      %2677 = vst [vmem:[%s2637 + $0x3c] sm:$0xf] %v2676
      %2678 = vst [vmem:[%s2637 + $0x40] sm:$0xf] %v2417
      %v2679 = vld [vmem:[%s2637 + $0x44] sm:$0x1]
      %v2680 = vsel %vm2204, %v2418, %v2679
      %2681 = vst [vmem:[%s2637 + $0x44] sm:$0x1] %v2680
      %v2682 = vld [vmem:[%s2637 + $0x48] sm:$0xf]
      %v2683 = vsel %vm2639, %v2425, %v2682
      %2684 = vst [vmem:[%s2637 + $0x48] sm:$0xf] %v2683
      %2685 = vst [vmem:[%s2637 + $0x4c] sm:$0xf] %v2434
      %v2686 = vld [vmem:[%s2637 + $0x50] sm:$0x1]
      %v2687 = vsel %vm2204, %v2435, %v2686
      %2688 = vst [vmem:[%s2637 + $0x50] sm:$0x1] %v2687
      %v2689 = vld [vmem:[%s2637 + $0x54] sm:$0xf]
      %v2690 = vsel %vm2639, %v2442, %v2689
      %2691 = vst [vmem:[%s2637 + $0x54] sm:$0xf] %v2690
      %2692 = vst [vmem:[%s2637 + $0x58] sm:$0xf] %v2451
      %v2693 = vld [vmem:[%s2637 + $0x5c] sm:$0x1]
      %v2694 = vsel %vm2204, %v2452, %v2693
      %2695 = vst [vmem:[%s2637 + $0x5c] sm:$0x1] %v2694
      %v2696 = vld [vmem:[%s2637 + $0x60] sm:$0xf]
      %v2697 = vsel %vm2639, %v2459, %v2696
      %2698 = vst [vmem:[%s2637 + $0x60] sm:$0xf] %v2697
      %2699 = vst [vmem:[%s2637 + $0x64] sm:$0xf] %v2468
      %v2700 = vld [vmem:[%s2637 + $0x68] sm:$0x1]
      %v2701 = vsel %vm2204, %v2469, %v2700
      %2702 = vst [vmem:[%s2637 + $0x68] sm:$0x1] %v2701
      %v2703 = vld [vmem:[%s2637 + $0x6c] sm:$0xf]
      %v2704 = vsel %vm2639, %v2476, %v2703
      %2705 = vst [vmem:[%s2637 + $0x6c] sm:$0xf] %v2704
      %2706 = vst [vmem:[%s2637 + $0x70] sm:$0xf] %v2485
      %v2707 = vld [vmem:[%s2637 + $0x74] sm:$0x1]
      %v2708 = vsel %vm2204, %v2486, %v2707
      %2709 = vst [vmem:[%s2637 + $0x74] sm:$0x1] %v2708
      %v2710 = vld [vmem:[%s2637 + $0x78] sm:$0xf]
      %v2711 = vsel %vm2639, %v2493, %v2710
      %2712 = vst [vmem:[%s2637 + $0x78] sm:$0xf] %v2711
      %2713 = vst [vmem:[%s2637 + $0x7c] sm:$0xf] %v2502
      %v2714 = vld [vmem:[%s2637 + $0x80] sm:$0x1]
      %v2715 = vsel %vm2204, %v2503, %v2714
      %2716 = vst [vmem:[%s2637 + $0x80] sm:$0x1] %v2715
      %v2717 = vld [vmem:[%s2637 + $0x84] sm:$0xf]
      %v2718 = vsel %vm2639, %v2510, %v2717
      %2719 = vst [vmem:[%s2637 + $0x84] sm:$0xf] %v2718
      %2720 = vst [vmem:[%s2637 + $0x88] sm:$0xf] %v2519
      %v2721 = vld [vmem:[%s2637 + $0x8c] sm:$0x1]
      %v2722 = vsel %vm2204, %v2520, %v2721
      %2723 = vst [vmem:[%s2637 + $0x8c] sm:$0x1] %v2722
      %v2724 = vld [vmem:[%s2637 + $0x90] sm:$0xf]
      %v2725 = vsel %vm2639, %v2527, %v2724
      %2726 = vst [vmem:[%s2637 + $0x90] sm:$0xf] %v2725
      %2727 = vst [vmem:[%s2637 + $0x94] sm:$0xf] %v2536
      %v2728 = vld [vmem:[%s2637 + $0x98] sm:$0x1]
      %v2729 = vsel %vm2204, %v2537, %v2728
      %2730 = vst [vmem:[%s2637 + $0x98] sm:$0x1] %v2729
      %v2731 = vld [vmem:[%s2637 + $0x9c] sm:$0xf]
      %v2732 = vsel %vm2639, %v2544, %v2731
      %2733 = vst [vmem:[%s2637 + $0x9c] sm:$0xf] %v2732
      %2734 = vst [vmem:[%s2637 + $0xa0] sm:$0xf] %v2553
      %v2735 = vld [vmem:[%s2637 + $0xa4] sm:$0x1]
      %v2736 = vsel %vm2204, %v2554, %v2735
      %2737 = vst [vmem:[%s2637 + $0xa4] sm:$0x1] %v2736
      %v2738 = vld [vmem:[%s2637 + $0xa8] sm:$0xf]
      %v2739 = vsel %vm2639, %v2561, %v2738
      %2740 = vst [vmem:[%s2637 + $0xa8] sm:$0xf] %v2739
      %2741 = vst [vmem:[%s2637 + $0xac] sm:$0xf] %v2570
      %v2742 = vld [vmem:[%s2637 + $0xb0] sm:$0x1]
      %v2743 = vsel %vm2204, %v2571, %v2742
      %2744 = vst [vmem:[%s2637 + $0xb0] sm:$0x1] %v2743
      %v2745 = vld [vmem:[%s2637 + $0xb4] sm:$0xf]
      %v2746 = vsel %vm2639, %v2578, %v2745
      %2747 = vst [vmem:[%s2637 + $0xb4] sm:$0xf] %v2746
      %2748 = vst [vmem:[%s2637 + $0xb8] sm:$0xf] %v2587
      %v2749 = vld [vmem:[%s2637 + $0xbc] sm:$0x1]
      %v2750 = vsel %vm2204, %v2588, %v2749
      %2751 = vst [vmem:[%s2637 + $0xbc] sm:$0x1] %v2750
      %v2752 = vld [vmem:[#allocation2] sm:$0xf]
      %v2753 = vld [vmem:[#allocation2 + $0x4] sm:$0xf]
      %v2754 = vld [vmem:[#allocation2 + $0x8] sm:$0x1]
      %v2755 = vld [vmem:[#allocation2 + $0xc] sm:$0xf]
      %v2756 = vld [vmem:[#allocation2 + $0x10] sm:$0xf]
      %v2757 = vld [vmem:[#allocation2 + $0x14] sm:$0x1]
      %v2758 = vld [vmem:[#allocation2 + $0x18] sm:$0xf]
      %v2759 = vld [vmem:[#allocation2 + $0x1c] sm:$0xf]
      %v2760 = vld [vmem:[#allocation2 + $0x20] sm:$0x1]
      %v2761 = vld [vmem:[#allocation2 + $0x24] sm:$0xf]
      %v2762 = vld [vmem:[#allocation2 + $0x28] sm:$0xf]
      %v2763 = vld [vmem:[#allocation2 + $0x2c] sm:$0x1]
      %v2764 = vld [vmem:[#allocation2 + $0x30] sm:$0xf]
      %v2765 = vld [vmem:[#allocation2 + $0x34] sm:$0xf]
      %v2766 = vld [vmem:[#allocation2 + $0x38] sm:$0x1]
      %v2767 = vld [vmem:[#allocation2 + $0x3c] sm:$0xf]
      %v2768 = vld [vmem:[#allocation2 + $0x40] sm:$0xf]
      %v2769 = vld [vmem:[#allocation2 + $0x44] sm:$0x1]
      %v2770 = vld [vmem:[#allocation2 + $0x48] sm:$0xf]
      %v2771 = vld [vmem:[#allocation2 + $0x4c] sm:$0xf]
      %v2772 = vld [vmem:[#allocation2 + $0x50] sm:$0x1]
      %v2773 = vld [vmem:[#allocation2 + $0x54] sm:$0xf]
      %v2774 = vld [vmem:[#allocation2 + $0x58] sm:$0xf]
      %v2775 = vld [vmem:[#allocation2 + $0x5c] sm:$0x1]
      %v2776 = vld [vmem:[#allocation2 + $0x60] sm:$0xf]
      %v2777 = vld [vmem:[#allocation2 + $0x64] sm:$0xf]
      %v2778 = vld [vmem:[#allocation2 + $0x68] sm:$0x1]
      %v2779 = vld [vmem:[#allocation2 + $0x6c] sm:$0xf]
      %v2780 = vld [vmem:[#allocation2 + $0x70] sm:$0xf]
      %v2781 = vld [vmem:[#allocation2 + $0x74] sm:$0x1]
      %v2782 = vld [vmem:[#allocation2 + $0x78] sm:$0xf]
      %v2783 = vld [vmem:[#allocation2 + $0x7c] sm:$0xf]
      %v2784 = vld [vmem:[#allocation2 + $0x80] sm:$0x1]
      %v2785 = vld [vmem:[#allocation2 + $0x84] sm:$0xf]
      %v2786 = vld [vmem:[#allocation2 + $0x88] sm:$0xf]
      %v2787 = vld [vmem:[#allocation2 + $0x8c] sm:$0x1]
      %v2788 = vld [vmem:[#allocation2 + $0x90] sm:$0xf]
      %v2789 = vld [vmem:[#allocation2 + $0x94] sm:$0xf]
      %v2790 = vld [vmem:[#allocation2 + $0x98] sm:$0x1]
      %v2791 = vld [vmem:[#allocation2 + $0x9c] sm:$0xf]
      %v2792 = vld [vmem:[#allocation2 + $0xa0] sm:$0xf]
      %v2793 = vld [vmem:[#allocation2 + $0xa4] sm:$0x1]
      %v2794 = vld [vmem:[#allocation2 + $0xa8] sm:$0xf]
      %v2795 = vld [vmem:[#allocation2 + $0xac] sm:$0xf]
      %v2796 = vld [vmem:[#allocation2 + $0xb0] sm:$0x1]
      %v2797 = vld [vmem:[#allocation2 + $0xb4] sm:$0xf]
      %v2798 = vld [vmem:[#allocation2 + $0xb8] sm:$0xf]
      %v2799 = vld [vmem:[#allocation2 + $0xbc] sm:$0x1]
      %v2800 = vld [vmem:[#allocation2 + $0xc0] sm:$0xf]
      %v2801 = vld [vmem:[#allocation2 + $0xc4] sm:$0xf]
      %v2802 = vld [vmem:[#allocation2 + $0xc8] sm:$0x1]
      %v2803 = vld [vmem:[#allocation2 + $0xcc] sm:$0xf]
      %v2804 = vld [vmem:[#allocation2 + $0xd0] sm:$0xf]
      %v2805 = vld [vmem:[#allocation2 + $0xd4] sm:$0x1]
      %v2838 = vunpack.c.l.b16 %v2752
      %v2839 = vunpack.c.l.b16 %v2753
      %v2840 = vunpack.c.l.b16 %v2755
      %v2841 = vunpack.c.l.b16 %v2756
      %v2842 = vunpack.c.l.b16 %v2758
      %v2843 = vunpack.c.l.b16 %v2759
      %v2844 = vunpack.c.l.b16 %v2761
      %v2845 = vunpack.c.l.b16 %v2762
      %v2846 = vunpack.c.l.b16 %v2764
      %v2847 = vunpack.c.l.b16 %v2765
      %v2848 = vunpack.c.l.b16 %v2767
      %v2849 = vunpack.c.l.b16 %v2768
      %v2850 = vunpack.c.l.b16 %v2770
      %v2851 = vunpack.c.l.b16 %v2771
      %v2852 = vunpack.c.l.b16 %v2773
      %v2853 = vunpack.c.l.b16 %v2774
      %v2854 = vunpack.c.l.b16 %v2776
      %v2855 = vunpack.c.l.b16 %v2777
      %v2856 = vunpack.c.l.b16 %v2779
      %v2857 = vunpack.c.l.b16 %v2780
      %v2858 = vunpack.c.l.b16 %v2782
      %v2859 = vunpack.c.l.b16 %v2783
      %v2860 = vunpack.c.l.b16 %v2785
      %v2861 = vunpack.c.l.b16 %v2786
      %v2862 = vunpack.c.l.b16 %v2788
      %v2863 = vunpack.c.l.b16 %v2789
      %v2864 = vunpack.c.l.b16 %v2791
      %v2865 = vunpack.c.l.b16 %v2792
      %v2866 = vunpack.c.l.b16 %v2794
      %v2867 = vunpack.c.l.b16 %v2795
      %v2868 = vunpack.c.l.b16 %v2797
      %v2869 = vunpack.c.l.b16 %v2798
      %v2870 = vpack.c.b16 %v2839, %v2838
      %v2871 = vpack.c.b16 %v2841, %v2840
      %v2872 = vpack.c.b16 %v2843, %v2842
      %v2873 = vpack.c.b16 %v2845, %v2844
      %v2874 = vpack.c.b16 %v2847, %v2846
      %v2875 = vpack.c.b16 %v2849, %v2848
      %v2876 = vpack.c.b16 %v2851, %v2850
      %v2877 = vpack.c.b16 %v2853, %v2852
      %v2878 = vpack.c.b16 %v2855, %v2854
      %v2879 = vpack.c.b16 %v2857, %v2856
      %v2880 = vpack.c.b16 %v2859, %v2858
      %v2881 = vpack.c.b16 %v2861, %v2860
      %v2882 = vpack.c.b16 %v2863, %v2862
      %v2883 = vpack.c.b16 %v2865, %v2864
      %v2884 = vpack.c.b16 %v2867, %v2866
      %v2885 = vpack.c.b16 %v2869, %v2868
      %v2918 = vunpack.c.l.b16 %v2754
      %v2919 = vunpack.c.l.b16 %v2757
      %v2920 = vunpack.c.l.b16 %v2760
      %v2921 = vunpack.c.l.b16 %v2763
      %v2922 = vunpack.c.l.b16 %v2766
      %v2923 = vunpack.c.l.b16 %v2769
      %v2924 = vunpack.c.l.b16 %v2772
      %v2925 = vunpack.c.l.b16 %v2775
      %v2926 = vunpack.c.l.b16 %v2778
      %v2927 = vunpack.c.l.b16 %v2781
      %v2928 = vunpack.c.l.b16 %v2784
      %v2929 = vunpack.c.l.b16 %v2787
      %v2930 = vunpack.c.l.b16 %v2790
      %v2931 = vunpack.c.l.b16 %v2793
      %v2932 = vunpack.c.l.b16 %v2796
      %v2933 = vunpack.c.l.b16 %v2799
      %v2934 = vpack.c.b16 %v2918, %v2918
      %v2935 = vpack.c.b16 %v2919, %v2919
      %v2936 = vpack.c.b16 %v2920, %v2920
      %v2937 = vpack.c.b16 %v2921, %v2921
      %v2938 = vpack.c.b16 %v2922, %v2922
      %v2939 = vpack.c.b16 %v2923, %v2923
      %v2940 = vpack.c.b16 %v2924, %v2924
      %v2941 = vpack.c.b16 %v2925, %v2925
      %v2942 = vpack.c.b16 %v2926, %v2926
      %v2943 = vpack.c.b16 %v2927, %v2927
      %v2944 = vpack.c.b16 %v2928, %v2928
      %v2945 = vpack.c.b16 %v2929, %v2929
      %v2946 = vpack.c.b16 %v2930, %v2930
      %v2947 = vpack.c.b16 %v2931, %v2931
      %v2948 = vpack.c.b16 %v2932, %v2932
      %v2949 = vpack.c.b16 %v2933, %v2933
      %v2951 = vshrl.u32 %v2870, 16
      %v2953 = vshll.u32 %v2870, 16
      %v2955 = vrot.slane %v2953, 1
      %v2956 = vor.u32 %v2951, %v2955
      %v2958 = vshll.u32 %v2934, 16
      %v2960 = vrot.slane %v2958, 1
      %v2961 = vsel %vm424, %v2956, %v2960
      %v2963 = vshrl.u32 %v2871, 16
      %v2965 = vshll.u32 %v2871, 16
      %v2967 = vrot.slane %v2965, 1
      %v2968 = vor.u32 %v2963, %v2967
      %v2970 = vshll.u32 %v2935, 16
      %v2972 = vrot.slane %v2970, 1
      %v2973 = vsel %vm424, %v2968, %v2972
      %v2975 = vshrl.u32 %v2872, 16
      %v2977 = vshll.u32 %v2872, 16
      %v2979 = vrot.slane %v2977, 1
      %v2980 = vor.u32 %v2975, %v2979
      %v2982 = vshll.u32 %v2936, 16
      %v2984 = vrot.slane %v2982, 1
      %v2985 = vsel %vm424, %v2980, %v2984
      %v2987 = vshrl.u32 %v2873, 16
      %v2989 = vshll.u32 %v2873, 16
      %v2991 = vrot.slane %v2989, 1
      %v2992 = vor.u32 %v2987, %v2991
      %v2994 = vshll.u32 %v2937, 16
      %v2996 = vrot.slane %v2994, 1
      %v2997 = vsel %vm424, %v2992, %v2996
      %v2999 = vshrl.u32 %v2874, 16
      %v3001 = vshll.u32 %v2874, 16
      %v3003 = vrot.slane %v3001, 1
      %v3004 = vor.u32 %v2999, %v3003
      %v3006 = vshll.u32 %v2938, 16
      %v3008 = vrot.slane %v3006, 1
      %v3009 = vsel %vm424, %v3004, %v3008
      %v3011 = vshrl.u32 %v2875, 16
      %v3013 = vshll.u32 %v2875, 16
      %v3015 = vrot.slane %v3013, 1
      %v3016 = vor.u32 %v3011, %v3015
      %v3018 = vshll.u32 %v2939, 16
      %v3020 = vrot.slane %v3018, 1
      %v3021 = vsel %vm424, %v3016, %v3020
      %v3023 = vshrl.u32 %v2876, 16
      %v3025 = vshll.u32 %v2876, 16
      %v3027 = vrot.slane %v3025, 1
      %v3028 = vor.u32 %v3023, %v3027
      %v3030 = vshll.u32 %v2940, 16
      %v3032 = vrot.slane %v3030, 1
      %v3033 = vsel %vm424, %v3028, %v3032
      %v3035 = vshrl.u32 %v2877, 16
      %v3037 = vshll.u32 %v2877, 16
      %v3039 = vrot.slane %v3037, 1
      %v3040 = vor.u32 %v3035, %v3039
      %v3042 = vshll.u32 %v2941, 16
      %v3044 = vrot.slane %v3042, 1
      %v3045 = vsel %vm424, %v3040, %v3044
      %v3047 = vshrl.u32 %v2878, 16
      %v3049 = vshll.u32 %v2878, 16
      %v3051 = vrot.slane %v3049, 1
      %v3052 = vor.u32 %v3047, %v3051
      %v3054 = vshll.u32 %v2942, 16
      %v3056 = vrot.slane %v3054, 1
      %v3057 = vsel %vm424, %v3052, %v3056
      %v3059 = vshrl.u32 %v2879, 16
      %v3061 = vshll.u32 %v2879, 16
      %v3063 = vrot.slane %v3061, 1
      %v3064 = vor.u32 %v3059, %v3063
      %v3066 = vshll.u32 %v2943, 16
      %v3068 = vrot.slane %v3066, 1
      %v3069 = vsel %vm424, %v3064, %v3068
      %v3071 = vshrl.u32 %v2880, 16
      %v3073 = vshll.u32 %v2880, 16
      %v3075 = vrot.slane %v3073, 1
      %v3076 = vor.u32 %v3071, %v3075
      %v3078 = vshll.u32 %v2944, 16
      %v3080 = vrot.slane %v3078, 1
      %v3081 = vsel %vm424, %v3076, %v3080
      %v3083 = vshrl.u32 %v2881, 16
      %v3085 = vshll.u32 %v2881, 16
      %v3087 = vrot.slane %v3085, 1
      %v3088 = vor.u32 %v3083, %v3087
      %v3090 = vshll.u32 %v2945, 16
      %v3092 = vrot.slane %v3090, 1
      %v3093 = vsel %vm424, %v3088, %v3092
      %v3095 = vshrl.u32 %v2882, 16
      %v3097 = vshll.u32 %v2882, 16
      %v3099 = vrot.slane %v3097, 1
      %v3100 = vor.u32 %v3095, %v3099
      %v3102 = vshll.u32 %v2946, 16
      %v3104 = vrot.slane %v3102, 1
      %v3105 = vsel %vm424, %v3100, %v3104
      %v3107 = vshrl.u32 %v2883, 16
      %v3109 = vshll.u32 %v2883, 16
      %v3111 = vrot.slane %v3109, 1
      %v3112 = vor.u32 %v3107, %v3111
      %v3114 = vshll.u32 %v2947, 16
      %v3116 = vrot.slane %v3114, 1
      %v3117 = vsel %vm424, %v3112, %v3116
      %v3119 = vshrl.u32 %v2884, 16
      %v3121 = vshll.u32 %v2884, 16
      %v3123 = vrot.slane %v3121, 1
      %v3124 = vor.u32 %v3119, %v3123
      %v3126 = vshll.u32 %v2948, 16
      %v3128 = vrot.slane %v3126, 1
      %v3129 = vsel %vm424, %v3124, %v3128
      %v3131 = vshrl.u32 %v2885, 16
      %v3133 = vshll.u32 %v2885, 16
      %v3135 = vrot.slane %v3133, 1
      %v3136 = vor.u32 %v3131, %v3135
      %v3138 = vshll.u32 %v2949, 16
      %v3140 = vrot.slane %v3138, 1
      %v3141 = vsel %vm424, %v3136, %v3140
      %v3158 = vrot.slane %v2870, 1
      %v3159 = vrot.slane %v2934, 1
      %v3160 = vsel %vm633, %v3158, %v3159
      %v3161 = vrot.slane %v2871, 1
      %v3162 = vrot.slane %v2935, 1
      %v3163 = vsel %vm633, %v3161, %v3162
      %v3164 = vrot.slane %v2872, 1
      %v3165 = vrot.slane %v2936, 1
      %v3166 = vsel %vm633, %v3164, %v3165
      %v3167 = vrot.slane %v2873, 1
      %v3168 = vrot.slane %v2937, 1
      %v3169 = vsel %vm633, %v3167, %v3168
      %v3170 = vrot.slane %v2874, 1
      %v3171 = vrot.slane %v2938, 1
      %v3172 = vsel %vm633, %v3170, %v3171
      %v3173 = vrot.slane %v2875, 1
      %v3174 = vrot.slane %v2939, 1
      %v3175 = vsel %vm633, %v3173, %v3174
      %v3176 = vrot.slane %v2876, 1
      %v3177 = vrot.slane %v2940, 1
      %v3178 = vsel %vm633, %v3176, %v3177
      %v3179 = vrot.slane %v2877, 1
      %v3180 = vrot.slane %v2941, 1
      %v3181 = vsel %vm633, %v3179, %v3180
      %v3182 = vrot.slane %v2878, 1
      %v3183 = vrot.slane %v2942, 1
      %v3184 = vsel %vm633, %v3182, %v3183
      %v3185 = vrot.slane %v2879, 1
      %v3186 = vrot.slane %v2943, 1
      %v3187 = vsel %vm633, %v3185, %v3186
      %v3188 = vrot.slane %v2880, 1
      %v3189 = vrot.slane %v2944, 1
      %v3190 = vsel %vm633, %v3188, %v3189
      %v3191 = vrot.slane %v2881, 1
      %v3192 = vrot.slane %v2945, 1
      %v3193 = vsel %vm633, %v3191, %v3192
      %v3194 = vrot.slane %v2882, 1
      %v3195 = vrot.slane %v2946, 1
      %v3196 = vsel %vm633, %v3194, %v3195
      %v3197 = vrot.slane %v2883, 1
      %v3198 = vrot.slane %v2947, 1
      %v3199 = vsel %vm633, %v3197, %v3198
      %v3200 = vrot.slane %v2884, 1
      %v3201 = vrot.slane %v2948, 1
      %v3202 = vsel %vm633, %v3200, %v3201
      %v3203 = vrot.slane %v2885, 1
      %v3204 = vrot.slane %v2949, 1
      %v3205 = vsel %vm633, %v3203, %v3204
      %v3224 = vunpack.c.l.b16 %v2800
      %v3225 = vunpack.c.l.b16 %v2801
      %v3226 = vpack.c.b16 %v3225, %v3224
      %v3229 = vunpack.c.l.b16 %v2802
      %v3230 = vpack.c.b16 %v3229, %v3229
      %v3232 = vshrl.u32 %v3226, 16
      %v3234 = vshll.u32 %v3226, 16
      %v3236 = vrot.slane %v3234, 1
      %v3237 = vor.u32 %v3232, %v3236
      %v3239 = vshll.u32 %v3230, 16
      %v3241 = vrot.slane %v3239, 1
      %v3242 = vsel %vm424, %v3237, %v3241
      %v3244 = vrot.slane %v3226, 1
      %v3245 = vrot.slane %v3230, 1
      %v3246 = vsel %vm633, %v3244, %v3245
      %v3250 = vunpack.c.l.b16 %v2803
      %v3251 = vunpack.c.l.b16 %v2804
      %v3252 = vpack.c.b16 %v3251, %v3250
      %v3255 = vunpack.c.l.b16 %v2805
      %v3256 = vpack.c.b16 %v3255, %v3255
      %v3258 = vshrl.u32 %v3252, 16
      %v3260 = vshll.u32 %v3252, 16
      %v3262 = vrot.slane %v3260, 1
      %v3263 = vor.u32 %v3258, %v3262
      %v3265 = vshll.u32 %v3256, 16
      %v3267 = vrot.slane %v3265, 1
      %v3268 = vsel %vm424, %v3263, %v3267
      %v3270 = vrot.slane %v3252, 1
      %v3271 = vrot.slane %v3256, 1
      %v3272 = vsel %vm633, %v3270, %v3271
      %v3274 = vld [vmem:[%s2] sm:$0xf]
      %v3275 = vld [vmem:[%s2 + $0x4] sm:$0xf]
      %v3276 = vld [vmem:[%s2 + $0x8] sm:$0xf]
      %v3277 = vld [vmem:[%s2 + $0xc] sm:$0xf]
      %v3278 = vld [vmem:[%s2 + $0x10] sm:$0xf]
      %v3279 = vld [vmem:[%s2 + $0x14] sm:$0xf]
      %v3280 = vld [vmem:[%s2 + $0x18] sm:$0xf]
      %v3281 = vld [vmem:[%s2 + $0x1c] sm:$0xf]
      %v3282 = vld [vmem:[%s2 + $0x20] sm:$0xf]
      %v3283 = vld [vmem:[%s2 + $0x24] sm:$0xf]
      %v3284 = vld [vmem:[%s2 + $0x28] sm:$0xf]
      %v3285 = vld [vmem:[%s2 + $0x2c] sm:$0xf]
      %v3286 = vld [vmem:[%s2 + $0x30] sm:$0xf]
      %v3287 = vld [vmem:[%s2 + $0x34] sm:$0xf]
      %v3288 = vld [vmem:[%s2 + $0x38] sm:$0xf]
      %v3289 = vld [vmem:[%s2 + $0x3c] sm:$0xf]
      %v3290 = vld [vmem:[%s2 + $0x40] sm:$0xf]
      %v3291 = vld [vmem:[%s2 + $0x44] sm:$0xf]
      %v3292 = vld [vmem:[%s2 + $0x48] sm:$0xf]
      %v3293 = vld [vmem:[%s2 + $0x4c] sm:$0xf]
      %v3294 = vld [vmem:[%s2 + $0x50] sm:$0xf]
      %v3295 = vld [vmem:[%s2 + $0x54] sm:$0xf]
      %v3296 = vld [vmem:[%s2 + $0x58] sm:$0xf]
      %v3297 = vld [vmem:[%s2 + $0x5c] sm:$0xf]
      %v3298 = vld [vmem:[%s2 + $0x60] sm:$0xf]
      %v3299 = vld [vmem:[%s2 + $0x64] sm:$0xf]
      %v3300 = vld [vmem:[%s2 + $0x68] sm:$0xf]
      %v3301 = vld [vmem:[%s2 + $0x6c] sm:$0xf]
      %v3302 = vld [vmem:[%s2 + $0x70] sm:$0xf]
      %v3303 = vld [vmem:[%s2 + $0x74] sm:$0xf]
      %v3304 = vld [vmem:[%s2 + $0x78] sm:$0xf]
      %v3305 = vld [vmem:[%s2 + $0x7c] sm:$0xf]
      %v3306 = vld [vmem:[%s2 + $0x80] sm:$0xf]
      %v3307 = vld [vmem:[%s2 + $0x84] sm:$0xf]
      %v3308 = vld [vmem:[%s2 + $0x88] sm:$0xf]
      %v3309 = vld [vmem:[%s2 + $0x8c] sm:$0xf]
      %v3310 = vld [vmem:[%s2 + $0x90] sm:$0xf]
      %v3311 = vld [vmem:[%s2 + $0x94] sm:$0xf]
      %v3312 = vld [vmem:[%s2 + $0x98] sm:$0xf]
      %v3313 = vld [vmem:[%s2 + $0x9c] sm:$0xf]
      %v3314 = vld [vmem:[%s2 + $0xa0] sm:$0xf]
      %v3315 = vld [vmem:[%s2 + $0xa4] sm:$0xf]
      %v3316 = vld [vmem:[%s2 + $0xa8] sm:$0xf]
      %v3317 = vld [vmem:[%s2 + $0xac] sm:$0xf]
      %v3318 = vld [vmem:[%s2 + $0xb0] sm:$0xf]
      %v3319 = vld [vmem:[%s2 + $0xb4] sm:$0xf]
      %v3320 = vld [vmem:[%s2 + $0xb8] sm:$0xf]
      %v3321 = vld [vmem:[%s2 + $0xbc] sm:$0xf]
      %v3322 = vld [vmem:[%s2 + $0xc0] sm:$0xf]
      %v3323 = vld [vmem:[%s2 + $0xc4] sm:$0xf]
      %v3324 = vld [vmem:[%s2 + $0xc8] sm:$0xf]
      %v3325 = vld [vmem:[%s2 + $0xcc] sm:$0xf]
      %v3326 = vld [vmem:[%s2 + $0xd0] sm:$0xf]
      %v3327 = vld [vmem:[%s2 + $0xd4] sm:$0xf]
      %v3328 = vld [vmem:[%s2 + $0xd8] sm:$0xf]
      %v3329 = vld [vmem:[%s2 + $0xdc] sm:$0xf]
      %v3330 = vld [vmem:[%s2 + $0xe0] sm:$0xf]
      %v3331 = vld [vmem:[%s2 + $0xe4] sm:$0xf]
      %v3332 = vld [vmem:[%s2 + $0xe8] sm:$0xf]
      %v3333 = vld [vmem:[%s2 + $0xec] sm:$0xf]
      %v3334 = vld [vmem:[%s2 + $0xf0] sm:$0xf]
      %v3335 = vld [vmem:[%s2 + $0xf4] sm:$0xf]
      %v3336 = vld [vmem:[%s2 + $0xf8] sm:$0xf]
      %v3337 = vld [vmem:[%s2 + $0xfc] sm:$0xf]
      %v3338 = vld [vmem:[%s2 + $0x100] sm:$0xf]
      %v3339 = vld [vmem:[%s2 + $0x104] sm:$0xf]
      %v3340 = vld [vmem:[%s2 + $0x108] sm:$0xf]
      %v3341 = vld [vmem:[%s2 + $0x10c] sm:$0xf]
      %v3342 = vld [vmem:[%s2 + $0x110] sm:$0xf]
      %v3343 = vld [vmem:[%s2 + $0x114] sm:$0xf]
      %v3344 = vld [vmem:[%s2 + $0x118] sm:$0xf]
      %v3345 = vld [vmem:[%s2 + $0x11c] sm:$0xf]
      %v3346 = vld [vmem:[%s2 + $0x120] sm:$0xf]
      %v3347 = vld [vmem:[%s2 + $0x124] sm:$0xf]
      %v3348 = vld [vmem:[%s2 + $0x128] sm:$0xf]
      %v3349 = vld [vmem:[%s2 + $0x12c] sm:$0xf]
      %v3350 = vld [vmem:[%s2 + $0x130] sm:$0xf]
      %v3351 = vld [vmem:[%s2 + $0x134] sm:$0xf]
      %v3352 = vld [vmem:[%s2 + $0x138] sm:$0xf]
      %v3353 = vld [vmem:[%s2 + $0x13c] sm:$0xf]
      %v3354 = vld [vmem:[%s2 + $0x140] sm:$0xf]
      %v3355 = vld [vmem:[%s2 + $0x144] sm:$0xf]
      %v3356 = vld [vmem:[%s2 + $0x148] sm:$0xf]
      %v3357 = vld [vmem:[%s2 + $0x14c] sm:$0xf]
      %v3358 = vld [vmem:[%s2 + $0x150] sm:$0xf]
      %v3359 = vld [vmem:[%s2 + $0x154] sm:$0xf]
      %v3360 = vld [vmem:[%s2 + $0x158] sm:$0xf]
      %v3361 = vld [vmem:[%s2 + $0x15c] sm:$0xf]
      %v3362 = vld [vmem:[%s2 + $0x160] sm:$0xf]
      %v3363 = vld [vmem:[%s2 + $0x164] sm:$0xf]
      %v3364 = vld [vmem:[%s2 + $0x168] sm:$0xf]
      %v3365 = vld [vmem:[%s2 + $0x16c] sm:$0xf]
      %v3366 = vld [vmem:[%s2 + $0x170] sm:$0xf]
      %v3367 = vld [vmem:[%s2 + $0x174] sm:$0xf]
      %v3368 = vld [vmem:[%s2 + $0x178] sm:$0xf]
      %v3369 = vld [vmem:[%s2 + $0x17c] sm:$0xf]
      %v3370 = vld [vmem:[%s2 + $0x180] sm:$0xf]
      %v3371 = vld [vmem:[%s2 + $0x184] sm:$0xf]
      %v3372 = vld [vmem:[%s2 + $0x188] sm:$0xf]
      %v3373 = vld [vmem:[%s2 + $0x18c] sm:$0xf]
      %v3374 = vld [vmem:[%s2 + $0x190] sm:$0xf]
      %v3375 = vld [vmem:[%s2 + $0x194] sm:$0xf]
      %v3376 = vld [vmem:[%s2 + $0x198] sm:$0xf]
      %v3377 = vld [vmem:[%s2 + $0x19c] sm:$0xf]
      %v3378 = vld [vmem:[%s2 + $0x1a0] sm:$0xf]
      %v3379 = vld [vmem:[%s2 + $0x1a4] sm:$0xf]
      %v3380 = vld [vmem:[%s2 + $0x1a8] sm:$0xf]
      %v3381 = vld [vmem:[%s2 + $0x1ac] sm:$0xf]
      %v3382 = vld [vmem:[%s2 + $0x1b0] sm:$0xf]
      %v3383 = vld [vmem:[%s2 + $0x1b4] sm:$0xf]
      %v3384 = vld [vmem:[%s2 + $0x1b8] sm:$0xf]
      %v3385 = vld [vmem:[%s2 + $0x1bc] sm:$0xf]
      %v3386 = vld [vmem:[%s2 + $0x1c0] sm:$0xf]
      %v3387 = vld [vmem:[%s2 + $0x1c4] sm:$0xf]
      %v3388 = vld [vmem:[%s2 + $0x1c8] sm:$0xf]
      %v3389 = vld [vmem:[%s2 + $0x1cc] sm:$0xf]
      %v3390 = vld [vmem:[%s2 + $0x1d0] sm:$0xf]
      %v3391 = vld [vmem:[%s2 + $0x1d4] sm:$0xf]
      %v3392 = vld [vmem:[%s2 + $0x1d8] sm:$0xf]
      %v3393 = vld [vmem:[%s2 + $0x1dc] sm:$0xf]
      %v3394 = vld [vmem:[%s2 + $0x1e0] sm:$0xf]
      %v3395 = vld [vmem:[%s2 + $0x1e4] sm:$0xf]
      %v3396 = vld [vmem:[%s2 + $0x1e8] sm:$0xf]
      %v3397 = vld [vmem:[%s2 + $0x1ec] sm:$0xf]
      %v3398 = vld [vmem:[%s2 + $0x1f0] sm:$0xf]
      %v3399 = vld [vmem:[%s2 + $0x1f4] sm:$0xf]
      %v3400 = vld [vmem:[%s2 + $0x1f8] sm:$0xf]
      %v3401 = vld [vmem:[%s2 + $0x1fc] sm:$0xf]
      %v3402 = vld [vmem:[%s2 + $0x200] sm:$0xf]
      %v3403 = vld [vmem:[%s2 + $0x204] sm:$0xf]
      %v3404 = vld [vmem:[%s2 + $0x208] sm:$0xf]
      %v3405 = vld [vmem:[%s2 + $0x20c] sm:$0xf]
      %v3406 = vld [vmem:[%s2 + $0x210] sm:$0xf]
      %v3407 = vld [vmem:[%s2 + $0x214] sm:$0xf]
      %v3408 = vld [vmem:[%s2 + $0x218] sm:$0xf]
      %v3409 = vld [vmem:[%s2 + $0x21c] sm:$0xf]
      %v3410 = vld [vmem:[%s2 + $0x220] sm:$0xf]
      %v3411 = vld [vmem:[%s2 + $0x224] sm:$0xf]
      %v3412 = vld [vmem:[%s2 + $0x228] sm:$0xf]
      %v3413 = vld [vmem:[%s2 + $0x22c] sm:$0xf]
      %v3414 = vld [vmem:[%s2 + $0x230] sm:$0xf]
      %v3415 = vld [vmem:[%s2 + $0x234] sm:$0xf]
      %v3416 = vld [vmem:[%s2 + $0x238] sm:$0xf]
      %v3417 = vld [vmem:[%s2 + $0x23c] sm:$0xf]
      %vm3418 = vsmask.f32 3328
      %vm3419 = vsmask.f32 7440
      %vm3420 = vmor %vm3418, %vm3419
      %v3422 = vshrl.u32 %v229, 16
      %v3424 = vrot.slane %v3422, 4
      %v3425 = vshll.u32 %v229, 16
      %v3427 = vrot.slane %v3425, 5
      %v3428 = vor.u32 %v3424, %v3427
      %v3429 = vrot.slane %v3428, 4
      %v3431 = vshll.u32 %v230, 16
      %v3433 = vrot.slane %v3431, 5
      %v3434 = vsel %vm3420, %v3429, %v3433
      %v3435 = vshrl.u32 %v230, 16
      %v3437 = vrot.slane %v3435, 4
      %v3438 = vor.u32 %v3437, %v3433
      %v3439 = vrot.slane %v3438, 4
      %v3441 = vshll.u32 %v231, 16
      %v3443 = vrot.slane %v3441, 5
      %v3444 = vsel %vm3420, %v3439, %v3443
      %v3446 = vshrl.u32 %v232, 16
      %v3448 = vrot.slane %v3446, 4
      %v3449 = vshll.u32 %v232, 16
      %v3451 = vrot.slane %v3449, 5
      %v3452 = vor.u32 %v3448, %v3451
      %v3453 = vrot.slane %v3452, 4
      %v3455 = vshll.u32 %v233, 16
      %v3457 = vrot.slane %v3455, 5
      %v3458 = vsel %vm3420, %v3453, %v3457
      %v3459 = vshrl.u32 %v233, 16
      %v3461 = vrot.slane %v3459, 4
      %v3462 = vor.u32 %v3461, %v3457
      %v3463 = vrot.slane %v3462, 4
      %v3465 = vshll.u32 %v234, 16
      %v3467 = vrot.slane %v3465, 5
      %v3468 = vsel %vm3420, %v3463, %v3467
      %v3470 = vshrl.u32 %v235, 16
      %v3472 = vrot.slane %v3470, 4
      %v3473 = vshll.u32 %v235, 16
      %v3475 = vrot.slane %v3473, 5
      %v3476 = vor.u32 %v3472, %v3475
      %v3477 = vrot.slane %v3476, 4
      %v3479 = vshll.u32 %v236, 16
      %v3481 = vrot.slane %v3479, 5
      %v3482 = vsel %vm3420, %v3477, %v3481
      %v3483 = vshrl.u32 %v236, 16
      %v3485 = vrot.slane %v3483, 4
      %v3486 = vor.u32 %v3485, %v3481
      %v3487 = vrot.slane %v3486, 4
      %v3489 = vshll.u32 %v237, 16
      %v3491 = vrot.slane %v3489, 5
      %v3492 = vsel %vm3420, %v3487, %v3491
      %v3494 = vshrl.u32 %v238, 16
      %v3496 = vrot.slane %v3494, 4
      %v3497 = vshll.u32 %v238, 16
      %v3499 = vrot.slane %v3497, 5
      %v3500 = vor.u32 %v3496, %v3499
      %v3501 = vrot.slane %v3500, 4
      %v3503 = vshll.u32 %v239, 16
      %v3505 = vrot.slane %v3503, 5
      %v3506 = vsel %vm3420, %v3501, %v3505
      %v3507 = vshrl.u32 %v239, 16
      %v3509 = vrot.slane %v3507, 4
      %v3510 = vor.u32 %v3509, %v3505
      %v3511 = vrot.slane %v3510, 4
      %v3513 = vshll.u32 %v240, 16
      %v3515 = vrot.slane %v3513, 5
      %v3516 = vsel %vm3420, %v3511, %v3515
      %v3518 = vshrl.u32 %v241, 16
      %v3520 = vrot.slane %v3518, 4
      %v3521 = vshll.u32 %v241, 16
      %v3523 = vrot.slane %v3521, 5
      %v3524 = vor.u32 %v3520, %v3523
      %v3525 = vrot.slane %v3524, 4
      %v3527 = vshll.u32 %v242, 16
      %v3529 = vrot.slane %v3527, 5
      %v3530 = vsel %vm3420, %v3525, %v3529
      %v3531 = vshrl.u32 %v242, 16
      %v3533 = vrot.slane %v3531, 4
      %v3534 = vor.u32 %v3533, %v3529
      %v3535 = vrot.slane %v3534, 4
      %v3537 = vshll.u32 %v243, 16
      %v3539 = vrot.slane %v3537, 5
      %v3540 = vsel %vm3420, %v3535, %v3539
      %v3542 = vshrl.u32 %v244, 16
      %v3544 = vrot.slane %v3542, 4
      %v3545 = vshll.u32 %v244, 16
      %v3547 = vrot.slane %v3545, 5
      %v3548 = vor.u32 %v3544, %v3547
      %v3549 = vrot.slane %v3548, 4
      %v3551 = vshll.u32 %v245, 16
      %v3553 = vrot.slane %v3551, 5
      %v3554 = vsel %vm3420, %v3549, %v3553
      %v3555 = vshrl.u32 %v245, 16
      %v3557 = vrot.slane %v3555, 4
      %v3558 = vor.u32 %v3557, %v3553
      %v3559 = vrot.slane %v3558, 4
      %v3561 = vshll.u32 %v246, 16
      %v3563 = vrot.slane %v3561, 5
      %v3564 = vsel %vm3420, %v3559, %v3563
      %v3566 = vshrl.u32 %v247, 16
      %v3568 = vrot.slane %v3566, 4
      %v3569 = vshll.u32 %v247, 16
      %v3571 = vrot.slane %v3569, 5
      %v3572 = vor.u32 %v3568, %v3571
      %v3573 = vrot.slane %v3572, 4
      %v3575 = vshll.u32 %v248, 16
      %v3577 = vrot.slane %v3575, 5
      %v3578 = vsel %vm3420, %v3573, %v3577
      %v3579 = vshrl.u32 %v248, 16
      %v3581 = vrot.slane %v3579, 4
      %v3582 = vor.u32 %v3581, %v3577
      %v3583 = vrot.slane %v3582, 4
      %v3585 = vshll.u32 %v249, 16
      %v3587 = vrot.slane %v3585, 5
      %v3588 = vsel %vm3420, %v3583, %v3587
      %v3590 = vshrl.u32 %v250, 16
      %v3592 = vrot.slane %v3590, 4
      %v3593 = vshll.u32 %v250, 16
      %v3595 = vrot.slane %v3593, 5
      %v3596 = vor.u32 %v3592, %v3595
      %v3597 = vrot.slane %v3596, 4
      %v3599 = vshll.u32 %v251, 16
      %v3601 = vrot.slane %v3599, 5
      %v3602 = vsel %vm3420, %v3597, %v3601
      %v3603 = vshrl.u32 %v251, 16
      %v3605 = vrot.slane %v3603, 4
      %v3606 = vor.u32 %v3605, %v3601
      %v3607 = vrot.slane %v3606, 4
      %v3609 = vshll.u32 %v252, 16
      %v3611 = vrot.slane %v3609, 5
      %v3612 = vsel %vm3420, %v3607, %v3611
      %v3614 = vshrl.u32 %v253, 16
      %v3616 = vrot.slane %v3614, 4
      %v3617 = vshll.u32 %v253, 16
      %v3619 = vrot.slane %v3617, 5
      %v3620 = vor.u32 %v3616, %v3619
      %v3621 = vrot.slane %v3620, 4
      %v3623 = vshll.u32 %v254, 16
      %v3625 = vrot.slane %v3623, 5
      %v3626 = vsel %vm3420, %v3621, %v3625
      %v3627 = vshrl.u32 %v254, 16
      %v3629 = vrot.slane %v3627, 4
      %v3630 = vor.u32 %v3629, %v3625
      %v3631 = vrot.slane %v3630, 4
      %v3633 = vshll.u32 %v255, 16
      %v3635 = vrot.slane %v3633, 5
      %v3636 = vsel %vm3420, %v3631, %v3635
      %v3638 = vshrl.u32 %v256, 16
      %v3640 = vrot.slane %v3638, 4
      %v3641 = vshll.u32 %v256, 16
      %v3643 = vrot.slane %v3641, 5
      %v3644 = vor.u32 %v3640, %v3643
      %v3645 = vrot.slane %v3644, 4
      %v3647 = vshll.u32 %v257, 16
      %v3649 = vrot.slane %v3647, 5
      %v3650 = vsel %vm3420, %v3645, %v3649
      %v3651 = vshrl.u32 %v257, 16
      %v3653 = vrot.slane %v3651, 4
      %v3654 = vor.u32 %v3653, %v3649
      %v3655 = vrot.slane %v3654, 4
      %v3657 = vshll.u32 %v258, 16
      %v3659 = vrot.slane %v3657, 5
      %v3660 = vsel %vm3420, %v3655, %v3659
      %v3662 = vshrl.u32 %v259, 16
      %v3664 = vrot.slane %v3662, 4
      %v3665 = vshll.u32 %v259, 16
      %v3667 = vrot.slane %v3665, 5
      %v3668 = vor.u32 %v3664, %v3667
      %v3669 = vrot.slane %v3668, 4
      %v3671 = vshll.u32 %v260, 16
      %v3673 = vrot.slane %v3671, 5
      %v3674 = vsel %vm3420, %v3669, %v3673
      %v3675 = vshrl.u32 %v260, 16
      %v3677 = vrot.slane %v3675, 4
      %v3678 = vor.u32 %v3677, %v3673
      %v3679 = vrot.slane %v3678, 4
      %v3681 = vshll.u32 %v261, 16
      %v3683 = vrot.slane %v3681, 5
      %v3684 = vsel %vm3420, %v3679, %v3683
      %v3686 = vshrl.u32 %v262, 16
      %v3688 = vrot.slane %v3686, 4
      %v3689 = vshll.u32 %v262, 16
      %v3691 = vrot.slane %v3689, 5
      %v3692 = vor.u32 %v3688, %v3691
      %v3693 = vrot.slane %v3692, 4
      %v3695 = vshll.u32 %v263, 16
      %v3697 = vrot.slane %v3695, 5
      %v3698 = vsel %vm3420, %v3693, %v3697
      %v3699 = vshrl.u32 %v263, 16
      %v3701 = vrot.slane %v3699, 4
      %v3702 = vor.u32 %v3701, %v3697
      %v3703 = vrot.slane %v3702, 4
      %v3705 = vshll.u32 %v264, 16
      %v3707 = vrot.slane %v3705, 5
      %v3708 = vsel %vm3420, %v3703, %v3707
      %v3710 = vshrl.u32 %v265, 16
      %v3712 = vrot.slane %v3710, 4
      %v3713 = vshll.u32 %v265, 16
      %v3715 = vrot.slane %v3713, 5
      %v3716 = vor.u32 %v3712, %v3715
      %v3717 = vrot.slane %v3716, 4
      %v3719 = vshll.u32 %v266, 16
      %v3721 = vrot.slane %v3719, 5
      %v3722 = vsel %vm3420, %v3717, %v3721
      %v3723 = vshrl.u32 %v266, 16
      %v3725 = vrot.slane %v3723, 4
      %v3726 = vor.u32 %v3725, %v3721
      %v3727 = vrot.slane %v3726, 4
      %v3729 = vshll.u32 %v267, 16
      %v3731 = vrot.slane %v3729, 5
      %v3732 = vsel %vm3420, %v3727, %v3731
      %v3734 = vshrl.u32 %v268, 16
      %v3736 = vrot.slane %v3734, 4
      %v3737 = vshll.u32 %v268, 16
      %v3739 = vrot.slane %v3737, 5
      %v3740 = vor.u32 %v3736, %v3739
      %v3741 = vrot.slane %v3740, 4
      %v3743 = vshll.u32 %v269, 16
      %v3745 = vrot.slane %v3743, 5
      %v3746 = vsel %vm3420, %v3741, %v3745
      %v3747 = vshrl.u32 %v269, 16
      %v3749 = vrot.slane %v3747, 4
      %v3750 = vor.u32 %v3749, %v3745
      %v3751 = vrot.slane %v3750, 4
      %v3753 = vshll.u32 %v270, 16
      %v3755 = vrot.slane %v3753, 5
      %v3756 = vsel %vm3420, %v3751, %v3755
      %v3758 = vshrl.u32 %v271, 16
      %v3760 = vrot.slane %v3758, 4
      %v3761 = vshll.u32 %v271, 16
      %v3763 = vrot.slane %v3761, 5
      %v3764 = vor.u32 %v3760, %v3763
      %v3765 = vrot.slane %v3764, 4
      %v3767 = vshll.u32 %v272, 16
      %v3769 = vrot.slane %v3767, 5
      %v3770 = vsel %vm3420, %v3765, %v3769
      %v3771 = vshrl.u32 %v272, 16
      %v3773 = vrot.slane %v3771, 4
      %v3774 = vor.u32 %v3773, %v3769
      %v3775 = vrot.slane %v3774, 4
      %v3777 = vshll.u32 %v273, 16
      %v3779 = vrot.slane %v3777, 5
      %v3780 = vsel %vm3420, %v3775, %v3779
      %v3782 = vshrl.u32 %v274, 16
      %v3784 = vrot.slane %v3782, 4
      %v3785 = vshll.u32 %v274, 16
      %v3787 = vrot.slane %v3785, 5
      %v3788 = vor.u32 %v3784, %v3787
      %v3789 = vrot.slane %v3788, 4
      %v3791 = vshll.u32 %v275, 16
      %v3793 = vrot.slane %v3791, 5
      %v3794 = vsel %vm3420, %v3789, %v3793
      %v3795 = vshrl.u32 %v275, 16
      %v3797 = vrot.slane %v3795, 4
      %v3798 = vor.u32 %v3797, %v3793
      %v3799 = vrot.slane %v3798, 4
      %v3801 = vshll.u32 %v276, 16
      %v3803 = vrot.slane %v3801, 5
      %v3804 = vsel %vm3420, %v3799, %v3803
      %v3837 = vunpack.c.l.bf16 %v3434
      %v3838 = vunpack.c.l.bf16 %v3444
      %v3839 = vunpack.c.l.bf16 %v3458
      %v3840 = vunpack.c.l.bf16 %v3468
      %v3841 = vunpack.c.l.bf16 %v3482
      %v3842 = vunpack.c.l.bf16 %v3492
      %v3843 = vunpack.c.l.bf16 %v3506
      %v3844 = vunpack.c.l.bf16 %v3516
      %v3845 = vunpack.c.l.bf16 %v3530
      %v3846 = vunpack.c.l.bf16 %v3540
      %v3847 = vunpack.c.l.bf16 %v3554
      %v3848 = vunpack.c.l.bf16 %v3564
      %v3849 = vunpack.c.l.bf16 %v3578
      %v3850 = vunpack.c.l.bf16 %v3588
      %v3851 = vunpack.c.l.bf16 %v3602
      %v3852 = vunpack.c.l.bf16 %v3612
      %v3853 = vunpack.c.l.bf16 %v3626
      %v3854 = vunpack.c.l.bf16 %v3636
      %v3855 = vunpack.c.l.bf16 %v3650
      %v3856 = vunpack.c.l.bf16 %v3660
      %v3857 = vunpack.c.l.bf16 %v3674
      %v3858 = vunpack.c.l.bf16 %v3684
      %v3859 = vunpack.c.l.bf16 %v3698
      %v3860 = vunpack.c.l.bf16 %v3708
      %v3861 = vunpack.c.l.bf16 %v3722
      %v3862 = vunpack.c.l.bf16 %v3732
      %v3863 = vunpack.c.l.bf16 %v3746
      %v3864 = vunpack.c.l.bf16 %v3756
      %v3865 = vunpack.c.l.bf16 %v3770
      %v3866 = vunpack.c.l.bf16 %v3780
      %v3867 = vunpack.c.l.bf16 %v3794
      %v3868 = vunpack.c.l.bf16 %v3804
      %v3869 = vld [vmem:[%s4] sm:$0x1]
      %v3871 = vperm.slane %v3869, 0
      %v4017 = vunpack.c.l.b16 %v3274
      %v4018 = vunpack.c.l.b16 %v3275
      %v4019 = vunpack.c.l.b16 %v3276
      %v4020 = vunpack.c.l.b16 %v3277
      %v4021 = vunpack.c.l.b16 %v3278
      %v4022 = vunpack.c.l.b16 %v3279
      %v4023 = vunpack.c.l.b16 %v3280
      %v4024 = vunpack.c.l.b16 %v3281
      %v4025 = vunpack.c.l.b16 %v3282
      %v4026 = vunpack.c.l.b16 %v3283
      %v4027 = vunpack.c.l.b16 %v3284
      %v4028 = vunpack.c.l.b16 %v3285
      %v4029 = vunpack.c.l.b16 %v3286
      %v4030 = vunpack.c.l.b16 %v3287
      %v4031 = vunpack.c.l.b16 %v3288
      %v4032 = vunpack.c.l.b16 %v3289
      %v4033 = vunpack.c.l.b16 %v3290
      %v4034 = vunpack.c.l.b16 %v3291
      %v4035 = vunpack.c.l.b16 %v3292
      %v4036 = vunpack.c.l.b16 %v3293
      %v4037 = vunpack.c.l.b16 %v3294
      %v4038 = vunpack.c.l.b16 %v3295
      %v4039 = vunpack.c.l.b16 %v3296
      %v4040 = vunpack.c.l.b16 %v3297
      %v4041 = vunpack.c.l.b16 %v3298
      %v4042 = vunpack.c.l.b16 %v3299
      %v4043 = vunpack.c.l.b16 %v3300
      %v4044 = vunpack.c.l.b16 %v3301
      %v4045 = vunpack.c.l.b16 %v3302
      %v4046 = vunpack.c.l.b16 %v3303
      %v4047 = vunpack.c.l.b16 %v3304
      %v4048 = vunpack.c.l.b16 %v3305
      %v4049 = vunpack.c.l.b16 %v3306
      %v4050 = vunpack.c.l.b16 %v3307
      %v4051 = vunpack.c.l.b16 %v3308
      %v4052 = vunpack.c.l.b16 %v3309
      %v4053 = vunpack.c.l.b16 %v3310
      %v4054 = vunpack.c.l.b16 %v3311
      %v4055 = vunpack.c.l.b16 %v3312
      %v4056 = vunpack.c.l.b16 %v3313
      %v4057 = vunpack.c.l.b16 %v3314
      %v4058 = vunpack.c.l.b16 %v3315
      %v4059 = vunpack.c.l.b16 %v3316
      %v4060 = vunpack.c.l.b16 %v3317
      %v4061 = vunpack.c.l.b16 %v3318
      %v4062 = vunpack.c.l.b16 %v3319
      %v4063 = vunpack.c.l.b16 %v3320
      %v4064 = vunpack.c.l.b16 %v3321
      %v4065 = vunpack.c.l.b16 %v3322
      %v4066 = vunpack.c.l.b16 %v3323
      %v4067 = vunpack.c.l.b16 %v3324
      %v4068 = vunpack.c.l.b16 %v3325
      %v4069 = vunpack.c.l.b16 %v3326
      %v4070 = vunpack.c.l.b16 %v3327
      %v4071 = vunpack.c.l.b16 %v3328
      %v4072 = vunpack.c.l.b16 %v3329
      %v4073 = vunpack.c.l.b16 %v3330
      %v4074 = vunpack.c.l.b16 %v3331
      %v4075 = vunpack.c.l.b16 %v3332
      %v4076 = vunpack.c.l.b16 %v3333
      %v4077 = vunpack.c.l.b16 %v3334
      %v4078 = vunpack.c.l.b16 %v3335
      %v4079 = vunpack.c.l.b16 %v3336
      %v4080 = vunpack.c.l.b16 %v3337
      %v4081 = vunpack.c.l.b16 %v3338
      %v4082 = vunpack.c.l.b16 %v3339
      %v4083 = vunpack.c.l.b16 %v3340
      %v4084 = vunpack.c.l.b16 %v3341
      %v4085 = vunpack.c.l.b16 %v3342
      %v4086 = vunpack.c.l.b16 %v3343
      %v4087 = vunpack.c.l.b16 %v3344
      %v4088 = vunpack.c.l.b16 %v3345
      %v4089 = vunpack.c.l.b16 %v3346
      %v4090 = vunpack.c.l.b16 %v3347
      %v4091 = vunpack.c.l.b16 %v3348
      %v4092 = vunpack.c.l.b16 %v3349
      %v4093 = vunpack.c.l.b16 %v3350
      %v4094 = vunpack.c.l.b16 %v3351
      %v4095 = vunpack.c.l.b16 %v3352
      %v4096 = vunpack.c.l.b16 %v3353
      %v4097 = vunpack.c.l.b16 %v3354
      %v4098 = vunpack.c.l.b16 %v3355
      %v4099 = vunpack.c.l.b16 %v3356
      %v4100 = vunpack.c.l.b16 %v3357
      %v4101 = vunpack.c.l.b16 %v3358
      %v4102 = vunpack.c.l.b16 %v3359
      %v4103 = vunpack.c.l.b16 %v3360
      %v4104 = vunpack.c.l.b16 %v3361
      %v4105 = vunpack.c.l.b16 %v3362
      %v4106 = vunpack.c.l.b16 %v3363
      %v4107 = vunpack.c.l.b16 %v3364
      %v4108 = vunpack.c.l.b16 %v3365
      %v4109 = vunpack.c.l.b16 %v3366
      %v4110 = vunpack.c.l.b16 %v3367
      %v4111 = vunpack.c.l.b16 %v3368
      %v4112 = vunpack.c.l.b16 %v3369
      %v4113 = vunpack.c.l.b16 %v3370
      %v4114 = vunpack.c.l.b16 %v3371
      %v4115 = vunpack.c.l.b16 %v3372
      %v4116 = vunpack.c.l.b16 %v3373
      %v4117 = vunpack.c.l.b16 %v3374
      %v4118 = vunpack.c.l.b16 %v3375
      %v4119 = vunpack.c.l.b16 %v3376
      %v4120 = vunpack.c.l.b16 %v3377
      %v4121 = vunpack.c.l.b16 %v3378
      %v4122 = vunpack.c.l.b16 %v3379
      %v4123 = vunpack.c.l.b16 %v3380
      %v4124 = vunpack.c.l.b16 %v3381
      %v4125 = vunpack.c.l.b16 %v3382
      %v4126 = vunpack.c.l.b16 %v3383
      %v4127 = vunpack.c.l.b16 %v3384
      %v4128 = vunpack.c.l.b16 %v3385
      %v4129 = vunpack.c.l.b16 %v3386
      %v4130 = vunpack.c.l.b16 %v3387
      %v4131 = vunpack.c.l.b16 %v3388
      %v4132 = vunpack.c.l.b16 %v3389
      %v4133 = vunpack.c.l.b16 %v3390
      %v4134 = vunpack.c.l.b16 %v3391
      %v4135 = vunpack.c.l.b16 %v3392
      %v4136 = vunpack.c.l.b16 %v3393
      %v4137 = vunpack.c.l.b16 %v3394
      %v4138 = vunpack.c.l.b16 %v3395
      %v4139 = vunpack.c.l.b16 %v3396
      %v4140 = vunpack.c.l.b16 %v3397
      %v4141 = vunpack.c.l.b16 %v3398
      %v4142 = vunpack.c.l.b16 %v3399
      %v4143 = vunpack.c.l.b16 %v3400
      %v4144 = vunpack.c.l.b16 %v3401
      %v4145 = vunpack.c.l.b16 %v3402
      %v4146 = vunpack.c.l.b16 %v3403
      %v4147 = vunpack.c.l.b16 %v3404
      %v4148 = vunpack.c.l.b16 %v3405
      %v4149 = vunpack.c.l.b16 %v3406
      %v4150 = vunpack.c.l.b16 %v3407
      %v4151 = vunpack.c.l.b16 %v3408
      %v4152 = vunpack.c.l.b16 %v3409
      %v4153 = vunpack.c.l.b16 %v3410
      %v4154 = vunpack.c.l.b16 %v3411
      %v4155 = vunpack.c.l.b16 %v3412
      %v4156 = vunpack.c.l.b16 %v3413
      %v4157 = vunpack.c.l.b16 %v3414
      %v4158 = vunpack.c.l.b16 %v3415
      %v4159 = vunpack.c.l.b16 %v3416
      %v4160 = vunpack.c.l.b16 %v3417
      %v4161 = vpack.c.b16 %v4018, %v4017
      %v4162 = vpack.c.b16 %v4020, %v4019
      %v4163 = vpack.c.b16 %v4022, %v4021
      %v4164 = vpack.c.b16 %v4024, %v4023
      %v4165 = vpack.c.b16 %v4026, %v4025
      %v4166 = vpack.c.b16 %v4028, %v4027
      %v4167 = vpack.c.b16 %v4030, %v4029
      %v4168 = vpack.c.b16 %v4032, %v4031
      %v4169 = vpack.c.b16 %v4034, %v4033
      %v4170 = vpack.c.b16 %v4036, %v4035
      %v4171 = vpack.c.b16 %v4038, %v4037
      %v4172 = vpack.c.b16 %v4040, %v4039
      %v4173 = vpack.c.b16 %v4042, %v4041
      %v4174 = vpack.c.b16 %v4044, %v4043
      %v4175 = vpack.c.b16 %v4046, %v4045
      %v4176 = vpack.c.b16 %v4048, %v4047
      %v4177 = vpack.c.b16 %v4050, %v4049
      %v4178 = vpack.c.b16 %v4052, %v4051
      %v4179 = vpack.c.b16 %v4054, %v4053
      %v4180 = vpack.c.b16 %v4056, %v4055
      %v4181 = vpack.c.b16 %v4058, %v4057
      %v4182 = vpack.c.b16 %v4060, %v4059
      %v4183 = vpack.c.b16 %v4062, %v4061
      %v4184 = vpack.c.b16 %v4064, %v4063
      %v4185 = vpack.c.b16 %v4066, %v4065
      %v4186 = vpack.c.b16 %v4068, %v4067
      %v4187 = vpack.c.b16 %v4070, %v4069
      %v4188 = vpack.c.b16 %v4072, %v4071
      %v4189 = vpack.c.b16 %v4074, %v4073
      %v4190 = vpack.c.b16 %v4076, %v4075
      %v4191 = vpack.c.b16 %v4078, %v4077
      %v4192 = vpack.c.b16 %v4080, %v4079
      %v4193 = vpack.c.b16 %v4082, %v4081
      %v4194 = vpack.c.b16 %v4084, %v4083
      %v4195 = vpack.c.b16 %v4086, %v4085
      %v4196 = vpack.c.b16 %v4088, %v4087
      %v4197 = vpack.c.b16 %v4090, %v4089
      %v4198 = vpack.c.b16 %v4092, %v4091
      %v4199 = vpack.c.b16 %v4094, %v4093
      %v4200 = vpack.c.b16 %v4096, %v4095
      %v4201 = vpack.c.b16 %v4098, %v4097
      %v4202 = vpack.c.b16 %v4100, %v4099
      %v4203 = vpack.c.b16 %v4102, %v4101
      %v4204 = vpack.c.b16 %v4104, %v4103
      %v4205 = vpack.c.b16 %v4106, %v4105
      %v4206 = vpack.c.b16 %v4108, %v4107
      %v4207 = vpack.c.b16 %v4110, %v4109
      %v4208 = vpack.c.b16 %v4112, %v4111
      %v4209 = vpack.c.b16 %v4114, %v4113
      %v4210 = vpack.c.b16 %v4116, %v4115
      %v4211 = vpack.c.b16 %v4118, %v4117
      %v4212 = vpack.c.b16 %v4120, %v4119
      %v4213 = vpack.c.b16 %v4122, %v4121
      %v4214 = vpack.c.b16 %v4124, %v4123
      %v4215 = vpack.c.b16 %v4126, %v4125
      %v4216 = vpack.c.b16 %v4128, %v4127
      %v4217 = vpack.c.b16 %v4130, %v4129
      %v4218 = vpack.c.b16 %v4132, %v4131
      %v4219 = vpack.c.b16 %v4134, %v4133
      %v4220 = vpack.c.b16 %v4136, %v4135
      %v4221 = vpack.c.b16 %v4138, %v4137
      %v4222 = vpack.c.b16 %v4140, %v4139
      %v4223 = vpack.c.b16 %v4142, %v4141
      %v4224 = vpack.c.b16 %v4144, %v4143
      %v4225 = vpack.c.b16 %v4146, %v4145
      %v4226 = vpack.c.b16 %v4148, %v4147
      %v4227 = vpack.c.b16 %v4150, %v4149
      %v4228 = vpack.c.b16 %v4152, %v4151
      %v4229 = vpack.c.b16 %v4154, %v4153
      %v4230 = vpack.c.b16 %v4156, %v4155
      %v4231 = vpack.c.b16 %v4158, %v4157
      %v4232 = vpack.c.b16 %v4160, %v4159
      %4305 = vmatpush.bf16.msra.mxu0 %v4168
      %4306 = vmatpush.bf16.msra.mxu0 %v4167
      %4307 = vmatpush.bf16.msra.mxu0 %v4166
      %4308 = vmatpush.bf16.msra.mxu0 %v4165
      %4309 = vmatpush.bf16.msra.mxu0 %v4164
      %4310 = vmatpush.bf16.msra.mxu0 %v4163
      %4311 = vmatpush.bf16.msra.mxu0 %v4162
      %4312 = vmatpush.bf16.msra.mxu0 %v4161
      %4313 = vmatmul.bf16.gmra.mxu0 %v2870
      %v4314 = vpop.f32.mrf.mxu0
      %v4315 = vadd.f32 %v3871, %v4314
      %v4316 = vpop.f32.mrf.mxu0
      %v4317 = vadd.f32 %v3871, %v4316
      %4318 = vmatmul.bf16.gmra.mxu0 %v2871
      %v4319 = vpop.f32.mrf.mxu0
      %v4320 = vadd.f32 %v3871, %v4319
      %v4321 = vpop.f32.mrf.mxu0
      %v4322 = vadd.f32 %v3871, %v4321
      %4323 = vmatmul.bf16.gmra.mxu0 %v2872
      %v4324 = vpop.f32.mrf.mxu0
      %v4325 = vadd.f32 %v3871, %v4324
      %v4326 = vpop.f32.mrf.mxu0
      %v4327 = vadd.f32 %v3871, %v4326
      %4328 = vmatmul.bf16.gmra.mxu0 %v2873
      %v4329 = vpop.f32.mrf.mxu0
      %v4330 = vadd.f32 %v3871, %v4329
      %v4331 = vpop.f32.mrf.mxu0
      %v4332 = vadd.f32 %v3871, %v4331
      %4333 = vmatmul.bf16.gmra.mxu0 %v2874
      %v4334 = vpop.f32.mrf.mxu0
      %v4335 = vadd.f32 %v3871, %v4334
      %v4336 = vpop.f32.mrf.mxu0
      %v4337 = vadd.f32 %v3871, %v4336
      %4338 = vmatmul.bf16.gmra.mxu0 %v2875
      %v4339 = vpop.f32.mrf.mxu0
      %v4340 = vadd.f32 %v3871, %v4339
      %v4341 = vpop.f32.mrf.mxu0
      %v4342 = vadd.f32 %v3871, %v4341
      %4343 = vmatmul.bf16.gmra.mxu0 %v2876
      %v4344 = vpop.f32.mrf.mxu0
      %v4345 = vadd.f32 %v3871, %v4344
      %v4346 = vpop.f32.mrf.mxu0
      %v4347 = vadd.f32 %v3871, %v4346
      %4348 = vmatmul.bf16.gmra.mxu0 %v2877
      %v4349 = vpop.f32.mrf.mxu0
      %v4350 = vadd.f32 %v3871, %v4349
      %v4351 = vpop.f32.mrf.mxu0
      %v4352 = vadd.f32 %v3871, %v4351
      %4353 = vmatmul.bf16.gmra.mxu0 %v2878
      %v4354 = vpop.f32.mrf.mxu0
      %v4355 = vadd.f32 %v3871, %v4354
      %v4356 = vpop.f32.mrf.mxu0
      %v4357 = vadd.f32 %v3871, %v4356
      %4358 = vmatmul.bf16.gmra.mxu0 %v2879
      %v4359 = vpop.f32.mrf.mxu0
      %v4360 = vadd.f32 %v3871, %v4359
      %v4361 = vpop.f32.mrf.mxu0
      %v4362 = vadd.f32 %v3871, %v4361
      %4363 = vmatmul.bf16.gmra.mxu0 %v2880
      %v4364 = vpop.f32.mrf.mxu0
      %v4365 = vadd.f32 %v3871, %v4364
      %v4366 = vpop.f32.mrf.mxu0
      %v4367 = vadd.f32 %v3871, %v4366
      %4368 = vmatmul.bf16.gmra.mxu0 %v2881
      %v4369 = vpop.f32.mrf.mxu0
      %v4370 = vadd.f32 %v3871, %v4369
      %v4371 = vpop.f32.mrf.mxu0
      %v4372 = vadd.f32 %v3871, %v4371
      %4373 = vmatmul.bf16.gmra.mxu0 %v2882
      %v4374 = vpop.f32.mrf.mxu0
      %v4375 = vadd.f32 %v3871, %v4374
      %v4376 = vpop.f32.mrf.mxu0
      %v4377 = vadd.f32 %v3871, %v4376
      %4378 = vmatmul.bf16.gmra.mxu0 %v2883
      %v4379 = vpop.f32.mrf.mxu0
      %v4380 = vadd.f32 %v3871, %v4379
      %v4381 = vpop.f32.mrf.mxu0
      %v4382 = vadd.f32 %v3871, %v4381
      %4383 = vmatmul.bf16.gmra.mxu0 %v2884
      %v4384 = vpop.f32.mrf.mxu0
      %v4385 = vadd.f32 %v3871, %v4384
      %v4386 = vpop.f32.mrf.mxu0
      %v4387 = vadd.f32 %v3871, %v4386
      %4388 = vmatmul.bf16.gmra.mxu0 %v2885
      %v4389 = vpop.f32.mrf.mxu0
      %v4390 = vadd.f32 %v3871, %v4389
      %v4391 = vpop.f32.mrf.mxu0
      %v4392 = vadd.f32 %v3871, %v4391
      %4393 = vdwg.mxu0
      %4394 = vmatpush.bf16.msra.mxu0 %v4176
      %4395 = vmatpush.bf16.msra.mxu0 %v4175
      %4396 = vmatpush.bf16.msra.mxu0 %v4174
      %4397 = vmatpush.bf16.msra.mxu0 %v4173
      %4398 = vmatpush.bf16.msra.mxu0 %v4172
      %4399 = vmatpush.bf16.msra.mxu0 %v4171
      %4400 = vmatpush.bf16.msra.mxu0 %v4170
      %4401 = vmatpush.bf16.msra.mxu0 %v4169
      %4402 = vmatmul.bf16.gmra.mxu0 %v2961
      %v4403 = vpop.f32.mrf.mxu0
      %v4404 = vadd.f32 %v4315, %v4403
      %v4405 = vpop.f32.mrf.mxu0
      %v4406 = vadd.f32 %v4317, %v4405
      %4407 = vmatmul.bf16.gmra.mxu0 %v2973
      %v4408 = vpop.f32.mrf.mxu0
      %v4409 = vadd.f32 %v4320, %v4408
      %v4410 = vpop.f32.mrf.mxu0
      %v4411 = vadd.f32 %v4322, %v4410
      %4412 = vmatmul.bf16.gmra.mxu0 %v2985
      %v4413 = vpop.f32.mrf.mxu0
      %v4414 = vadd.f32 %v4325, %v4413
      %v4415 = vpop.f32.mrf.mxu0
      %v4416 = vadd.f32 %v4327, %v4415
      %4417 = vmatmul.bf16.gmra.mxu0 %v2997
      %v4418 = vpop.f32.mrf.mxu0
      %v4419 = vadd.f32 %v4330, %v4418
      %v4420 = vpop.f32.mrf.mxu0
      %v4421 = vadd.f32 %v4332, %v4420
      %4422 = vmatmul.bf16.gmra.mxu0 %v3009
      %v4423 = vpop.f32.mrf.mxu0
      %v4424 = vadd.f32 %v4335, %v4423
      %v4425 = vpop.f32.mrf.mxu0
      %v4426 = vadd.f32 %v4337, %v4425
      %4427 = vmatmul.bf16.gmra.mxu0 %v3021
      %v4428 = vpop.f32.mrf.mxu0
      %v4429 = vadd.f32 %v4340, %v4428
      %v4430 = vpop.f32.mrf.mxu0
      %v4431 = vadd.f32 %v4342, %v4430
      %4432 = vmatmul.bf16.gmra.mxu0 %v3033
      %v4433 = vpop.f32.mrf.mxu0
      %v4434 = vadd.f32 %v4345, %v4433
      %v4435 = vpop.f32.mrf.mxu0
      %v4436 = vadd.f32 %v4347, %v4435
      %4437 = vmatmul.bf16.gmra.mxu0 %v3045
      %v4438 = vpop.f32.mrf.mxu0
      %v4439 = vadd.f32 %v4350, %v4438
      %v4440 = vpop.f32.mrf.mxu0
      %v4441 = vadd.f32 %v4352, %v4440
      %4442 = vmatmul.bf16.gmra.mxu0 %v3057
      %v4443 = vpop.f32.mrf.mxu0
      %v4444 = vadd.f32 %v4355, %v4443
      %v4445 = vpop.f32.mrf.mxu0
      %v4446 = vadd.f32 %v4357, %v4445
      %4447 = vmatmul.bf16.gmra.mxu0 %v3069
      %v4448 = vpop.f32.mrf.mxu0
      %v4449 = vadd.f32 %v4360, %v4448
      %v4450 = vpop.f32.mrf.mxu0
      %v4451 = vadd.f32 %v4362, %v4450
      %4452 = vmatmul.bf16.gmra.mxu0 %v3081
      %v4453 = vpop.f32.mrf.mxu0
      %v4454 = vadd.f32 %v4365, %v4453
      %v4455 = vpop.f32.mrf.mxu0
      %v4456 = vadd.f32 %v4367, %v4455
      %4457 = vmatmul.bf16.gmra.mxu0 %v3093
      %v4458 = vpop.f32.mrf.mxu0
      %v4459 = vadd.f32 %v4370, %v4458
      %v4460 = vpop.f32.mrf.mxu0
      %v4461 = vadd.f32 %v4372, %v4460
      %4462 = vmatmul.bf16.gmra.mxu0 %v3105
      %v4463 = vpop.f32.mrf.mxu0
      %v4464 = vadd.f32 %v4375, %v4463
      %v4465 = vpop.f32.mrf.mxu0
      %v4466 = vadd.f32 %v4377, %v4465
      %4467 = vmatmul.bf16.gmra.mxu0 %v3117
      %v4468 = vpop.f32.mrf.mxu0
      %v4469 = vadd.f32 %v4380, %v4468
      %v4470 = vpop.f32.mrf.mxu0
      %v4471 = vadd.f32 %v4382, %v4470
      %4472 = vmatmul.bf16.gmra.mxu0 %v3129
      %v4473 = vpop.f32.mrf.mxu0
      %v4474 = vadd.f32 %v4385, %v4473
      %v4475 = vpop.f32.mrf.mxu0
      %v4476 = vadd.f32 %v4387, %v4475
      %4477 = vmatmul.bf16.gmra.mxu0 %v3141
      %v4478 = vpop.f32.mrf.mxu0
      %v4479 = vadd.f32 %v4390, %v4478
      %v4480 = vpop.f32.mrf.mxu0
      %v4481 = vadd.f32 %v4392, %v4480
      %4482 = vdwg.mxu0
      %4483 = vmatpush.bf16.msra.mxu0 %v4184
      %4484 = vmatpush.bf16.msra.mxu0 %v4183
      %4485 = vmatpush.bf16.msra.mxu0 %v4182
      %4486 = vmatpush.bf16.msra.mxu0 %v4181
      %4487 = vmatpush.bf16.msra.mxu0 %v4180
      %4488 = vmatpush.bf16.msra.mxu0 %v4179
      %4489 = vmatpush.bf16.msra.mxu0 %v4178
      %4490 = vmatpush.bf16.msra.mxu0 %v4177
      %4491 = vmatmul.bf16.gmra.mxu0 %v3160
      %v4492 = vpop.f32.mrf.mxu0
      %v4493 = vadd.f32 %v4404, %v4492
      %v4494 = vpop.f32.mrf.mxu0
      %v4495 = vadd.f32 %v4406, %v4494
      %4496 = vmatmul.bf16.gmra.mxu0 %v3163
      %v4497 = vpop.f32.mrf.mxu0
      %v4498 = vadd.f32 %v4409, %v4497
      %v4499 = vpop.f32.mrf.mxu0
      %v4500 = vadd.f32 %v4411, %v4499
      %4501 = vmatmul.bf16.gmra.mxu0 %v3166
      %v4502 = vpop.f32.mrf.mxu0
      %v4503 = vadd.f32 %v4414, %v4502
      %v4504 = vpop.f32.mrf.mxu0
      %v4505 = vadd.f32 %v4416, %v4504
      %4506 = vmatmul.bf16.gmra.mxu0 %v3169
      %v4507 = vpop.f32.mrf.mxu0
      %v4508 = vadd.f32 %v4419, %v4507
      %v4509 = vpop.f32.mrf.mxu0
      %v4510 = vadd.f32 %v4421, %v4509
      %4511 = vmatmul.bf16.gmra.mxu0 %v3172
      %v4512 = vpop.f32.mrf.mxu0
      %v4513 = vadd.f32 %v4424, %v4512
      %v4514 = vpop.f32.mrf.mxu0
      %v4515 = vadd.f32 %v4426, %v4514
      %4516 = vmatmul.bf16.gmra.mxu0 %v3175
      %v4517 = vpop.f32.mrf.mxu0
      %v4518 = vadd.f32 %v4429, %v4517
      %v4519 = vpop.f32.mrf.mxu0
      %v4520 = vadd.f32 %v4431, %v4519
      %4521 = vmatmul.bf16.gmra.mxu0 %v3178
      %v4522 = vpop.f32.mrf.mxu0
      %v4523 = vadd.f32 %v4434, %v4522
      %v4524 = vpop.f32.mrf.mxu0
      %v4525 = vadd.f32 %v4436, %v4524
      %4526 = vmatmul.bf16.gmra.mxu0 %v3181
      %v4527 = vpop.f32.mrf.mxu0
      %v4528 = vadd.f32 %v4439, %v4527
      %v4529 = vpop.f32.mrf.mxu0
      %v4530 = vadd.f32 %v4441, %v4529
      %4531 = vmatmul.bf16.gmra.mxu0 %v3184
      %v4532 = vpop.f32.mrf.mxu0
      %v4533 = vadd.f32 %v4444, %v4532
      %v4534 = vpop.f32.mrf.mxu0
      %v4535 = vadd.f32 %v4446, %v4534
      %4536 = vmatmul.bf16.gmra.mxu0 %v3187
      %v4537 = vpop.f32.mrf.mxu0
      %v4538 = vadd.f32 %v4449, %v4537
      %v4539 = vpop.f32.mrf.mxu0
      %v4540 = vadd.f32 %v4451, %v4539
      %4541 = vmatmul.bf16.gmra.mxu0 %v3190
      %v4542 = vpop.f32.mrf.mxu0
      %v4543 = vadd.f32 %v4454, %v4542
      %v4544 = vpop.f32.mrf.mxu0
      %v4545 = vadd.f32 %v4456, %v4544
      %4546 = vmatmul.bf16.gmra.mxu0 %v3193
      %v4547 = vpop.f32.mrf.mxu0
      %v4548 = vadd.f32 %v4459, %v4547
      %v4549 = vpop.f32.mrf.mxu0
      %v4550 = vadd.f32 %v4461, %v4549
      %4551 = vmatmul.bf16.gmra.mxu0 %v3196
      %v4552 = vpop.f32.mrf.mxu0
      %v4553 = vadd.f32 %v4464, %v4552
      %v4554 = vpop.f32.mrf.mxu0
      %v4555 = vadd.f32 %v4466, %v4554
      %4556 = vmatmul.bf16.gmra.mxu0 %v3199
      %v4557 = vpop.f32.mrf.mxu0
      %v4558 = vadd.f32 %v4469, %v4557
      %v4559 = vpop.f32.mrf.mxu0
      %v4560 = vadd.f32 %v4471, %v4559
      %4561 = vmatmul.bf16.gmra.mxu0 %v3202
      %v4562 = vpop.f32.mrf.mxu0
      %v4563 = vadd.f32 %v4474, %v4562
      %v4564 = vpop.f32.mrf.mxu0
      %v4565 = vadd.f32 %v4476, %v4564
      %4566 = vmatmul.bf16.gmra.mxu0 %v3205
      %v4567 = vpop.f32.mrf.mxu0
      %v4568 = vadd.f32 %v4479, %v4567
      %v4569 = vpop.f32.mrf.mxu0
      %v4570 = vadd.f32 %v4481, %v4569
      %4571 = vdwg.mxu0
      %4572 = vmatpush.bf16.msra.mxu0 %v4192
      %4573 = vmatpush.bf16.msra.mxu0 %v4191
      %4574 = vmatpush.bf16.msra.mxu0 %v4190
      %4575 = vmatpush.bf16.msra.mxu0 %v4189
      %4576 = vmatpush.bf16.msra.mxu0 %v4188
      %4577 = vmatpush.bf16.msra.mxu0 %v4187
      %4578 = vmatpush.bf16.msra.mxu0 %v4186
      %4579 = vmatpush.bf16.msra.mxu0 %v4185
      %4580 = vmatmul.bf16.gmra.mxu0 %v2871
      %v4581 = vpop.f32.mrf.mxu0
      %v4582 = vadd.f32 %v4493, %v4581
      %v4583 = vpop.f32.mrf.mxu0
      %v4584 = vadd.f32 %v4495, %v4583
      %4585 = vmatmul.bf16.gmra.mxu0 %v2872
      %v4586 = vpop.f32.mrf.mxu0
      %v4587 = vadd.f32 %v4498, %v4586
      %v4588 = vpop.f32.mrf.mxu0
      %v4589 = vadd.f32 %v4500, %v4588
      %4590 = vmatmul.bf16.gmra.mxu0 %v2873
      %v4591 = vpop.f32.mrf.mxu0
      %v4592 = vadd.f32 %v4503, %v4591
      %v4593 = vpop.f32.mrf.mxu0
      %v4594 = vadd.f32 %v4505, %v4593
      %4595 = vmatmul.bf16.gmra.mxu0 %v2874
      %v4596 = vpop.f32.mrf.mxu0
      %v4597 = vadd.f32 %v4508, %v4596
      %v4598 = vpop.f32.mrf.mxu0
      %v4599 = vadd.f32 %v4510, %v4598
      %4600 = vmatmul.bf16.gmra.mxu0 %v2875
      %v4601 = vpop.f32.mrf.mxu0
      %v4602 = vadd.f32 %v4513, %v4601
      %v4603 = vpop.f32.mrf.mxu0
      %v4604 = vadd.f32 %v4515, %v4603
      %4605 = vmatmul.bf16.gmra.mxu0 %v2876
      %v4606 = vpop.f32.mrf.mxu0
      %v4607 = vadd.f32 %v4518, %v4606
      %v4608 = vpop.f32.mrf.mxu0
      %v4609 = vadd.f32 %v4520, %v4608
      %4610 = vmatmul.bf16.gmra.mxu0 %v2877
      %v4611 = vpop.f32.mrf.mxu0
      %v4612 = vadd.f32 %v4523, %v4611
      %v4613 = vpop.f32.mrf.mxu0
      %v4614 = vadd.f32 %v4525, %v4613
      %4615 = vmatmul.bf16.gmra.mxu0 %v2878
      %v4616 = vpop.f32.mrf.mxu0
      %v4617 = vadd.f32 %v4528, %v4616
      %v4618 = vpop.f32.mrf.mxu0
      %v4619 = vadd.f32 %v4530, %v4618
      %4620 = vmatmul.bf16.gmra.mxu0 %v2879
      %v4621 = vpop.f32.mrf.mxu0
      %v4622 = vadd.f32 %v4533, %v4621
      %v4623 = vpop.f32.mrf.mxu0
      %v4624 = vadd.f32 %v4535, %v4623
      %4625 = vmatmul.bf16.gmra.mxu0 %v2880
      %v4626 = vpop.f32.mrf.mxu0
      %v4627 = vadd.f32 %v4538, %v4626
      %v4628 = vpop.f32.mrf.mxu0
      %v4629 = vadd.f32 %v4540, %v4628
      %4630 = vmatmul.bf16.gmra.mxu0 %v2881
      %v4631 = vpop.f32.mrf.mxu0
      %v4632 = vadd.f32 %v4543, %v4631
      %v4633 = vpop.f32.mrf.mxu0
      %v4634 = vadd.f32 %v4545, %v4633
      %4635 = vmatmul.bf16.gmra.mxu0 %v2882
      %v4636 = vpop.f32.mrf.mxu0
      %v4637 = vadd.f32 %v4548, %v4636
      %v4638 = vpop.f32.mrf.mxu0
      %v4639 = vadd.f32 %v4550, %v4638
      %4640 = vmatmul.bf16.gmra.mxu0 %v2883
      %v4641 = vpop.f32.mrf.mxu0
      %v4642 = vadd.f32 %v4553, %v4641
      %v4643 = vpop.f32.mrf.mxu0
      %v4644 = vadd.f32 %v4555, %v4643
      %4645 = vmatmul.bf16.gmra.mxu0 %v2884
      %v4646 = vpop.f32.mrf.mxu0
      %v4647 = vadd.f32 %v4558, %v4646
      %v4648 = vpop.f32.mrf.mxu0
      %v4649 = vadd.f32 %v4560, %v4648
      %4650 = vmatmul.bf16.gmra.mxu0 %v2885
      %v4651 = vpop.f32.mrf.mxu0
      %v4652 = vadd.f32 %v4563, %v4651
      %v4653 = vpop.f32.mrf.mxu0
      %v4654 = vadd.f32 %v4565, %v4653
      %4655 = vmatmul.bf16.gmra.mxu0 %v3226
      %v4656 = vpop.f32.mrf.mxu0
      %v4657 = vadd.f32 %v4568, %v4656
      %v4658 = vpop.f32.mrf.mxu0
      %v4659 = vadd.f32 %v4570, %v4658
      %4660 = vdwg.mxu0
      %4661 = vmatpush.bf16.msra.mxu0 %v4200
      %4662 = vmatpush.bf16.msra.mxu0 %v4199
      %4663 = vmatpush.bf16.msra.mxu0 %v4198
      %4664 = vmatpush.bf16.msra.mxu0 %v4197
      %4665 = vmatpush.bf16.msra.mxu0 %v4196
      %4666 = vmatpush.bf16.msra.mxu0 %v4195
      %4667 = vmatpush.bf16.msra.mxu0 %v4194
      %4668 = vmatpush.bf16.msra.mxu0 %v4193
      %4669 = vmatmul.bf16.gmra.mxu0 %v2973
      %v4670 = vpop.f32.mrf.mxu0
      %v4671 = vadd.f32 %v4582, %v4670
      %v4672 = vpop.f32.mrf.mxu0
      %v4673 = vadd.f32 %v4584, %v4672
      %4674 = vmatmul.bf16.gmra.mxu0 %v2985
      %v4675 = vpop.f32.mrf.mxu0
      %v4676 = vadd.f32 %v4587, %v4675
      %v4677 = vpop.f32.mrf.mxu0
      %v4678 = vadd.f32 %v4589, %v4677
      %4679 = vmatmul.bf16.gmra.mxu0 %v2997
      %v4680 = vpop.f32.mrf.mxu0
      %v4681 = vadd.f32 %v4592, %v4680
      %v4682 = vpop.f32.mrf.mxu0
      %v4683 = vadd.f32 %v4594, %v4682
      %4684 = vmatmul.bf16.gmra.mxu0 %v3009
      %v4685 = vpop.f32.mrf.mxu0
      %v4686 = vadd.f32 %v4597, %v4685
      %v4687 = vpop.f32.mrf.mxu0
      %v4688 = vadd.f32 %v4599, %v4687
      %4689 = vmatmul.bf16.gmra.mxu0 %v3021
      %v4690 = vpop.f32.mrf.mxu0
      %v4691 = vadd.f32 %v4602, %v4690
      %v4692 = vpop.f32.mrf.mxu0
      %v4693 = vadd.f32 %v4604, %v4692
      %4694 = vmatmul.bf16.gmra.mxu0 %v3033
      %v4695 = vpop.f32.mrf.mxu0
      %v4696 = vadd.f32 %v4607, %v4695
      %v4697 = vpop.f32.mrf.mxu0
      %v4698 = vadd.f32 %v4609, %v4697
      %4699 = vmatmul.bf16.gmra.mxu0 %v3045
      %v4700 = vpop.f32.mrf.mxu0
      %v4701 = vadd.f32 %v4612, %v4700
      %v4702 = vpop.f32.mrf.mxu0
      %v4703 = vadd.f32 %v4614, %v4702
      %4704 = vmatmul.bf16.gmra.mxu0 %v3057
      %v4705 = vpop.f32.mrf.mxu0
      %v4706 = vadd.f32 %v4617, %v4705
      %v4707 = vpop.f32.mrf.mxu0
      %v4708 = vadd.f32 %v4619, %v4707
      %4709 = vmatmul.bf16.gmra.mxu0 %v3069
      %v4710 = vpop.f32.mrf.mxu0
      %v4711 = vadd.f32 %v4622, %v4710
      %v4712 = vpop.f32.mrf.mxu0
      %v4713 = vadd.f32 %v4624, %v4712
      %4714 = vmatmul.bf16.gmra.mxu0 %v3081
      %v4715 = vpop.f32.mrf.mxu0
      %v4716 = vadd.f32 %v4627, %v4715
      %v4717 = vpop.f32.mrf.mxu0
      %v4718 = vadd.f32 %v4629, %v4717
      %4719 = vmatmul.bf16.gmra.mxu0 %v3093
      %v4720 = vpop.f32.mrf.mxu0
      %v4721 = vadd.f32 %v4632, %v4720
      %v4722 = vpop.f32.mrf.mxu0
      %v4723 = vadd.f32 %v4634, %v4722
      %4724 = vmatmul.bf16.gmra.mxu0 %v3105
      %v4725 = vpop.f32.mrf.mxu0
      %v4726 = vadd.f32 %v4637, %v4725
      %v4727 = vpop.f32.mrf.mxu0
      %v4728 = vadd.f32 %v4639, %v4727
      %4729 = vmatmul.bf16.gmra.mxu0 %v3117
      %v4730 = vpop.f32.mrf.mxu0
      %v4731 = vadd.f32 %v4642, %v4730
      %v4732 = vpop.f32.mrf.mxu0
      %v4733 = vadd.f32 %v4644, %v4732
      %4734 = vmatmul.bf16.gmra.mxu0 %v3129
      %v4735 = vpop.f32.mrf.mxu0
      %v4736 = vadd.f32 %v4647, %v4735
      %v4737 = vpop.f32.mrf.mxu0
      %v4738 = vadd.f32 %v4649, %v4737
      %4739 = vmatmul.bf16.gmra.mxu0 %v3141
      %v4740 = vpop.f32.mrf.mxu0
      %v4741 = vadd.f32 %v4652, %v4740
      %v4742 = vpop.f32.mrf.mxu0
      %v4743 = vadd.f32 %v4654, %v4742
      %4744 = vmatmul.bf16.gmra.mxu0 %v3242
      %v4745 = vpop.f32.mrf.mxu0
      %v4746 = vadd.f32 %v4657, %v4745
      %v4747 = vpop.f32.mrf.mxu0
      %v4748 = vadd.f32 %v4659, %v4747
      %4749 = vdwg.mxu0
      %4750 = vmatpush.bf16.msra.mxu0 %v4208
      %4751 = vmatpush.bf16.msra.mxu0 %v4207
      %4752 = vmatpush.bf16.msra.mxu0 %v4206
      %4753 = vmatpush.bf16.msra.mxu0 %v4205
      %4754 = vmatpush.bf16.msra.mxu0 %v4204
      %4755 = vmatpush.bf16.msra.mxu0 %v4203
      %4756 = vmatpush.bf16.msra.mxu0 %v4202
      %4757 = vmatpush.bf16.msra.mxu0 %v4201
      %4758 = vmatmul.bf16.gmra.mxu0 %v3163
      %v4759 = vpop.f32.mrf.mxu0
      %v4760 = vadd.f32 %v4671, %v4759
      %v4761 = vpop.f32.mrf.mxu0
      %v4762 = vadd.f32 %v4673, %v4761
      %4763 = vmatmul.bf16.gmra.mxu0 %v3166
      %v4764 = vpop.f32.mrf.mxu0
      %v4765 = vadd.f32 %v4676, %v4764
      %v4766 = vpop.f32.mrf.mxu0
      %v4767 = vadd.f32 %v4678, %v4766
      %4768 = vmatmul.bf16.gmra.mxu0 %v3169
      %v4769 = vpop.f32.mrf.mxu0
      %v4770 = vadd.f32 %v4681, %v4769
      %v4771 = vpop.f32.mrf.mxu0
      %v4772 = vadd.f32 %v4683, %v4771
      %4773 = vmatmul.bf16.gmra.mxu0 %v3172
      %v4774 = vpop.f32.mrf.mxu0
      %v4775 = vadd.f32 %v4686, %v4774
      %v4776 = vpop.f32.mrf.mxu0
      %v4777 = vadd.f32 %v4688, %v4776
      %4778 = vmatmul.bf16.gmra.mxu0 %v3175
      %v4779 = vpop.f32.mrf.mxu0
      %v4780 = vadd.f32 %v4691, %v4779
      %v4781 = vpop.f32.mrf.mxu0
      %v4782 = vadd.f32 %v4693, %v4781
      %4783 = vmatmul.bf16.gmra.mxu0 %v3178
      %v4784 = vpop.f32.mrf.mxu0
      %v4785 = vadd.f32 %v4696, %v4784
      %v4786 = vpop.f32.mrf.mxu0
      %v4787 = vadd.f32 %v4698, %v4786
      %4788 = vmatmul.bf16.gmra.mxu0 %v3181
      %v4789 = vpop.f32.mrf.mxu0
      %v4790 = vadd.f32 %v4701, %v4789
      %v4791 = vpop.f32.mrf.mxu0
      %v4792 = vadd.f32 %v4703, %v4791
      %4793 = vmatmul.bf16.gmra.mxu0 %v3184
      %v4794 = vpop.f32.mrf.mxu0
      %v4795 = vadd.f32 %v4706, %v4794
      %v4796 = vpop.f32.mrf.mxu0
      %v4797 = vadd.f32 %v4708, %v4796
      %4798 = vmatmul.bf16.gmra.mxu0 %v3187
      %v4799 = vpop.f32.mrf.mxu0
      %v4800 = vadd.f32 %v4711, %v4799
      %v4801 = vpop.f32.mrf.mxu0
      %v4802 = vadd.f32 %v4713, %v4801
      %4803 = vmatmul.bf16.gmra.mxu0 %v3190
      %v4804 = vpop.f32.mrf.mxu0
      %v4805 = vadd.f32 %v4716, %v4804
      %v4806 = vpop.f32.mrf.mxu0
      %v4807 = vadd.f32 %v4718, %v4806
      %4808 = vmatmul.bf16.gmra.mxu0 %v3193
      %v4809 = vpop.f32.mrf.mxu0
      %v4810 = vadd.f32 %v4721, %v4809
      %v4811 = vpop.f32.mrf.mxu0
      %v4812 = vadd.f32 %v4723, %v4811
      %4813 = vmatmul.bf16.gmra.mxu0 %v3196
      %v4814 = vpop.f32.mrf.mxu0
      %v4815 = vadd.f32 %v4726, %v4814
      %v4816 = vpop.f32.mrf.mxu0
      %v4817 = vadd.f32 %v4728, %v4816
      %4818 = vmatmul.bf16.gmra.mxu0 %v3199
      %v4819 = vpop.f32.mrf.mxu0
      %v4820 = vadd.f32 %v4731, %v4819
      %v4821 = vpop.f32.mrf.mxu0
      %v4822 = vadd.f32 %v4733, %v4821
      %4823 = vmatmul.bf16.gmra.mxu0 %v3202
      %v4824 = vpop.f32.mrf.mxu0
      %v4825 = vadd.f32 %v4736, %v4824
      %v4826 = vpop.f32.mrf.mxu0
      %v4827 = vadd.f32 %v4738, %v4826
      %4828 = vmatmul.bf16.gmra.mxu0 %v3205
      %v4829 = vpop.f32.mrf.mxu0
      %v4830 = vadd.f32 %v4741, %v4829
      %v4831 = vpop.f32.mrf.mxu0
      %v4832 = vadd.f32 %v4743, %v4831
      %4833 = vmatmul.bf16.gmra.mxu0 %v3246
      %v4834 = vpop.f32.mrf.mxu0
      %v4835 = vadd.f32 %v4746, %v4834
      %v4836 = vpop.f32.mrf.mxu0
      %v4837 = vadd.f32 %v4748, %v4836
      %4838 = vdwg.mxu0
      %4839 = vmatpush.bf16.msra.mxu0 %v4216
      %4840 = vmatpush.bf16.msra.mxu0 %v4215
      %4841 = vmatpush.bf16.msra.mxu0 %v4214
      %4842 = vmatpush.bf16.msra.mxu0 %v4213
      %4843 = vmatpush.bf16.msra.mxu0 %v4212
      %4844 = vmatpush.bf16.msra.mxu0 %v4211
      %4845 = vmatpush.bf16.msra.mxu0 %v4210
      %4846 = vmatpush.bf16.msra.mxu0 %v4209
      %4847 = vmatmul.bf16.gmra.mxu0 %v2872
      %v4848 = vpop.f32.mrf.mxu0
      %v4849 = vadd.f32 %v4760, %v4848
      %v4850 = vpop.f32.mrf.mxu0
      %v4851 = vadd.f32 %v4762, %v4850
      %4852 = vmatmul.bf16.gmra.mxu0 %v2873
      %v4853 = vpop.f32.mrf.mxu0
      %v4854 = vadd.f32 %v4765, %v4853
      %v4855 = vpop.f32.mrf.mxu0
      %v4856 = vadd.f32 %v4767, %v4855
      %4857 = vmatmul.bf16.gmra.mxu0 %v2874
      %v4858 = vpop.f32.mrf.mxu0
      %v4859 = vadd.f32 %v4770, %v4858
      %v4860 = vpop.f32.mrf.mxu0
      %v4861 = vadd.f32 %v4772, %v4860
      %4862 = vmatmul.bf16.gmra.mxu0 %v2875
      %v4863 = vpop.f32.mrf.mxu0
      %v4864 = vadd.f32 %v4775, %v4863
      %v4865 = vpop.f32.mrf.mxu0
      %v4866 = vadd.f32 %v4777, %v4865
      %4867 = vmatmul.bf16.gmra.mxu0 %v2876
      %v4868 = vpop.f32.mrf.mxu0
      %v4869 = vadd.f32 %v4780, %v4868
      %v4870 = vpop.f32.mrf.mxu0
      %v4871 = vadd.f32 %v4782, %v4870
      %4872 = vmatmul.bf16.gmra.mxu0 %v2877
      %v4873 = vpop.f32.mrf.mxu0
      %v4874 = vadd.f32 %v4785, %v4873
      %v4875 = vpop.f32.mrf.mxu0
      %v4876 = vadd.f32 %v4787, %v4875
      %4877 = vmatmul.bf16.gmra.mxu0 %v2878
      %v4878 = vpop.f32.mrf.mxu0
      %v4879 = vadd.f32 %v4790, %v4878
      %v4880 = vpop.f32.mrf.mxu0
      %v4881 = vadd.f32 %v4792, %v4880
      %4882 = vmatmul.bf16.gmra.mxu0 %v2879
      %v4883 = vpop.f32.mrf.mxu0
      %v4884 = vadd.f32 %v4795, %v4883
      %v4885 = vpop.f32.mrf.mxu0
      %v4886 = vadd.f32 %v4797, %v4885
      %4887 = vmatmul.bf16.gmra.mxu0 %v2880
      %v4888 = vpop.f32.mrf.mxu0
      %v4889 = vadd.f32 %v4800, %v4888
      %v4890 = vpop.f32.mrf.mxu0
      %v4891 = vadd.f32 %v4802, %v4890
      %4892 = vmatmul.bf16.gmra.mxu0 %v2881
      %v4893 = vpop.f32.mrf.mxu0
      %v4894 = vadd.f32 %v4805, %v4893
      %v4895 = vpop.f32.mrf.mxu0
      %v4896 = vadd.f32 %v4807, %v4895
      %4897 = vmatmul.bf16.gmra.mxu0 %v2882
      %v4898 = vpop.f32.mrf.mxu0
      %v4899 = vadd.f32 %v4810, %v4898
      %v4900 = vpop.f32.mrf.mxu0
      %v4901 = vadd.f32 %v4812, %v4900
      %4902 = vmatmul.bf16.gmra.mxu0 %v2883
      %v4903 = vpop.f32.mrf.mxu0
      %v4904 = vadd.f32 %v4815, %v4903
      %v4905 = vpop.f32.mrf.mxu0
      %v4906 = vadd.f32 %v4817, %v4905
      %4907 = vmatmul.bf16.gmra.mxu0 %v2884
      %v4908 = vpop.f32.mrf.mxu0
      %v4909 = vadd.f32 %v4820, %v4908
      %v4910 = vpop.f32.mrf.mxu0
      %v4911 = vadd.f32 %v4822, %v4910
      %4912 = vmatmul.bf16.gmra.mxu0 %v2885
      %v4913 = vpop.f32.mrf.mxu0
      %v4914 = vadd.f32 %v4825, %v4913
      %v4915 = vpop.f32.mrf.mxu0
      %v4916 = vadd.f32 %v4827, %v4915
      %4917 = vmatmul.bf16.gmra.mxu0 %v3226
      %v4918 = vpop.f32.mrf.mxu0
      %v4919 = vadd.f32 %v4830, %v4918
      %v4920 = vpop.f32.mrf.mxu0
      %v4921 = vadd.f32 %v4832, %v4920
      %4922 = vmatmul.bf16.gmra.mxu0 %v3252
      %v4923 = vpop.f32.mrf.mxu0
      %v4924 = vadd.f32 %v4835, %v4923
      %v4925 = vpop.f32.mrf.mxu0
      %v4926 = vadd.f32 %v4837, %v4925
      %4927 = vdwg.mxu0
      %4928 = vmatpush.bf16.msra.mxu0 %v4224
      %4929 = vmatpush.bf16.msra.mxu0 %v4223
      %4930 = vmatpush.bf16.msra.mxu0 %v4222
      %4931 = vmatpush.bf16.msra.mxu0 %v4221
      %4932 = vmatpush.bf16.msra.mxu0 %v4220
      %4933 = vmatpush.bf16.msra.mxu0 %v4219
      %4934 = vmatpush.bf16.msra.mxu0 %v4218
      %4935 = vmatpush.bf16.msra.mxu0 %v4217
      %4936 = vmatmul.bf16.gmra.mxu0 %v2985
      %v4937 = vpop.f32.mrf.mxu0
      %v4938 = vadd.f32 %v4849, %v4937
      %v4939 = vpop.f32.mrf.mxu0
      %v4940 = vadd.f32 %v4851, %v4939
      %4941 = vmatmul.bf16.gmra.mxu0 %v2997
      %v4942 = vpop.f32.mrf.mxu0
      %v4943 = vadd.f32 %v4854, %v4942
      %v4944 = vpop.f32.mrf.mxu0
      %v4945 = vadd.f32 %v4856, %v4944
      %4946 = vmatmul.bf16.gmra.mxu0 %v3009
      %v4947 = vpop.f32.mrf.mxu0
      %v4948 = vadd.f32 %v4859, %v4947
      %v4949 = vpop.f32.mrf.mxu0
      %v4950 = vadd.f32 %v4861, %v4949
      %4951 = vmatmul.bf16.gmra.mxu0 %v3021
      %v4952 = vpop.f32.mrf.mxu0
      %v4953 = vadd.f32 %v4864, %v4952
      %v4954 = vpop.f32.mrf.mxu0
      %v4955 = vadd.f32 %v4866, %v4954
      %4956 = vmatmul.bf16.gmra.mxu0 %v3033
      %v4957 = vpop.f32.mrf.mxu0
      %v4958 = vadd.f32 %v4869, %v4957
      %v4959 = vpop.f32.mrf.mxu0
      %v4960 = vadd.f32 %v4871, %v4959
      %4961 = vmatmul.bf16.gmra.mxu0 %v3045
      %v4962 = vpop.f32.mrf.mxu0
      %v4963 = vadd.f32 %v4874, %v4962
      %v4964 = vpop.f32.mrf.mxu0
      %v4965 = vadd.f32 %v4876, %v4964
      %4966 = vmatmul.bf16.gmra.mxu0 %v3057
      %v4967 = vpop.f32.mrf.mxu0
      %v4968 = vadd.f32 %v4879, %v4967
      %v4969 = vpop.f32.mrf.mxu0
      %v4970 = vadd.f32 %v4881, %v4969
      %4971 = vmatmul.bf16.gmra.mxu0 %v3069
      %v4972 = vpop.f32.mrf.mxu0
      %v4973 = vadd.f32 %v4884, %v4972
      %v4974 = vpop.f32.mrf.mxu0
      %v4975 = vadd.f32 %v4886, %v4974
      %4976 = vmatmul.bf16.gmra.mxu0 %v3081
      %v4977 = vpop.f32.mrf.mxu0
      %v4978 = vadd.f32 %v4889, %v4977
      %v4979 = vpop.f32.mrf.mxu0
      %v4980 = vadd.f32 %v4891, %v4979
      %4981 = vmatmul.bf16.gmra.mxu0 %v3093
      %v4982 = vpop.f32.mrf.mxu0
      %v4983 = vadd.f32 %v4894, %v4982
      %v4984 = vpop.f32.mrf.mxu0
      %v4985 = vadd.f32 %v4896, %v4984
      %4986 = vmatmul.bf16.gmra.mxu0 %v3105
      %v4987 = vpop.f32.mrf.mxu0
      %v4988 = vadd.f32 %v4899, %v4987
      %v4989 = vpop.f32.mrf.mxu0
      %v4990 = vadd.f32 %v4901, %v4989
      %4991 = vmatmul.bf16.gmra.mxu0 %v3117
      %v4992 = vpop.f32.mrf.mxu0
      %v4993 = vadd.f32 %v4904, %v4992
      %v4994 = vpop.f32.mrf.mxu0
      %v4995 = vadd.f32 %v4906, %v4994
      %4996 = vmatmul.bf16.gmra.mxu0 %v3129
      %v4997 = vpop.f32.mrf.mxu0
      %v4998 = vadd.f32 %v4909, %v4997
      %v4999 = vpop.f32.mrf.mxu0
      %v5000 = vadd.f32 %v4911, %v4999
      %5001 = vmatmul.bf16.gmra.mxu0 %v3141
      %v5002 = vpop.f32.mrf.mxu0
      %v5003 = vadd.f32 %v4914, %v5002
      %v5004 = vpop.f32.mrf.mxu0
      %v5005 = vadd.f32 %v4916, %v5004
      %5006 = vmatmul.bf16.gmra.mxu0 %v3242
      %v5007 = vpop.f32.mrf.mxu0
      %v5008 = vadd.f32 %v4919, %v5007
      %v5009 = vpop.f32.mrf.mxu0
      %v5010 = vadd.f32 %v4921, %v5009
      %5011 = vmatmul.bf16.gmra.mxu0 %v3268
      %v5012 = vpop.f32.mrf.mxu0
      %v5013 = vadd.f32 %v4924, %v5012
      %v5014 = vpop.f32.mrf.mxu0
      %v5015 = vadd.f32 %v4926, %v5014
      %5016 = vdwg.mxu0
      %5017 = vmatpush.bf16.msra.mxu0 %v4232
      %5018 = vmatpush.bf16.msra.mxu0 %v4231
      %5019 = vmatpush.bf16.msra.mxu0 %v4230
      %5020 = vmatpush.bf16.msra.mxu0 %v4229
      %5021 = vmatpush.bf16.msra.mxu0 %v4228
      %5022 = vmatpush.bf16.msra.mxu0 %v4227
      %5023 = vmatpush.bf16.msra.mxu0 %v4226
      %5024 = vmatpush.bf16.msra.mxu0 %v4225
      %5025 = vmatmul.bf16.gmra.mxu0 %v3166
      %v5026 = vpop.f32.mrf.mxu0
      %v5027 = vadd.f32 %v4938, %v5026
      %v5028 = vpop.f32.mrf.mxu0
      %v5029 = vadd.f32 %v4940, %v5028
      %5030 = vmatmul.bf16.gmra.mxu0 %v3169
      %v5031 = vpop.f32.mrf.mxu0
      %v5032 = vadd.f32 %v4943, %v5031
      %v5033 = vpop.f32.mrf.mxu0
      %v5034 = vadd.f32 %v4945, %v5033
      %5035 = vmatmul.bf16.gmra.mxu0 %v3172
      %v5036 = vpop.f32.mrf.mxu0
      %v5037 = vadd.f32 %v4948, %v5036
      %v5038 = vpop.f32.mrf.mxu0
      %v5039 = vadd.f32 %v4950, %v5038
      %5040 = vmatmul.bf16.gmra.mxu0 %v3175
      %v5041 = vpop.f32.mrf.mxu0
      %v5042 = vadd.f32 %v4953, %v5041
      %v5043 = vpop.f32.mrf.mxu0
      %v5044 = vadd.f32 %v4955, %v5043
      %5045 = vmatmul.bf16.gmra.mxu0 %v3178
      %v5046 = vpop.f32.mrf.mxu0
      %v5047 = vadd.f32 %v4958, %v5046
      %v5048 = vpop.f32.mrf.mxu0
      %v5049 = vadd.f32 %v4960, %v5048
      %5050 = vmatmul.bf16.gmra.mxu0 %v3181
      %v5051 = vpop.f32.mrf.mxu0
      %v5052 = vadd.f32 %v4963, %v5051
      %v5053 = vpop.f32.mrf.mxu0
      %v5054 = vadd.f32 %v4965, %v5053
      %5055 = vmatmul.bf16.gmra.mxu0 %v3184
      %v5056 = vpop.f32.mrf.mxu0
      %v5057 = vadd.f32 %v4968, %v5056
      %v5058 = vpop.f32.mrf.mxu0
      %v5059 = vadd.f32 %v4970, %v5058
      %5060 = vmatmul.bf16.gmra.mxu0 %v3187
      %v5061 = vpop.f32.mrf.mxu0
      %v5062 = vadd.f32 %v4973, %v5061
      %v5063 = vpop.f32.mrf.mxu0
      %v5064 = vadd.f32 %v4975, %v5063
      %5065 = vmatmul.bf16.gmra.mxu0 %v3190
      %v5066 = vpop.f32.mrf.mxu0
      %v5067 = vadd.f32 %v4978, %v5066
      %v5068 = vpop.f32.mrf.mxu0
      %v5069 = vadd.f32 %v4980, %v5068
      %5070 = vmatmul.bf16.gmra.mxu0 %v3193
      %v5071 = vpop.f32.mrf.mxu0
      %v5072 = vadd.f32 %v4983, %v5071
      %v5073 = vpop.f32.mrf.mxu0
      %v5074 = vadd.f32 %v4985, %v5073
      %5075 = vmatmul.bf16.gmra.mxu0 %v3196
      %v5076 = vpop.f32.mrf.mxu0
      %v5077 = vadd.f32 %v4988, %v5076
      %v5078 = vpop.f32.mrf.mxu0
      %v5079 = vadd.f32 %v4990, %v5078
      %5080 = vmatmul.bf16.gmra.mxu0 %v3199
      %v5081 = vpop.f32.mrf.mxu0
      %v5082 = vadd.f32 %v4993, %v5081
      %v5083 = vpop.f32.mrf.mxu0
      %v5084 = vadd.f32 %v4995, %v5083
      %5085 = vmatmul.bf16.gmra.mxu0 %v3202
      %v5086 = vpop.f32.mrf.mxu0
      %v5087 = vadd.f32 %v4998, %v5086
      %v5088 = vpop.f32.mrf.mxu0
      %v5089 = vadd.f32 %v5000, %v5088
      %5090 = vmatmul.bf16.gmra.mxu0 %v3205
      %v5091 = vpop.f32.mrf.mxu0
      %v5092 = vadd.f32 %v5003, %v5091
      %v5093 = vpop.f32.mrf.mxu0
      %v5094 = vadd.f32 %v5005, %v5093
      %5095 = vmatmul.bf16.gmra.mxu0 %v3246
      %v5096 = vpop.f32.mrf.mxu0
      %v5097 = vadd.f32 %v5008, %v5096
      %v5098 = vpop.f32.mrf.mxu0
      %v5099 = vadd.f32 %v5010, %v5098
      %5100 = vmatmul.bf16.gmra.mxu0 %v3272
      %v5101 = vpop.f32.mrf.mxu0
      %v5102 = vadd.f32 %v5013, %v5101
      %v5103 = vpop.f32.mrf.mxu0
      %v5104 = vadd.f32 %v5015, %v5103
      %5105 = vdwg.mxu0
      %v5106 = vadd.f32 %v5027, %v3837
      %v5107 = vadd.f32 %v5029, %v3838
      %v5108 = vadd.f32 %v5032, %v3839
      %v5109 = vadd.f32 %v5034, %v3840
      %v5110 = vadd.f32 %v5037, %v3841
      %v5111 = vadd.f32 %v5039, %v3842
      %v5112 = vadd.f32 %v5042, %v3843
      %v5113 = vadd.f32 %v5044, %v3844
      %v5114 = vadd.f32 %v5047, %v3845
      %v5115 = vadd.f32 %v5049, %v3846
      %v5116 = vadd.f32 %v5052, %v3847
      %v5117 = vadd.f32 %v5054, %v3848
      %v5118 = vadd.f32 %v5057, %v3849
      %v5119 = vadd.f32 %v5059, %v3850
      %v5120 = vadd.f32 %v5062, %v3851
      %v5121 = vadd.f32 %v5064, %v3852
      %v5122 = vadd.f32 %v5067, %v3853
      %v5123 = vadd.f32 %v5069, %v3854
      %v5124 = vadd.f32 %v5072, %v3855
      %v5125 = vadd.f32 %v5074, %v3856
      %v5126 = vadd.f32 %v5077, %v3857
      %v5127 = vadd.f32 %v5079, %v3858
      %v5128 = vadd.f32 %v5082, %v3859
      %v5129 = vadd.f32 %v5084, %v3860
      %v5130 = vadd.f32 %v5087, %v3861
      %v5131 = vadd.f32 %v5089, %v3862
      %v5132 = vadd.f32 %v5092, %v3863
      %v5133 = vadd.f32 %v5094, %v3864
      %v5134 = vadd.f32 %v5097, %v3865
      %v5135 = vadd.f32 %v5099, %v3866
      %v5136 = vadd.f32 %v5102, %v3867
      %v5137 = vadd.f32 %v5104, %v3868
      %v5138 = vmax.f32 %v5106, 0.0
      %v5139 = vmax.f32 %v5107, 0.0
      %v5140 = vmax.f32 %v5108, 0.0
      %v5141 = vmax.f32 %v5109, 0.0
      %v5142 = vmax.f32 %v5110, 0.0
      %v5143 = vmax.f32 %v5111, 0.0
      %v5144 = vmax.f32 %v5112, 0.0
      %v5145 = vmax.f32 %v5113, 0.0
      %v5146 = vmax.f32 %v5114, 0.0
      %v5147 = vmax.f32 %v5115, 0.0
      %v5148 = vmax.f32 %v5116, 0.0
      %v5149 = vmax.f32 %v5117, 0.0
      %v5150 = vmax.f32 %v5118, 0.0
      %v5151 = vmax.f32 %v5119, 0.0
      %v5152 = vmax.f32 %v5120, 0.0
      %v5153 = vmax.f32 %v5121, 0.0
      %v5154 = vmax.f32 %v5122, 0.0
      %v5155 = vmax.f32 %v5123, 0.0
      %v5156 = vmax.f32 %v5124, 0.0
      %v5157 = vmax.f32 %v5125, 0.0
      %v5158 = vmax.f32 %v5126, 0.0
      %v5159 = vmax.f32 %v5127, 0.0
      %v5160 = vmax.f32 %v5128, 0.0
      %v5161 = vmax.f32 %v5129, 0.0
      %v5162 = vmax.f32 %v5130, 0.0
      %v5163 = vmax.f32 %v5131, 0.0
      %v5164 = vmax.f32 %v5132, 0.0
      %v5165 = vmax.f32 %v5133, 0.0
      %v5166 = vmax.f32 %v5134, 0.0
      %v5167 = vmax.f32 %v5135, 0.0
      %v5168 = vmax.f32 %v5136, 0.0
      %v5169 = vmax.f32 %v5137, 0.0
      %5170 = vst [vmem:[%s224] sm:$0xff] %v5138
      %5171 = vst [vmem:[%s224 + $0x8] sm:$0xff] %v5139
      %5172 = vst [vmem:[%s224 + $0x10] sm:$0xff] %v5140
      %5173 = vst [vmem:[%s224 + $0x18] sm:$0xff] %v5141
      %5174 = vst [vmem:[%s224 + $0x20] sm:$0xff] %v5142
      %5175 = vst [vmem:[%s224 + $0x28] sm:$0xff] %v5143
      %5176 = vst [vmem:[%s224 + $0x30] sm:$0xff] %v5144
      %5177 = vst [vmem:[%s224 + $0x38] sm:$0xff] %v5145
      %5178 = vst [vmem:[%s224 + $0x40] sm:$0xff] %v5146
      %5179 = vst [vmem:[%s224 + $0x48] sm:$0xff] %v5147
      %5180 = vst [vmem:[%s224 + $0x50] sm:$0xff] %v5148
      %5181 = vst [vmem:[%s224 + $0x58] sm:$0xff] %v5149
      %5182 = vst [vmem:[%s224 + $0x60] sm:$0xff] %v5150
      %5183 = vst [vmem:[%s224 + $0x68] sm:$0xff] %v5151
      %5184 = vst [vmem:[%s224 + $0x70] sm:$0xff] %v5152
      %5185 = vst [vmem:[%s224 + $0x78] sm:$0xff] %v5153
      %5186 = vst [vmem:[%s224 + $0x80] sm:$0xff] %v5154
      %5187 = vst [vmem:[%s224 + $0x88] sm:$0xff] %v5155
      %5188 = vst [vmem:[%s224 + $0x90] sm:$0xff] %v5156
      %5189 = vst [vmem:[%s224 + $0x98] sm:$0xff] %v5157
      %5190 = vst [vmem:[%s224 + $0xa0] sm:$0xff] %v5158
      %5191 = vst [vmem:[%s224 + $0xa8] sm:$0xff] %v5159
      %5192 = vst [vmem:[%s224 + $0xb0] sm:$0xff] %v5160
      %5193 = vst [vmem:[%s224 + $0xb8] sm:$0xff] %v5161
      %5194 = vst [vmem:[%s224 + $0xc0] sm:$0xff] %v5162
      %5195 = vst [vmem:[%s224 + $0xc8] sm:$0xff] %v5163
      %5196 = vst [vmem:[%s224 + $0xd0] sm:$0xff] %v5164
      %5197 = vst [vmem:[%s224 + $0xd8] sm:$0xff] %v5165
      %5198 = vst [vmem:[%s224 + $0xe0] sm:$0xff] %v5166
      %5199 = vst [vmem:[%s224 + $0xe8] sm:$0xff] %v5167
      %5200 = vst [vmem:[%s224 + $0xf0] sm:$0xff] %v5168
      %5201 = vst [vmem:[%s224 + $0xf8] sm:$0xff] %v5169
      %p5202 = scmp.lt.s32.totalorder %s16, 1
      %s5203 = scalar_select %p5202, %s16, 1
      %s5204 = smul.addr %s5203, 32
      %s5205 = smul.addr %s5204, 8
      %s5206 = scalar_lea.vmem %s5, %s5205
      // Predicated region
      $region41: #{residual_block_pallas.1} parent=39 // pred_check
        %p5207 = pneg %p144
      $region42: #{residual_block_pallas.1} parent=39 // pred_check_branch
        %5209 = sbr.rel (%p5207) target = $region44
      $region43: #{residual_block_pallas.1} parent=39 // pred_region
        _
      $region44: #{residual_block_pallas.1} parent=39 // pred_fallthru
        _
    $region40: #{residual_block_pallas.1} parent=5 // pred_fallthru
      _
    %p5210 = scmp.le.s32.totalorder 2, %s11
    // Predicated region
    $region45: #{residual_block_pallas.1} parent=5 // pred_check
      %p5211 = pneg %p5210
    $region46: #{residual_block_pallas.1} parent=5 // pred_check_branch
      %5213 = sbr.rel (%p5211) target = $region48
    $region47: #{residual_block_pallas.1} parent=5 // pred_region
      %s5214 = ssub.s32 %s11, 2
      // Predicated region
      $region49: #{residual_block_pallas.1} parent=47 // pred_check
        %p5215 = pneg %p150
      $region50: #{residual_block_pallas.1} parent=47 // pred_check_branch
        %5217 = sbr.rel (%p5215) target = $region52
      $region51: #{residual_block_pallas.1} parent=47 // pred_region
        %p5218 = scmp.lt.s32.totalorder %s17, 1
        %s5219 = scalar_select %p5218, %s17, 1
        %s5220 = smul.addr %s5219, 32
        %s5221 = smul.addr %s5220, 8
        %s5222 = scalar_lea.vmem %s5, %s5221
      $region52: #{residual_block_pallas.1} parent=47 // pred_fallthru
        _
    $region48: #{residual_block_pallas.1} parent=5 // pred_fallthru
      _
  $region6: #{residual_block_pallas.1} parent=0 // loop_footer
    %s15 = sadd.s32 1, %s11
  $region7: #{residual_block_pallas.1} parent=0 // loop_footer_branch
    %10 = sbr.rel target = $region3
  $region8: #{residual_block_pallas.1} parent=0 // loop_exit
    _

</llo_original>
